<compile_context>
chip_gen: v7x
topology: tpu7x:2x2x1
jax: 0.10.0
libtpu: 0.0.40
codegen_flags: <defaults>
</compile_context>

<pallas_src>
import functools

import jax
import jax.numpy as jnp
from jax.experimental import pallas as pl
from jax.experimental.pallas import tpu as pltpu


def _round_up(x, m):
    return (x + m - 1) // m * m


# ---------------------------------------------------------------------------
# Kernels
# ---------------------------------------------------------------------------

def _birnn_layer_kernel(x_ref, wih_ref, whh_f_ref, whh_b_ref, b_ref,
                        out_ref, x2d_ref, xw_ref, *, T, B, H):
    """One fused bidirectional RNN layer.

    x_ref:    (T, B, Din)      bf16  VMEM (time-major batch block)
    wih_ref:  (Din, 2*H)       bf16  (fwd | bwd input weights, pre-transposed)
    whh_*:    (H, H)           bf16
    b_ref:    (1, 2*H)         f32   (b_ih + b_hh, fwd | bwd)
    out_ref:  (T, B, 2*H)      bf16  (fwd half | bwd half)
    x2d_ref:  (T*B, Din)       bf16  scratch
    xw_ref:   (T*B, 2*H)       f32   scratch (hoisted input projection)
    """
    # Pack (T, B, Din) -> (T*B, Din) with T cheap static copies (off the serial
    # chain) so the input projection is ONE large MXU GEMM for both directions.
    for t in range(T):
        x2d_ref[pl.ds(t * B, B), :] = x_ref[t]

    # Hoisted input projection + bias (added once, not per step).
    xw_ref[...] = (
        jnp.dot(x2d_ref[...], wih_ref[...], preferred_element_type=jnp.float32)
        + b_ref[...])

    # Loop-invariant weight loads, hoisted out of the recurrence.
    whh_f = whh_f_ref[...]
    whh_b = whh_b_ref[...]

    # Serial recurrence: fully unrolled static loop, h carried in registers.
    h_f = jnp.zeros((B, H), jnp.float32)
    h_b = jnp.zeros((B, H), jnp.float32)
    for t in range(T):
        tb = T - 1 - t
        pre_f = xw_ref[pl.ds(t * B, B), pl.ds(0, H)] + jnp.dot(
            h_f.astype(jnp.bfloat16), whh_f, preferred_element_type=jnp.float32)
        pre_b = xw_ref[pl.ds(tb * B, B), pl.ds(H, H)] + jnp.dot(
            h_b.astype(jnp.bfloat16), whh_b, preferred_element_type=jnp.float32)
        h_f = jnp.tanh(pre_f)
        h_b = jnp.tanh(pre_b)
        out_ref[t, :, pl.ds(0, H)] = h_f.astype(out_ref.dtype)
        out_ref[tb, :, pl.ds(H, H)] = h_b.astype(out_ref.dtype)


def _rnn_out_kernel(x_ref, wih_ref, whh_ref, b_ref, out_ref, x2d_ref, xw_ref,
                    *, T, B, O, input_relu, output_sigmoid):
    """Final unidirectional RNN layer with fused input ReLU and output Sigmoid.

    x_ref:   (T, B, Din) bf16 ; wih_ref: (Din, O) bf16 ; whh_ref: (O, O) bf16
    b_ref:   (1, O) f32  ; out_ref: (T, B, O) f32
    x2d_ref: (T*B, Din) bf16 scratch ; xw_ref: (T*B, O) f32 scratch
    """
    for t in range(T):
        xt = x_ref[t]
        if input_relu:                       # fused nn.ReLU
            xt = jnp.maximum(xt, 0)
        x2d_ref[pl.ds(t * B, B), :] = xt

    xw_ref[...] = (
        jnp.dot(x2d_ref[...], wih_ref[...], preferred_element_type=jnp.float32)
        + b_ref[...])

    whh = whh_ref[...]
    h = jnp.zeros((B, O), jnp.float32)
    for t in range(T):
        pre = xw_ref[pl.ds(t * B, B), :] + jnp.dot(
            h.astype(jnp.bfloat16), whh, preferred_element_type=jnp.float32)
        h = jnp.tanh(pre)
        if output_sigmoid:                   # fused nn.Sigmoid
            y = 1.0 / (1.0 + jnp.exp(-h))
        else:
            y = h
        out_ref[t] = y.astype(out_ref.dtype)


# ---------------------------------------------------------------------------
# pallas_call wrappers
# ---------------------------------------------------------------------------

def _pick_batch_block(B):
    # 16-wide blocks (bf16 sublane tile) when possible -> grid splits across the
    # two v7x TensorCores; otherwise keep the whole batch in one program.
    return 16 if (B % 16 == 0) else B


def birnn_layer(x, wih_cat, whh_f, whh_b, b_cat):
    """Fused bidirectional RNN layer. x: (T, B, Din) bf16 -> (T, B, 2*Hp) bf16."""
    T, B, Din = x.shape
    Hp = whh_f.shape[0]
    b_blk = _pick_batch_block(B)
    grid = (B // b_blk,)
    kern = functools.partial(_birnn_layer_kernel, T=T, B=b_blk, H=Hp)
    return pl.pallas_call(
        kern,
        out_shape=jax.ShapeDtypeStruct((T, B, 2 * Hp), jnp.bfloat16),
        grid_spec=pltpu.PrefetchScalarGridSpec(
            num_scalar_prefetch=0,
            grid=grid,
            in_specs=[
                pl.BlockSpec((T, b_blk, Din), lambda i: (0, i, 0)),
                pl.BlockSpec((Din, 2 * Hp), lambda i: (0, 0)),
                pl.BlockSpec((Hp, Hp), lambda i: (0, 0)),
                pl.BlockSpec((Hp, Hp), lambda i: (0, 0)),
                pl.BlockSpec((1, 2 * Hp), lambda i: (0, 0)),
            ],
            out_specs=pl.BlockSpec((T, b_blk, 2 * Hp), lambda i: (0, i, 0)),
            scratch_shapes=[
                pltpu.VMEM((T * b_blk, Din), jnp.bfloat16),
                pltpu.VMEM((T * b_blk, 2 * Hp), jnp.float32),
            ],
        ),
        compiler_params=pltpu.CompilerParams(
            dimension_semantics=("parallel",)),
    )(x, wih_cat, whh_f, whh_b, b_cat)


def rnn_out_layer(x, wih, whh, b, *, input_relu, output_sigmoid):
    """Final unidirectional RNN layer. x: (T, B, Din) bf16 -> (T, B, Op) f32."""
    T, B, Din = x.shape
    Op = whh.shape[0]
    b_blk = _pick_batch_block(B)
    grid = (B // b_blk,)
    kern = functools.partial(_rnn_out_kernel, T=T, B=b_blk, O=Op,
                             input_relu=input_relu,
                             output_sigmoid=output_sigmoid)
    return pl.pallas_call(
        kern,
        out_shape=jax.ShapeDtypeStruct((T, B, Op), jnp.float32),
        grid_spec=pltpu.PrefetchScalarGridSpec(
            num_scalar_prefetch=0,
            grid=grid,
            in_specs=[
                pl.BlockSpec((T, b_blk, Din), lambda i: (0, i, 0)),
                pl.BlockSpec((Din, Op), lambda i: (0, 0)),
                pl.BlockSpec((Op, Op), lambda i: (0, 0)),
                pl.BlockSpec((1, Op), lambda i: (0, 0)),
            ],
            out_specs=pl.BlockSpec((T, b_blk, Op), lambda i: (0, i, 0)),
            scratch_shapes=[
                pltpu.VMEM((T * b_blk, Din), jnp.bfloat16),
                pltpu.VMEM((T * b_blk, Op), jnp.float32),
            ],
        ),
        compiler_params=pltpu.CompilerParams(
            dimension_semantics=("parallel",)),
    )(x, wih, whh, b)


# ---------------------------------------------------------------------------
# Parameters (lane-padded, PyTorch-style init)
# ---------------------------------------------------------------------------

def _uniform(key, shape, bound):
    return jax.random.uniform(key, shape, jnp.float32, -bound, bound)


def init_params(key, *, vocab_size, embedding_dim, hidden_size, num_layers,
                out_size):
    """nn.Embedding / nn.RNN-style init, zero-padded to 128-lane tiles.

    The padded rows/cols are exact zeros, so the padded model computes exactly
    the same values (in its real sub-blocks) as the unpadded one.
    """
    E, H, O = embedding_dim, hidden_size, out_size
    EP, HP, OP = _round_up(E, 128), _round_up(H, 128), _round_up(O, 128)
    keys = iter(jax.random.split(key, 256))

    params = {"dims": dict(E=E, H=H, O=O, EP=EP, HP=HP, OP=OP)}

    # nn.Embedding default: N(0, 1); pad embedding dim to 128 lanes.
    emb = jax.random.normal(next(keys), (vocab_size, E), jnp.float32)
    params["embedding"] = jnp.pad(emb, ((0, 0), (0, EP - E))).astype(jnp.bfloat16)

    kb = 1.0 / float(H) ** 0.5
    layers = []
    for layer in range(num_layers):
        if layer == 0:
            segs = [(0, E)]                 # real rows inside the padded input
            din_pad = EP
        else:
            segs = [(0, H), (HP, H)]        # fwd-hidden rows, bwd-hidden rows
            din_pad = 2 * HP
        wihs, whhs, biases = [], [], []
        for _direction in range(2):         # forward, backward
            wih = jnp.zeros((din_pad, HP), jnp.float32)
            for (off, rows) in segs:
                wih = wih.at[off:off + rows, :H].set(
                    _uniform(next(keys), (rows, H), kb))
            whh = jnp.zeros((HP, HP), jnp.float32).at[:H, :H].set(
                _uniform(next(keys), (H, H), kb))
            bias = jnp.zeros((1, HP), jnp.float32).at[:, :H].set(
                _uniform(next(keys), (1, H), kb)
                + _uniform(next(keys), (1, H), kb))
            wihs.append(wih); whhs.append(whh); biases.append(bias)
        wih_cat = jnp.concatenate(wihs, axis=1).astype(jnp.bfloat16)   # (din, 2HP)
        b_cat = jnp.concatenate(biases, axis=1)                        # (1, 2HP) f32
        layers.append((wih_cat,
                       whhs[0].astype(jnp.bfloat16),
                       whhs[1].astype(jnp.bfloat16),
                       b_cat))
    params["rnn"] = layers

    ko = 1.0 / float(O) ** 0.5
    wih_o = jnp.zeros((2 * HP, OP), jnp.float32)
    for (off, rows) in [(0, H), (HP, H)]:
        wih_o = wih_o.at[off:off + rows, :O].set(
            _uniform(next(keys), (rows, O), ko))
    whh_o = jnp.zeros((OP, OP), jnp.float32).at[:O, :O].set(
        _uniform(next(keys), (O, O), ko))
    b_o = jnp.zeros((1, OP), jnp.float32).at[:, :O].set(
        _uniform(next(keys), (1, O), ko) + _uniform(next(keys), (1, O), ko))
    params["out_rnn"] = (wih_o.astype(jnp.bfloat16),
                         whh_o.astype(jnp.bfloat16), b_o)
    return params


# ---------------------------------------------------------------------------
# Forward pass (matches the PyTorch module's forward)
# ---------------------------------------------------------------------------

def rnn_bidireccional_forward(params, x_ids, *, out_size,
                              initial_punct_class_size,
                              final_punct_class_size, cap_class_size):
    """x_ids: (B, T) int32 token ids -> (out_init, out_final, out_cap)."""
    # TODO(synk): bert_embedding=True path needs pretrained BERT weights; only the
    #             nn.Embedding path is implemented.
    emb = params["embedding"][x_ids]                 # (B, T, EP) gather (glue)
    x = jnp.transpose(emb, (1, 0, 2))                # (T, B, EP) time-major bf16

    # Multi-layer bidirectional nn.RNN (fwd+bwd fused per layer).
    for (wih_cat, whh_f, whh_b, b_cat) in params["rnn"]:
        x = birnn_layer(x, wih_cat, whh_f, whh_b, b_cat)   # (T, B, 2*HP) bf16

    # nn.ReLU on the bidirectional output and the final nn.Sigmoid are fused
    # into the output-layer kernel; the output is lane-padded then sliced here.
    y = rnn_out_layer(x, *params["out_rnn"], input_relu=True,
                      output_sigmoid=True)                 # (T, B, OP) f32
    y = jnp.transpose(y, (1, 0, 2))[:, :, :out_size]       # (B, T, out_size)

    # Faithful port of the module's slicing (it slices the batch dimension by
    # the class sizes; with the demo config out_cap is empty, as in PyTorch).
    out_init = y[:initial_punct_class_size]
    out_final = y[initial_punct_class_size:final_punct_class_size]
    out_cap = y[final_punct_class_size:cap_class_size]
    return out_init, out_final, out_cap


if __name__ == "__main__":
    # Small, deterministic config consistent with the module's __init__.
    B, T = 8, 8
    vocab_size = 50
    embedding_dim = 16
    hidden_size = 32
    num_layers = 2
    cap_class_size = 4
    initial_punct_class_size = 2
    final_punct_class_size = 4
    out_size = initial_punct_class_size + final_punct_class_size + cap_class_size

    key = jax.random.PRNGKey(0)
    pkey, xkey = jax.random.split(key)
    params = init_params(pkey,
                         vocab_size=vocab_size,
                         embedding_dim=embedding_dim,
                         hidden_size=hidden_size,
                         num_layers=num_layers,
                         out_size=out_size)

    x_ids = jax.random.randint(xkey, (B, T), 0, vocab_size, dtype=jnp.int32)

    fwd = jax.jit(functools.partial(
        rnn_bidireccional_forward,
        out_size=out_size,
        initial_punct_class_size=initial_punct_class_size,
        final_punct_class_size=final_punct_class_size,
        cap_class_size=cap_class_size))

    out_init, out_final, out_cap = fwd(params, x_ids)
    jax.block_until_ready((out_init, out_final, out_cap))

    assert out_init.shape == (initial_punct_class_size, T, out_size)
    assert out_final.shape == (final_punct_class_size - initial_punct_class_size,
                               T, out_size)
    assert bool(jnp.all(jnp.isfinite(out_init))) and bool(
        jnp.all(jnp.isfinite(out_final)))
    print("KERNEL_OK")
</pallas_src>

<mosaic_0001>
module attributes {stable_mosaic.version = 11 : i64} {
  func.func @_birnn_layer_kernel(%arg0: i32, %arg1: memref<8x8x128xbf16, #tpu.memory_space<vmem>>, %arg2: memref<128x256xbf16, #tpu.memory_space<vmem>>, %arg3: memref<128x128xbf16, #tpu.memory_space<vmem>>, %arg4: memref<128x128xbf16, #tpu.memory_space<vmem>>, %arg5: memref<1x256xf32, #tpu.memory_space<vmem>>, %arg6: memref<8x8x256xbf16, #tpu.memory_space<vmem>>, %arg7: memref<64x128xbf16, #tpu.memory_space<vmem>>, %arg8: memref<64x256xf32, #tpu.memory_space<vmem>>) attributes {dimension_semantics = [#tpu.dimension_semantics<parallel>], iteration_bounds = array<i64: 1>, scalar_prefetch = 0 : i64, scratch_operands = 2 : i64, tpu.core_type = #tpu.core_type<tc>, window_params = [{transform_indices = @transform_0, window_bounds = array<i64: 8, 8, 128>}, {pipeline_mode = #tpu.pipeline_mode<synchronous>, transform_indices = @transform_1, window_bounds = array<i64: 128, 256>}, {pipeline_mode = #tpu.pipeline_mode<synchronous>, transform_indices = @transform_2, window_bounds = array<i64: 128, 128>}, {pipeline_mode = #tpu.pipeline_mode<synchronous>, transform_indices = @transform_3, window_bounds = array<i64: 128, 128>}, {pipeline_mode = #tpu.pipeline_mode<synchronous>, transform_indices = @transform_4, window_bounds = array<i64: 1, 256>}, {transform_indices = @transform_5, window_bounds = array<i64: 8, 8, 256>}]} {
    %c0 = arith.constant 0 : index
    %c0_0 = arith.constant 0 : index
    %c0_1 = arith.constant 0 : index
    %0 = vector.load %arg1[%c0, %c0_0, %c0_1] : memref<8x8x128xbf16, #tpu.memory_space<vmem>>, vector<1x8x128xbf16>
    %1 = vector.shape_cast %0 : vector<1x8x128xbf16> to vector<8x128xbf16>
    %c0_2 = arith.constant 0 : index
    %c0_3 = arith.constant 0 : index
    %2 = vector.load %arg7[%c0_2, %c0_3] : memref<64x128xbf16, #tpu.memory_space<vmem>>, vector<8x128xbf16>
    tpu.vector_store %arg7[%c0_2, %c0_3], %1 {strides = array<i32>} : memref<64x128xbf16, #tpu.memory_space<vmem>>, vector<8x128xbf16>,
    %c1 = arith.constant 1 : index
    %c0_4 = arith.constant 0 : index
    %c0_5 = arith.constant 0 : index
    %3 = vector.load %arg1[%c1, %c0_4, %c0_5] : memref<8x8x128xbf16, #tpu.memory_space<vmem>>, vector<1x8x128xbf16>
    %4 = vector.shape_cast %3 : vector<1x8x128xbf16> to vector<8x128xbf16>
    %c8 = arith.constant 8 : index
    %c0_6 = arith.constant 0 : index
    %5 = vector.load %arg7[%c8, %c0_6] : memref<64x128xbf16, #tpu.memory_space<vmem>>, vector<8x128xbf16>
    tpu.vector_store %arg7[%c8, %c0_6], %4 {strides = array<i32>} : memref<64x128xbf16, #tpu.memory_space<vmem>>, vector<8x128xbf16>,
    %c2 = arith.constant 2 : index
    %c0_7 = arith.constant 0 : index
    %c0_8 = arith.constant 0 : index
    %6 = vector.load %arg1[%c2, %c0_7, %c0_8] : memref<8x8x128xbf16, #tpu.memory_space<vmem>>, vector<1x8x128xbf16>
    %7 = vector.shape_cast %6 : vector<1x8x128xbf16> to vector<8x128xbf16>
    %c16 = arith.constant 16 : index
    %c0_9 = arith.constant 0 : index
    %8 = vector.load %arg7[%c16, %c0_9] : memref<64x128xbf16, #tpu.memory_space<vmem>>, vector<8x128xbf16>
    tpu.vector_store %arg7[%c16, %c0_9], %7 {strides = array<i32>} : memref<64x128xbf16, #tpu.memory_space<vmem>>, vector<8x128xbf16>,
    %c3 = arith.constant 3 : index
    %c0_10 = arith.constant 0 : index
    %c0_11 = arith.constant 0 : index
    %9 = vector.load %arg1[%c3, %c0_10, %c0_11] : memref<8x8x128xbf16, #tpu.memory_space<vmem>>, vector<1x8x128xbf16>
    %10 = vector.shape_cast %9 : vector<1x8x128xbf16> to vector<8x128xbf16>
    %c24 = arith.constant 24 : index
    %c0_12 = arith.constant 0 : index
    %11 = vector.load %arg7[%c24, %c0_12] : memref<64x128xbf16, #tpu.memory_space<vmem>>, vector<8x128xbf16>
    tpu.vector_store %arg7[%c24, %c0_12], %10 {strides = array<i32>} : memref<64x128xbf16, #tpu.memory_space<vmem>>, vector<8x128xbf16>,
    %c4 = arith.constant 4 : index
    %c0_13 = arith.constant 0 : index
    %c0_14 = arith.constant 0 : index
    %12 = vector.load %arg1[%c4, %c0_13, %c0_14] : memref<8x8x128xbf16, #tpu.memory_space<vmem>>, vector<1x8x128xbf16>
    %13 = vector.shape_cast %12 : vector<1x8x128xbf16> to vector<8x128xbf16>
    %c32 = arith.constant 32 : index
    %c0_15 = arith.constant 0 : index
    %14 = vector.load %arg7[%c32, %c0_15] : memref<64x128xbf16, #tpu.memory_space<vmem>>, vector<8x128xbf16>
    tpu.vector_store %arg7[%c32, %c0_15], %13 {strides = array<i32>} : memref<64x128xbf16, #tpu.memory_space<vmem>>, vector<8x128xbf16>,
    %c5 = arith.constant 5 : index
    %c0_16 = arith.constant 0 : index
    %c0_17 = arith.constant 0 : index
    %15 = vector.load %arg1[%c5, %c0_16, %c0_17] : memref<8x8x128xbf16, #tpu.memory_space<vmem>>, vector<1x8x128xbf16>
    %16 = vector.shape_cast %15 : vector<1x8x128xbf16> to vector<8x128xbf16>
    %c40 = arith.constant 40 : index
    %c0_18 = arith.constant 0 : index
    %17 = vector.load %arg7[%c40, %c0_18] : memref<64x128xbf16, #tpu.memory_space<vmem>>, vector<8x128xbf16>
    tpu.vector_store %arg7[%c40, %c0_18], %16 {strides = array<i32>} : memref<64x128xbf16, #tpu.memory_space<vmem>>, vector<8x128xbf16>,
    %c6 = arith.constant 6 : index
    %c0_19 = arith.constant 0 : index
    %c0_20 = arith.constant 0 : index
    %18 = vector.load %arg1[%c6, %c0_19, %c0_20] : memref<8x8x128xbf16, #tpu.memory_space<vmem>>, vector<1x8x128xbf16>
    %19 = vector.shape_cast %18 : vector<1x8x128xbf16> to vector<8x128xbf16>
    %c48 = arith.constant 48 : index
    %c0_21 = arith.constant 0 : index
    %20 = vector.load %arg7[%c48, %c0_21] : memref<64x128xbf16, #tpu.memory_space<vmem>>, vector<8x128xbf16>
    tpu.vector_store %arg7[%c48, %c0_21], %19 {strides = array<i32>} : memref<64x128xbf16, #tpu.memory_space<vmem>>, vector<8x128xbf16>,
    %c7 = arith.constant 7 : index
    %c0_22 = arith.constant 0 : index
    %c0_23 = arith.constant 0 : index
    %21 = vector.load %arg1[%c7, %c0_22, %c0_23] : memref<8x8x128xbf16, #tpu.memory_space<vmem>>, vector<1x8x128xbf16>
    %22 = vector.shape_cast %21 : vector<1x8x128xbf16> to vector<8x128xbf16>
    %c56 = arith.constant 56 : index
    %c0_24 = arith.constant 0 : index
    %23 = vector.load %arg7[%c56, %c0_24] : memref<64x128xbf16, #tpu.memory_space<vmem>>, vector<8x128xbf16>
    tpu.vector_store %arg7[%c56, %c0_24], %22 {strides = array<i32>} : memref<64x128xbf16, #tpu.memory_space<vmem>>, vector<8x128xbf16>,
    %c0_25 = arith.constant 0 : index
    %c0_26 = arith.constant 0 : index
    %24 = vector.load %arg7[%c0_25, %c0_26] : memref<64x128xbf16, #tpu.memory_space<vmem>>, vector<64x128xbf16>
    %c0_27 = arith.constant 0 : index
    %c0_28 = arith.constant 0 : index
    %25 = vector.load %arg2[%c0_27, %c0_28] : memref<128x256xbf16, #tpu.memory_space<vmem>>, vector<128x256xbf16>
    %cst = arith.constant dense<0.000000e+00> : vector<64x256xf32>
    %26 = tpu.matmul %24, %25, %cst {dimension_numbers = #tpu.dot_dimension_numbers<[1], [0], [0], [1], [0, 0, 1, 1], [], []>} : vector<64x128xbf16>, vector<128x256xbf16>, vector<64x256xf32> -> vector<64x256xf32>
    %c0_29 = arith.constant 0 : index
    %c0_30 = arith.constant 0 : index
    %27 = vector.load %arg5[%c0_29, %c0_30] : memref<1x256xf32, #tpu.memory_space<vmem>>, vector<1x256xf32>
    %28 = vector.broadcast %27 : vector<1x256xf32> to vector<64x256xf32>
    %29 = arith.addf %26, %28 : vector<64x256xf32>
    %c0_31 = arith.constant 0 : index
    %c0_32 = arith.constant 0 : index
    %30 = vector.load %arg8[%c0_31, %c0_32] : memref<64x256xf32, #tpu.memory_space<vmem>>, vector<64x256xf32>
    tpu.vector_store %arg8[%c0_31, %c0_32], %29 {strides = array<i32>} : memref<64x256xf32, #tpu.memory_space<vmem>>, vector<64x256xf32>,
    %c0_33 = arith.constant 0 : index
    %c0_34 = arith.constant 0 : index
    %31 = vector.load %arg3[%c0_33, %c0_34] : memref<128x128xbf16, #tpu.memory_space<vmem>>, vector<128x128xbf16>
    %c0_35 = arith.constant 0 : index
    %c0_36 = arith.constant 0 : index
    %32 = vector.load %arg4[%c0_35, %c0_36] : memref<128x128xbf16, #tpu.memory_space<vmem>>, vector<128x128xbf16>
    %cst_37 = arith.constant 0.000000e+00 : f32
    %33 = vector.broadcast %cst_37 : f32 to vector<8x128xf32>
    %cst_38 = arith.constant 0.000000e+00 : f32
    %34 = vector.broadcast %cst_38 : f32 to vector<8x128xf32>
    %c0_39 = arith.constant 0 : index
    %c0_40 = arith.constant 0 : index
    %35 = vector.load %arg8[%c0_39, %c0_40] : memref<64x256xf32, #tpu.memory_space<vmem>>, vector<8x128xf32>
    %36 = arith.truncf %33 : vector<8x128xf32> to vector<8x128xbf16>
    %cst_41 = arith.constant dense<0.000000e+00> : vector<8x128xf32>
    %37 = tpu.matmul %36, %31, %cst_41 {dimension_numbers = #tpu.dot_dimension_numbers<[1], [0], [0], [1], [0, 0, 1, 1], [], []>} : vector<8x128xbf16>, vector<128x128xbf16>, vector<8x128xf32> -> vector<8x128xf32>
    %38 = arith.addf %35, %37 : vector<8x128xf32>
    %c56_42 = arith.constant 56 : index
    %c128 = arith.constant 128 : index
    %39 = vector.load %arg8[%c56_42, %c128] : memref<64x256xf32, #tpu.memory_space<vmem>>, vector<8x128xf32>
    %40 = arith.truncf %34 : vector<8x128xf32> to vector<8x128xbf16>
    %cst_43 = arith.constant dense<0.000000e+00> : vector<8x128xf32>
    %41 = tpu.matmul %40, %32, %cst_43 {dimension_numbers = #tpu.dot_dimension_numbers<[1], [0], [0], [1], [0, 0, 1, 1], [], []>} : vector<8x128xbf16>, vector<128x128xbf16>, vector<8x128xf32> -> vector<8x128xf32>
    %42 = arith.addf %39, %41 : vector<8x128xf32>
    %43 = math.tanh %38 : vector<8x128xf32>
    %44 = math.tanh %42 : vector<8x128xf32>
    %45 = arith.truncf %43 : vector<8x128xf32> to vector<8x128xbf16>
    %c0_44 = arith.constant 0 : index
    %c0_45 = arith.constant 0 : index
    %c0_46 = arith.constant 0 : index
    %46 = vector.load %arg6[%c0_44, %c0_45, %c0_46] : memref<8x8x256xbf16, #tpu.memory_space<vmem>>, vector<1x8x128xbf16>
    %47 = vector.shape_cast %46 : vector<1x8x128xbf16> to vector<8x128xbf16>
    %48 = vector.shape_cast %45 : vector<8x128xbf16> to vector<1x8x128xbf16>
    tpu.vector_store %arg6[%c0_44, %c0_45, %c0_46], %48 {strides = array<i32>} : memref<8x8x256xbf16, #tpu.memory_space<vmem>>, vector<1x8x128xbf16>,
    %49 = arith.truncf %44 : vector<8x128xf32> to vector<8x128xbf16>
    %c7_47 = arith.constant 7 : index
    %c0_48 = arith.constant 0 : index
    %c128_49 = arith.constant 128 : index
    %50 = vector.load %arg6[%c7_47, %c0_48, %c128_49] : memref<8x8x256xbf16, #tpu.memory_space<vmem>>, vector<1x8x128xbf16>
    %51 = vector.shape_cast %50 : vector<1x8x128xbf16> to vector<8x128xbf16>
    %52 = vector.shape_cast %49 : vector<8x128xbf16> to vector<1x8x128xbf16>
    tpu.vector_store %arg6[%c7_47, %c0_48, %c128_49], %52 {strides = array<i32>} : memref<8x8x256xbf16, #tpu.memory_space<vmem>>, vector<1x8x128xbf16>,
    %c8_50 = arith.constant 8 : index
    %c0_51 = arith.constant 0 : index
    %53 = vector.load %arg8[%c8_50, %c0_51] : memref<64x256xf32, #tpu.memory_space<vmem>>, vector<8x128xf32>
    %54 = arith.truncf %43 : vector<8x128xf32> to vector<8x128xbf16>
    %cst_52 = arith.constant dense<0.000000e+00> : vector<8x128xf32>
    %55 = tpu.matmul %54, %31, %cst_52 {dimension_numbers = #tpu.dot_dimension_numbers<[1], [0], [0], [1], [0, 0, 1, 1], [], []>} : vector<8x128xbf16>, vector<128x128xbf16>, vector<8x128xf32> -> vector<8x128xf32>
    %56 = arith.addf %53, %55 : vector<8x128xf32>
    %c48_53 = arith.constant 48 : index
    %c128_54 = arith.constant 128 : index
    %57 = vector.load %arg8[%c48_53, %c128_54] : memref<64x256xf32, #tpu.memory_space<vmem>>, vector<8x128xf32>
    %58 = arith.truncf %44 : vector<8x128xf32> to vector<8x128xbf16>
    %cst_55 = arith.constant dense<0.000000e+00> : vector<8x128xf32>
    %59 = tpu.matmul %58, %32, %cst_55 {dimension_numbers = #tpu.dot_dimension_numbers<[1], [0], [0], [1], [0, 0, 1, 1], [], []>} : vector<8x128xbf16>, vector<128x128xbf16>, vector<8x128xf32> -> vector<8x128xf32>
    %60 = arith.addf %57, %59 : vector<8x128xf32>
    %61 = math.tanh %56 : vector<8x128xf32>
    %62 = math.tanh %60 : vector<8x128xf32>
    %63 = arith.truncf %61 : vector<8x128xf32> to vector<8x128xbf16>
    %c1_56 = arith.constant 1 : index
    %c0_57 = arith.constant 0 : index
    %c0_58 = arith.constant 0 : index
    %64 = vector.load %arg6[%c1_56, %c0_57, %c0_58] : memref<8x8x256xbf16, #tpu.memory_space<vmem>>, vector<1x8x128xbf16>
    %65 = vector.shape_cast %64 : vector<1x8x128xbf16> to vector<8x128xbf16>
    %66 = vector.shape_cast %63 : vector<8x128xbf16> to vector<1x8x128xbf16>
    tpu.vector_store %arg6[%c1_56, %c0_57, %c0_58], %66 {strides = array<i32>} : memref<8x8x256xbf16, #tpu.memory_space<vmem>>, vector<1x8x128xbf16>,
    %67 = arith.truncf %62 : vector<8x128xf32> to vector<8x128xbf16>
    %c6_59 = arith.constant 6 : index
    %c0_60 = arith.constant 0 : index
    %c128_61 = arith.constant 128 : index
    %68 = vector.load %arg6[%c6_59, %c0_60, %c128_61] : memref<8x8x256xbf16, #tpu.memory_space<vmem>>, vector<1x8x128xbf16>
    %69 = vector.shape_cast %68 : vector<1x8x128xbf16> to vector<8x128xbf16>
    %70 = vector.shape_cast %67 : vector<8x128xbf16> to vector<1x8x128xbf16>
    tpu.vector_store %arg6[%c6_59, %c0_60, %c128_61], %70 {strides = array<i32>} : memref<8x8x256xbf16, #tpu.memory_space<vmem>>, vector<1x8x128xbf16>,
    %c16_62 = arith.constant 16 : index
    %c0_63 = arith.constant 0 : index
    %71 = vector.load %arg8[%c16_62, %c0_63] : memref<64x256xf32, #tpu.memory_space<vmem>>, vector<8x128xf32>
    %72 = arith.truncf %61 : vector<8x128xf32> to vector<8x128xbf16>
    %cst_64 = arith.constant dense<0.000000e+00> : vector<8x128xf32>
    %73 = tpu.matmul %72, %31, %cst_64 {dimension_numbers = #tpu.dot_dimension_numbers<[1], [0], [0], [1], [0, 0, 1, 1], [], []>} : vector<8x128xbf16>, vector<128x128xbf16>, vector<8x128xf32> -> vector<8x128xf32>
    %74 = arith.addf %71, %73 : vector<8x128xf32>
    %c40_65 = arith.constant 40 : index
    %c128_66 = arith.constant 128 : index
    %75 = vector.load %arg8[%c40_65, %c128_66] : memref<64x256xf32, #tpu.memory_space<vmem>>, vector<8x128xf32>
    %76 = arith.truncf %62 : vector<8x128xf32> to vector<8x128xbf16>
    %cst_67 = arith.constant dense<0.000000e+00> : vector<8x128xf32>
    %77 = tpu.matmul %76, %32, %cst_67 {dimension_numbers = #tpu.dot_dimension_numbers<[1], [0], [0], [1], [0, 0, 1, 1], [], []>} : vector<8x128xbf16>, vector<128x128xbf16>, vector<8x128xf32> -> vector<8x128xf32>
    %78 = arith.addf %75, %77 : vector<8x128xf32>
    %79 = math.tanh %74 : vector<8x128xf32>
    %80 = math.tanh %78 : vector<8x128xf32>
    %81 = arith.truncf %79 : vector<8x128xf32> to vector<8x128xbf16>
    %c2_68 = arith.constant 2 : index
    %c0_69 = arith.constant 0 : index
    %c0_70 = arith.constant 0 : index
    %82 = vector.load %arg6[%c2_68, %c0_69, %c0_70] : memref<8x8x256xbf16, #tpu.memory_space<vmem>>, vector<1x8x128xbf16>
    %83 = vector.shape_cast %82 : vector<1x8x128xbf16> to vector<8x128xbf16>
    %84 = vector.shape_cast %81 : vector<8x128xbf16> to vector<1x8x128xbf16>
    tpu.vector_store %arg6[%c2_68, %c0_69, %c0_70], %84 {strides = array<i32>} : memref<8x8x256xbf16, #tpu.memory_space<vmem>>, vector<1x8x128xbf16>,
    %85 = arith.truncf %80 : vector<8x128xf32> to vector<8x128xbf16>
    %c5_71 = arith.constant 5 : index
    %c0_72 = arith.constant 0 : index
    %c128_73 = arith.constant 128 : index
    %86 = vector.load %arg6[%c5_71, %c0_72, %c128_73] : memref<8x8x256xbf16, #tpu.memory_space<vmem>>, vector<1x8x128xbf16>
    %87 = vector.shape_cast %86 : vector<1x8x128xbf16> to vector<8x128xbf16>
    %88 = vector.shape_cast %85 : vector<8x128xbf16> to vector<1x8x128xbf16>
    tpu.vector_store %arg6[%c5_71, %c0_72, %c128_73], %88 {strides = array<i32>} : memref<8x8x256xbf16, #tpu.memory_space<vmem>>, vector<1x8x128xbf16>,
    %c24_74 = arith.constant 24 : index
    %c0_75 = arith.constant 0 : index
    %89 = vector.load %arg8[%c24_74, %c0_75] : memref<64x256xf32, #tpu.memory_space<vmem>>, vector<8x128xf32>
    %90 = arith.truncf %79 : vector<8x128xf32> to vector<8x128xbf16>
    %cst_76 = arith.constant dense<0.000000e+00> : vector<8x128xf32>
    %91 = tpu.matmul %90, %31, %cst_76 {dimension_numbers = #tpu.dot_dimension_numbers<[1], [0], [0], [1], [0, 0, 1, 1], [], []>} : vector<8x128xbf16>, vector<128x128xbf16>, vector<8x128xf32> -> vector<8x128xf32>
    %92 = arith.addf %89, %91 : vector<8x128xf32>
    %c32_77 = arith.constant 32 : index
    %c128_78 = arith.constant 128 : index
    %93 = vector.load %arg8[%c32_77, %c128_78] : memref<64x256xf32, #tpu.memory_space<vmem>>, vector<8x128xf32>
    %94 = arith.truncf %80 : vector<8x128xf32> to vector<8x128xbf16>
    %cst_79 = arith.constant dense<0.000000e+00> : vector<8x128xf32>
    %95 = tpu.matmul %94, %32, %cst_79 {dimension_numbers = #tpu.dot_dimension_numbers<[1], [0], [0], [1], [0, 0, 1, 1], [], []>} : vector<8x128xbf16>, vector<128x128xbf16>, vector<8x128xf32> -> vector<8x128xf32>
    %96 = arith.addf %93, %95 : vector<8x128xf32>
    %97 = math.tanh %92 : vector<8x128xf32>
    %98 = math.tanh %96 : vector<8x128xf32>
    %99 = arith.truncf %97 : vector<8x128xf32> to vector<8x128xbf16>
    %c3_80 = arith.constant 3 : index
    %c0_81 = arith.constant 0 : index
    %c0_82 = arith.constant 0 : index
    %100 = vector.load %arg6[%c3_80, %c0_81, %c0_82] : memref<8x8x256xbf16, #tpu.memory_space<vmem>>, vector<1x8x128xbf16>
    %101 = vector.shape_cast %100 : vector<1x8x128xbf16> to vector<8x128xbf16>
    %102 = vector.shape_cast %99 : vector<8x128xbf16> to vector<1x8x128xbf16>
    tpu.vector_store %arg6[%c3_80, %c0_81, %c0_82], %102 {strides = array<i32>} : memref<8x8x256xbf16, #tpu.memory_space<vmem>>, vector<1x8x128xbf16>,
    %103 = arith.truncf %98 : vector<8x128xf32> to vector<8x128xbf16>
    %c4_83 = arith.constant 4 : index
    %c0_84 = arith.constant 0 : index
    %c128_85 = arith.constant 128 : index
    %104 = vector.load %arg6[%c4_83, %c0_84, %c128_85] : memref<8x8x256xbf16, #tpu.memory_space<vmem>>, vector<1x8x128xbf16>
    %105 = vector.shape_cast %104 : vector<1x8x128xbf16> to vector<8x128xbf16>
    %106 = vector.shape_cast %103 : vector<8x128xbf16> to vector<1x8x128xbf16>
    tpu.vector_store %arg6[%c4_83, %c0_84, %c128_85], %106 {strides = array<i32>} : memref<8x8x256xbf16, #tpu.memory_space<vmem>>, vector<1x8x128xbf16>,
    %c32_86 = arith.constant 32 : index
    %c0_87 = arith.constant 0 : index
    %107 = vector.load %arg8[%c32_86, %c0_87] : memref<64x256xf32, #tpu.memory_space<vmem>>, vector<8x128xf32>
    %108 = arith.truncf %97 : vector<8x128xf32> to vector<8x128xbf16>
    %cst_88 = arith.constant dense<0.000000e+00> : vector<8x128xf32>
    %109 = tpu.matmul %108, %31, %cst_88 {dimension_numbers = #tpu.dot_dimension_numbers<[1], [0], [0], [1], [0, 0, 1, 1], [], []>} : vector<8x128xbf16>, vector<128x128xbf16>, vector<8x128xf32> -> vector<8x128xf32>
    %110 = arith.addf %107, %109 : vector<8x128xf32>
    %c24_89 = arith.constant 24 : index
    %c128_90 = arith.constant 128 : index
    %111 = vector.load %arg8[%c24_89, %c128_90] : memref<64x256xf32, #tpu.memory_space<vmem>>, vector<8x128xf32>
    %112 = arith.truncf %98 : vector<8x128xf32> to vector<8x128xbf16>
    %cst_91 = arith.constant dense<0.000000e+00> : vector<8x128xf32>
    %113 = tpu.matmul %112, %32, %cst_91 {dimension_numbers = #tpu.dot_dimension_numbers<[1], [0], [0], [1], [0, 0, 1, 1], [], []>} : vector<8x128xbf16>, vector<128x128xbf16>, vector<8x128xf32> -> vector<8x128xf32>
    %114 = arith.addf %111, %113 : vector<8x128xf32>
    %115 = math.tanh %110 : vector<8x128xf32>
    %116 = math.tanh %114 : vector<8x128xf32>
    %117 = arith.truncf %115 : vector<8x128xf32> to vector<8x128xbf16>
    %c4_92 = arith.constant 4 : index
    %c0_93 = arith.constant 0 : index
    %c0_94 = arith.constant 0 : index
    %118 = vector.load %arg6[%c4_92, %c0_93, %c0_94] : memref<8x8x256xbf16, #tpu.memory_space<vmem>>, vector<1x8x128xbf16>
    %119 = vector.shape_cast %118 : vector<1x8x128xbf16> to vector<8x128xbf16>
    %120 = vector.shape_cast %117 : vector<8x128xbf16> to vector<1x8x128xbf16>
    tpu.vector_store %arg6[%c4_92, %c0_93, %c0_94], %120 {strides = array<i32>} : memref<8x8x256xbf16, #tpu.memory_space<vmem>>, vector<1x8x128xbf16>,
    %121 = arith.truncf %116 : vector<8x128xf32> to vector<8x128xbf16>
    %c3_95 = arith.constant 3 : index
    %c0_96 = arith.constant 0 : index
    %c128_97 = arith.constant 128 : index
    %122 = vector.load %arg6[%c3_95, %c0_96, %c128_97] : memref<8x8x256xbf16, #tpu.memory_space<vmem>>, vector<1x8x128xbf16>
    %123 = vector.shape_cast %122 : vector<1x8x128xbf16> to vector<8x128xbf16>
    %124 = vector.shape_cast %121 : vector<8x128xbf16> to vector<1x8x128xbf16>
    tpu.vector_store %arg6[%c3_95, %c0_96, %c128_97], %124 {strides = array<i32>} : memref<8x8x256xbf16, #tpu.memory_space<vmem>>, vector<1x8x128xbf16>,
    %c40_98 = arith.constant 40 : index
    %c0_99 = arith.constant 0 : index
    %125 = vector.load %arg8[%c40_98, %c0_99] : memref<64x256xf32, #tpu.memory_space<vmem>>, vector<8x128xf32>
    %126 = arith.truncf %115 : vector<8x128xf32> to vector<8x128xbf16>
    %cst_100 = arith.constant dense<0.000000e+00> : vector<8x128xf32>
    %127 = tpu.matmul %126, %31, %cst_100 {dimension_numbers = #tpu.dot_dimension_numbers<[1], [0], [0], [1], [0, 0, 1, 1], [], []>} : vector<8x128xbf16>, vector<128x128xbf16>, vector<8x128xf32> -> vector<8x128xf32>
    %128 = arith.addf %125, %127 : vector<8x128xf32>
    %c16_101 = arith.constant 16 : index
    %c128_102 = arith.constant 128 : index
    %129 = vector.load %arg8[%c16_101, %c128_102] : memref<64x256xf32, #tpu.memory_space<vmem>>, vector<8x128xf32>
    %130 = arith.truncf %116 : vector<8x128xf32> to vector<8x128xbf16>
    %cst_103 = arith.constant dense<0.000000e+00> : vector<8x128xf32>
    %131 = tpu.matmul %130, %32, %cst_103 {dimension_numbers = #tpu.dot_dimension_numbers<[1], [0], [0], [1], [0, 0, 1, 1], [], []>} : vector<8x128xbf16>, vector<128x128xbf16>, vector<8x128xf32> -> vector<8x128xf32>
    %132 = arith.addf %129, %131 : vector<8x128xf32>
    %133 = math.tanh %128 : vector<8x128xf32>
    %134 = math.tanh %132 : vector<8x128xf32>
    %135 = arith.truncf %133 : vector<8x128xf32> to vector<8x128xbf16>
    %c5_104 = arith.constant 5 : index
    %c0_105 = arith.constant 0 : index
    %c0_106 = arith.constant 0 : index
    %136 = vector.load %arg6[%c5_104, %c0_105, %c0_106] : memref<8x8x256xbf16, #tpu.memory_space<vmem>>, vector<1x8x128xbf16>
    %137 = vector.shape_cast %136 : vector<1x8x128xbf16> to vector<8x128xbf16>
    %138 = vector.shape_cast %135 : vector<8x128xbf16> to vector<1x8x128xbf16>
    tpu.vector_store %arg6[%c5_104, %c0_105, %c0_106], %138 {strides = array<i32>} : memref<8x8x256xbf16, #tpu.memory_space<vmem>>, vector<1x8x128xbf16>,
    %139 = arith.truncf %134 : vector<8x128xf32> to vector<8x128xbf16>
    %c2_107 = arith.constant 2 : index
    %c0_108 = arith.constant 0 : index
    %c128_109 = arith.constant 128 : index
    %140 = vector.load %arg6[%c2_107, %c0_108, %c128_109] : memref<8x8x256xbf16, #tpu.memory_space<vmem>>, vector<1x8x128xbf16>
    %141 = vector.shape_cast %140 : vector<1x8x128xbf16> to vector<8x128xbf16>
    %142 = vector.shape_cast %139 : vector<8x128xbf16> to vector<1x8x128xbf16>
    tpu.vector_store %arg6[%c2_107, %c0_108, %c128_109], %142 {strides = array<i32>} : memref<8x8x256xbf16, #tpu.memory_space<vmem>>, vector<1x8x128xbf16>,
    %c48_110 = arith.constant 48 : index
    %c0_111 = arith.constant 0 : index
    %143 = vector.load %arg8[%c48_110, %c0_111] : memref<64x256xf32, #tpu.memory_space<vmem>>, vector<8x128xf32>
    %144 = arith.truncf %133 : vector<8x128xf32> to vector<8x128xbf16>
    %cst_112 = arith.constant dense<0.000000e+00> : vector<8x128xf32>
    %145 = tpu.matmul %144, %31, %cst_112 {dimension_numbers = #tpu.dot_dimension_numbers<[1], [0], [0], [1], [0, 0, 1, 1], [], []>} : vector<8x128xbf16>, vector<128x128xbf16>, vector<8x128xf32> -> vector<8x128xf32>
    %146 = arith.addf %143, %145 : vector<8x128xf32>
    %c8_113 = arith.constant 8 : index
    %c128_114 = arith.constant 128 : index
    %147 = vector.load %arg8[%c8_113, %c128_114] : memref<64x256xf32, #tpu.memory_space<vmem>>, vector<8x128xf32>
    %148 = arith.truncf %134 : vector<8x128xf32> to vector<8x128xbf16>
    %cst_115 = arith.constant dense<0.000000e+00> : vector<8x128xf32>
    %149 = tpu.matmul %148, %32, %cst_115 {dimension_numbers = #tpu.dot_dimension_numbers<[1], [0], [0], [1], [0, 0, 1, 1], [], []>} : vector<8x128xbf16>, vector<128x128xbf16>, vector<8x128xf32> -> vector<8x128xf32>
    %150 = arith.addf %147, %149 : vector<8x128xf32>
    %151 = math.tanh %146 : vector<8x128xf32>
    %152 = math.tanh %150 : vector<8x128xf32>
    %153 = arith.truncf %151 : vector<8x128xf32> to vector<8x128xbf16>
    %c6_116 = arith.constant 6 : index
    %c0_117 = arith.constant 0 : index
    %c0_118 = arith.constant 0 : index
    %154 = vector.load %arg6[%c6_116, %c0_117, %c0_118] : memref<8x8x256xbf16, #tpu.memory_space<vmem>>, vector<1x8x128xbf16>
    %155 = vector.shape_cast %154 : vector<1x8x128xbf16> to vector<8x128xbf16>
    %156 = vector.shape_cast %153 : vector<8x128xbf16> to vector<1x8x128xbf16>
    tpu.vector_store %arg6[%c6_116, %c0_117, %c0_118], %156 {strides = array<i32>} : memref<8x8x256xbf16, #tpu.memory_space<vmem>>, vector<1x8x128xbf16>,
    %157 = arith.truncf %152 : vector<8x128xf32> to vector<8x128xbf16>
    %c1_119 = arith.constant 1 : index
    %c0_120 = arith.constant 0 : index
    %c128_121 = arith.constant 128 : index
    %158 = vector.load %arg6[%c1_119, %c0_120, %c128_121] : memref<8x8x256xbf16, #tpu.memory_space<vmem>>, vector<1x8x128xbf16>
    %159 = vector.shape_cast %158 : vector<1x8x128xbf16> to vector<8x128xbf16>
    %160 = vector.shape_cast %157 : vector<8x128xbf16> to vector<1x8x128xbf16>
    tpu.vector_store %arg6[%c1_119, %c0_120, %c128_121], %160 {strides = array<i32>} : memref<8x8x256xbf16, #tpu.memory_space<vmem>>, vector<1x8x128xbf16>,
    %c56_122 = arith.constant 56 : index
    %c0_123 = arith.constant 0 : index
    %161 = vector.load %arg8[%c56_122, %c0_123] : memref<64x256xf32, #tpu.memory_space<vmem>>, vector<8x128xf32>
    %162 = arith.truncf %151 : vector<8x128xf32> to vector<8x128xbf16>
    %cst_124 = arith.constant dense<0.000000e+00> : vector<8x128xf32>
    %163 = tpu.matmul %162, %31, %cst_124 {dimension_numbers = #tpu.dot_dimension_numbers<[1], [0], [0], [1], [0, 0, 1, 1], [], []>} : vector<8x128xbf16>, vector<128x128xbf16>, vector<8x128xf32> -> vector<8x128xf32>
    %164 = arith.addf %161, %163 : vector<8x128xf32>
    %c0_125 = arith.constant 0 : index
    %c128_126 = arith.constant 128 : index
    %165 = vector.load %arg8[%c0_125, %c128_126] : memref<64x256xf32, #tpu.memory_space<vmem>>, vector<8x128xf32>
    %166 = arith.truncf %152 : vector<8x128xf32> to vector<8x128xbf16>
    %cst_127 = arith.constant dense<0.000000e+00> : vector<8x128xf32>
    %167 = tpu.matmul %166, %32, %cst_127 {dimension_numbers = #tpu.dot_dimension_numbers<[1], [0], [0], [1], [0, 0, 1, 1], [], []>} : vector<8x128xbf16>, vector<128x128xbf16>, vector<8x128xf32> -> vector<8x128xf32>
    %168 = arith.addf %165, %167 : vector<8x128xf32>
    %169 = math.tanh %164 : vector<8x128xf32>
    %170 = math.tanh %168 : vector<8x128xf32>
    %171 = arith.truncf %169 : vector<8x128xf32> to vector<8x128xbf16>
    %c7_128 = arith.constant 7 : index
    %c0_129 = arith.constant 0 : index
    %c0_130 = arith.constant 0 : index
    %172 = vector.load %arg6[%c7_128, %c0_129, %c0_130] : memref<8x8x256xbf16, #tpu.memory_space<vmem>>, vector<1x8x128xbf16>
    %173 = vector.shape_cast %172 : vector<1x8x128xbf16> to vector<8x128xbf16>
    %174 = vector.shape_cast %171 : vector<8x128xbf16> to vector<1x8x128xbf16>
    tpu.vector_store %arg6[%c7_128, %c0_129, %c0_130], %174 {strides = array<i32>} : memref<8x8x256xbf16, #tpu.memory_space<vmem>>, vector<1x8x128xbf16>,
    %175 = arith.truncf %170 : vector<8x128xf32> to vector<8x128xbf16>
    %c0_131 = arith.constant 0 : index
    %c0_132 = arith.constant 0 : index
    %c128_133 = arith.constant 128 : index
    %176 = vector.load %arg6[%c0_131, %c0_132, %c128_133] : memref<8x8x256xbf16, #tpu.memory_space<vmem>>, vector<1x8x128xbf16>
    %177 = vector.shape_cast %176 : vector<1x8x128xbf16> to vector<8x128xbf16>
    %178 = vector.shape_cast %175 : vector<8x128xbf16> to vector<1x8x128xbf16>
    tpu.vector_store %arg6[%c0_131, %c0_132, %c128_133], %178 {strides = array<i32>} : memref<8x8x256xbf16, #tpu.memory_space<vmem>>, vector<1x8x128xbf16>,
    return
  }
  func.func @transform_0(%arg0: i32) -> (i32, i32, i32) {
    %c0_i32 = arith.constant 0 : i32
    %c0_i32_0 = arith.constant 0 : i32
    %c0_i32_1 = arith.constant 0 : i32
    return %c0_i32, %arg0, %c0_i32_0 : i32, i32, i32
  }
  func.func @transform_1(%arg0: i32) -> (i32, i32) {
    %c0_i32 = arith.constant 0 : i32
    %c0_i32_0 = arith.constant 0 : i32
    %c0_i32_1 = arith.constant 0 : i32
    return %c0_i32, %c0_i32_0 : i32, i32
  }
  func.func @transform_2(%arg0: i32) -> (i32, i32) {
    %c0_i32 = arith.constant 0 : i32
    %c0_i32_0 = arith.constant 0 : i32
    %c0_i32_1 = arith.constant 0 : i32
    return %c0_i32, %c0_i32_0 : i32, i32
  }
  func.func @transform_3(%arg0: i32) -> (i32, i32) {
    %c0_i32 = arith.constant 0 : i32
    %c0_i32_0 = arith.constant 0 : i32
    %c0_i32_1 = arith.constant 0 : i32
    return %c0_i32, %c0_i32_0 : i32, i32
  }
  func.func @transform_4(%arg0: i32) -> (i32, i32) {
    %c0_i32 = arith.constant 0 : i32
    %c0_i32_0 = arith.constant 0 : i32
    %c0_i32_1 = arith.constant 0 : i32
    return %c0_i32, %c0_i32_0 : i32, i32
  }
  func.func @transform_5(%arg0: i32) -> (i32, i32, i32) {
    %c0_i32 = arith.constant 0 : i32
    %c0_i32_0 = arith.constant 0 : i32
    %c0_i32_1 = arith.constant 0 : i32
    return %c0_i32, %arg0, %c0_i32_0 : i32, i32, i32
  }
}

module attributes {stable_mosaic.version = 11 : i64} {
  func.func @_rnn_out_kernel(%arg0: i32, %arg1: memref<8x8x256xbf16, #tpu.memory_space<vmem>>, %arg2: memref<256x128xbf16, #tpu.memory_space<vmem>>, %arg3: memref<128x128xbf16, #tpu.memory_space<vmem>>, %arg4: memref<1x128xf32, #tpu.memory_space<vmem>>, %arg5: memref<8x8x128xf32, #tpu.memory_space<vmem>>, %arg6: memref<64x256xbf16, #tpu.memory_space<vmem>>, %arg7: memref<64x128xf32, #tpu.memory_space<vmem>>) attributes {dimension_semantics = [#tpu.dimension_semantics<parallel>], iteration_bounds = array<i64: 1>, scalar_prefetch = 0 : i64, scratch_operands = 2 : i64, tpu.core_type = #tpu.core_type<tc>, window_params = [{transform_indices = @transform_0, window_bounds = array<i64: 8, 8, 256>}, {pipeline_mode = #tpu.pipeline_mode<synchronous>, transform_indices = @transform_1, window_bounds = array<i64: 256, 128>}, {pipeline_mode = #tpu.pipeline_mode<synchronous>, transform_indices = @transform_2, window_bounds = array<i64: 128, 128>}, {pipeline_mode = #tpu.pipeline_mode<synchronous>, transform_indices = @transform_3, window_bounds = array<i64: 1, 128>}, {transform_indices = @transform_4, window_bounds = array<i64: 8, 8, 128>}]} {
    %c0 = arith.constant 0 : index
    %c0_0 = arith.constant 0 : index
    %c0_1 = arith.constant 0 : index
    %0 = vector.load %arg1[%c0, %c0_0, %c0_1] : memref<8x8x256xbf16, #tpu.memory_space<vmem>>, vector<1x8x256xbf16>
    %1 = vector.shape_cast %0 : vector<1x8x256xbf16> to vector<8x256xbf16>
    %cst = arith.constant 0.000000e+00 : bf16
    %2 = vector.broadcast %cst : bf16 to vector<8x256xbf16>
    %3 = arith.maximumf %1, %2 : vector<8x256xbf16>
    %c0_2 = arith.constant 0 : index
    %c0_3 = arith.constant 0 : index
    %4 = vector.load %arg6[%c0_2, %c0_3] : memref<64x256xbf16, #tpu.memory_space<vmem>>, vector<8x256xbf16>
    tpu.vector_store %arg6[%c0_2, %c0_3], %3 {strides = array<i32>} : memref<64x256xbf16, #tpu.memory_space<vmem>>, vector<8x256xbf16>,
    %c1 = arith.constant 1 : index
    %c0_4 = arith.constant 0 : index
    %c0_5 = arith.constant 0 : index
    %5 = vector.load %arg1[%c1, %c0_4, %c0_5] : memref<8x8x256xbf16, #tpu.memory_space<vmem>>, vector<1x8x256xbf16>
    %6 = vector.shape_cast %5 : vector<1x8x256xbf16> to vector<8x256xbf16>
    %cst_6 = arith.constant 0.000000e+00 : bf16
    %7 = vector.broadcast %cst_6 : bf16 to vector<8x256xbf16>
    %8 = arith.maximumf %6, %7 : vector<8x256xbf16>
    %c8 = arith.constant 8 : index
    %c0_7 = arith.constant 0 : index
    %9 = vector.load %arg6[%c8, %c0_7] : memref<64x256xbf16, #tpu.memory_space<vmem>>, vector<8x256xbf16>
    tpu.vector_store %arg6[%c8, %c0_7], %8 {strides = array<i32>} : memref<64x256xbf16, #tpu.memory_space<vmem>>, vector<8x256xbf16>,
    %c2 = arith.constant 2 : index
    %c0_8 = arith.constant 0 : index
    %c0_9 = arith.constant 0 : index
    %10 = vector.load %arg1[%c2, %c0_8, %c0_9] : memref<8x8x256xbf16, #tpu.memory_space<vmem>>, vector<1x8x256xbf16>
    %11 = vector.shape_cast %10 : vector<1x8x256xbf16> to vector<8x256xbf16>
    %cst_10 = arith.constant 0.000000e+00 : bf16
    %12 = vector.broadcast %cst_10 : bf16 to vector<8x256xbf16>
    %13 = arith.maximumf %11, %12 : vector<8x256xbf16>
    %c16 = arith.constant 16 : index
    %c0_11 = arith.constant 0 : index
    %14 = vector.load %arg6[%c16, %c0_11] : memref<64x256xbf16, #tpu.memory_space<vmem>>, vector<8x256xbf16>
    tpu.vector_store %arg6[%c16, %c0_11], %13 {strides = array<i32>} : memref<64x256xbf16, #tpu.memory_space<vmem>>, vector<8x256xbf16>,
    %c3 = arith.constant 3 : index
    %c0_12 = arith.constant 0 : index
    %c0_13 = arith.constant 0 : index
    %15 = vector.load %arg1[%c3, %c0_12, %c0_13] : memref<8x8x256xbf16, #tpu.memory_space<vmem>>, vector<1x8x256xbf16>
    %16 = vector.shape_cast %15 : vector<1x8x256xbf16> to vector<8x256xbf16>
    %cst_14 = arith.constant 0.000000e+00 : bf16
    %17 = vector.broadcast %cst_14 : bf16 to vector<8x256xbf16>
    %18 = arith.maximumf %16, %17 : vector<8x256xbf16>
    %c24 = arith.constant 24 : index
    %c0_15 = arith.constant 0 : index
    %19 = vector.load %arg6[%c24, %c0_15] : memref<64x256xbf16, #tpu.memory_space<vmem>>, vector<8x256xbf16>
    tpu.vector_store %arg6[%c24, %c0_15], %18 {strides = array<i32>} : memref<64x256xbf16, #tpu.memory_space<vmem>>, vector<8x256xbf16>,
    %c4 = arith.constant 4 : index
    %c0_16 = arith.constant 0 : index
    %c0_17 = arith.constant 0 : index
    %20 = vector.load %arg1[%c4, %c0_16, %c0_17] : memref<8x8x256xbf16, #tpu.memory_space<vmem>>, vector<1x8x256xbf16>
    %21 = vector.shape_cast %20 : vector<1x8x256xbf16> to vector<8x256xbf16>
    %cst_18 = arith.constant 0.000000e+00 : bf16
    %22 = vector.broadcast %cst_18 : bf16 to vector<8x256xbf16>
    %23 = arith.maximumf %21, %22 : vector<8x256xbf16>
    %c32 = arith.constant 32 : index
    %c0_19 = arith.constant 0 : index
    %24 = vector.load %arg6[%c32, %c0_19] : memref<64x256xbf16, #tpu.memory_space<vmem>>, vector<8x256xbf16>
    tpu.vector_store %arg6[%c32, %c0_19], %23 {strides = array<i32>} : memref<64x256xbf16, #tpu.memory_space<vmem>>, vector<8x256xbf16>,
    %c5 = arith.constant 5 : index
    %c0_20 = arith.constant 0 : index
    %c0_21 = arith.constant 0 : index
    %25 = vector.load %arg1[%c5, %c0_20, %c0_21] : memref<8x8x256xbf16, #tpu.memory_space<vmem>>, vector<1x8x256xbf16>
    %26 = vector.shape_cast %25 : vector<1x8x256xbf16> to vector<8x256xbf16>
    %cst_22 = arith.constant 0.000000e+00 : bf16
    %27 = vector.broadcast %cst_22 : bf16 to vector<8x256xbf16>
    %28 = arith.maximumf %26, %27 : vector<8x256xbf16>
    %c40 = arith.constant 40 : index
    %c0_23 = arith.constant 0 : index
    %29 = vector.load %arg6[%c40, %c0_23] : memref<64x256xbf16, #tpu.memory_space<vmem>>, vector<8x256xbf16>
    tpu.vector_store %arg6[%c40, %c0_23], %28 {strides = array<i32>} : memref<64x256xbf16, #tpu.memory_space<vmem>>, vector<8x256xbf16>,
    %c6 = arith.constant 6 : index
    %c0_24 = arith.constant 0 : index
    %c0_25 = arith.constant 0 : index
    %30 = vector.load %arg1[%c6, %c0_24, %c0_25] : memref<8x8x256xbf16, #tpu.memory_space<vmem>>, vector<1x8x256xbf16>
    %31 = vector.shape_cast %30 : vector<1x8x256xbf16> to vector<8x256xbf16>
    %cst_26 = arith.constant 0.000000e+00 : bf16
    %32 = vector.broadcast %cst_26 : bf16 to vector<8x256xbf16>
    %33 = arith.maximumf %31, %32 : vector<8x256xbf16>
    %c48 = arith.constant 48 : index
    %c0_27 = arith.constant 0 : index
    %34 = vector.load %arg6[%c48, %c0_27] : memref<64x256xbf16, #tpu.memory_space<vmem>>, vector<8x256xbf16>
    tpu.vector_store %arg6[%c48, %c0_27], %33 {strides = array<i32>} : memref<64x256xbf16, #tpu.memory_space<vmem>>, vector<8x256xbf16>,
    %c7 = arith.constant 7 : index
    %c0_28 = arith.constant 0 : index
    %c0_29 = arith.constant 0 : index
    %35 = vector.load %arg1[%c7, %c0_28, %c0_29] : memref<8x8x256xbf16, #tpu.memory_space<vmem>>, vector<1x8x256xbf16>
    %36 = vector.shape_cast %35 : vector<1x8x256xbf16> to vector<8x256xbf16>
    %cst_30 = arith.constant 0.000000e+00 : bf16
    %37 = vector.broadcast %cst_30 : bf16 to vector<8x256xbf16>
    %38 = arith.maximumf %36, %37 : vector<8x256xbf16>
    %c56 = arith.constant 56 : index
    %c0_31 = arith.constant 0 : index
    %39 = vector.load %arg6[%c56, %c0_31] : memref<64x256xbf16, #tpu.memory_space<vmem>>, vector<8x256xbf16>
    tpu.vector_store %arg6[%c56, %c0_31], %38 {strides = array<i32>} : memref<64x256xbf16, #tpu.memory_space<vmem>>, vector<8x256xbf16>,
    %c0_32 = arith.constant 0 : index
    %c0_33 = arith.constant 0 : index
    %40 = vector.load %arg6[%c0_32, %c0_33] : memref<64x256xbf16, #tpu.memory_space<vmem>>, vector<64x256xbf16>
    %c0_34 = arith.constant 0 : index
    %c0_35 = arith.constant 0 : index
    %41 = vector.load %arg2[%c0_34, %c0_35] : memref<256x128xbf16, #tpu.memory_space<vmem>>, vector<256x128xbf16>
    %cst_36 = arith.constant dense<0.000000e+00> : vector<64x128xf32>
    %42 = tpu.matmul %40, %41, %cst_36 {dimension_numbers = #tpu.dot_dimension_numbers<[1], [0], [0], [1], [0, 0, 1, 1], [], []>} : vector<64x256xbf16>, vector<256x128xbf16>, vector<64x128xf32> -> vector<64x128xf32>
    %c0_37 = arith.constant 0 : index
    %c0_38 = arith.constant 0 : index
    %43 = vector.load %arg4[%c0_37, %c0_38] : memref<1x128xf32, #tpu.memory_space<vmem>>, vector<1x128xf32>
    %44 = vector.broadcast %43 : vector<1x128xf32> to vector<64x128xf32>
    %45 = arith.addf %42, %44 : vector<64x128xf32>
    %c0_39 = arith.constant 0 : index
    %c0_40 = arith.constant 0 : index
    %46 = vector.load %arg7[%c0_39, %c0_40] : memref<64x128xf32, #tpu.memory_space<vmem>>, vector<64x128xf32>
    tpu.vector_store %arg7[%c0_39, %c0_40], %45 {strides = array<i32>} : memref<64x128xf32, #tpu.memory_space<vmem>>, vector<64x128xf32>,
    %c0_41 = arith.constant 0 : index
    %c0_42 = arith.constant 0 : index
    %47 = vector.load %arg3[%c0_41, %c0_42] : memref<128x128xbf16, #tpu.memory_space<vmem>>, vector<128x128xbf16>
    %cst_43 = arith.constant 0.000000e+00 : f32
    %48 = vector.broadcast %cst_43 : f32 to vector<8x128xf32>
    %c0_44 = arith.constant 0 : index
    %c0_45 = arith.constant 0 : index
    %49 = vector.load %arg7[%c0_44, %c0_45] : memref<64x128xf32, #tpu.memory_space<vmem>>, vector<8x128xf32>
    %50 = arith.truncf %48 : vector<8x128xf32> to vector<8x128xbf16>
    %cst_46 = arith.constant dense<0.000000e+00> : vector<8x128xf32>
    %51 = tpu.matmul %50, %47, %cst_46 {dimension_numbers = #tpu.dot_dimension_numbers<[1], [0], [0], [1], [0, 0, 1, 1], [], []>} : vector<8x128xbf16>, vector<128x128xbf16>, vector<8x128xf32> -> vector<8x128xf32>
    %52 = arith.addf %49, %51 : vector<8x128xf32>
    %53 = math.tanh %52 : vector<8x128xf32>
    %cst_47 = arith.constant 0.000000e+00 : f32
    %54 = vector.broadcast %cst_47 : f32 to vector<8x128xf32>
    %55 = arith.subf %54, %53 : vector<8x128xf32>
    %56 = math.exp %55 : vector<8x128xf32>
    %cst_48 = arith.constant 1.000000e+00 : f32
    %57 = vector.broadcast %cst_48 : f32 to vector<8x128xf32>
    %58 = arith.addf %57, %56 : vector<8x128xf32>
    %cst_49 = arith.constant 1.000000e+00 : f32
    %59 = vector.broadcast %cst_49 : f32 to vector<8x128xf32>
    %60 = arith.divf %59, %58 : vector<8x128xf32>
    %c0_50 = arith.constant 0 : index
    %c0_51 = arith.constant 0 : index
    %c0_52 = arith.constant 0 : index
    %61 = vector.load %arg5[%c0_50, %c0_51, %c0_52] : memref<8x8x128xf32, #tpu.memory_space<vmem>>, vector<1x8x128xf32>
    %62 = vector.shape_cast %61 : vector<1x8x128xf32> to vector<8x128xf32>
    %63 = vector.shape_cast %60 : vector<8x128xf32> to vector<1x8x128xf32>
    tpu.vector_store %arg5[%c0_50, %c0_51, %c0_52], %63 {strides = array<i32>} : memref<8x8x128xf32, #tpu.memory_space<vmem>>, vector<1x8x128xf32>,
    %c8_53 = arith.constant 8 : index
    %c0_54 = arith.constant 0 : index
    %64 = vector.load %arg7[%c8_53, %c0_54] : memref<64x128xf32, #tpu.memory_space<vmem>>, vector<8x128xf32>
    %65 = arith.truncf %53 : vector<8x128xf32> to vector<8x128xbf16>
    %cst_55 = arith.constant dense<0.000000e+00> : vector<8x128xf32>
    %66 = tpu.matmul %65, %47, %cst_55 {dimension_numbers = #tpu.dot_dimension_numbers<[1], [0], [0], [1], [0, 0, 1, 1], [], []>} : vector<8x128xbf16>, vector<128x128xbf16>, vector<8x128xf32> -> vector<8x128xf32>
    %67 = arith.addf %64, %66 : vector<8x128xf32>
    %68 = math.tanh %67 : vector<8x128xf32>
    %cst_56 = arith.constant 0.000000e+00 : f32
    %69 = vector.broadcast %cst_56 : f32 to vector<8x128xf32>
    %70 = arith.subf %69, %68 : vector<8x128xf32>
    %71 = math.exp %70 : vector<8x128xf32>
    %cst_57 = arith.constant 1.000000e+00 : f32
    %72 = vector.broadcast %cst_57 : f32 to vector<8x128xf32>
    %73 = arith.addf %72, %71 : vector<8x128xf32>
    %cst_58 = arith.constant 1.000000e+00 : f32
    %74 = vector.broadcast %cst_58 : f32 to vector<8x128xf32>
    %75 = arith.divf %74, %73 : vector<8x128xf32>
    %c1_59 = arith.constant 1 : index
    %c0_60 = arith.constant 0 : index
    %c0_61 = arith.constant 0 : index
    %76 = vector.load %arg5[%c1_59, %c0_60, %c0_61] : memref<8x8x128xf32, #tpu.memory_space<vmem>>, vector<1x8x128xf32>
    %77 = vector.shape_cast %76 : vector<1x8x128xf32> to vector<8x128xf32>
    %78 = vector.shape_cast %75 : vector<8x128xf32> to vector<1x8x128xf32>
    tpu.vector_store %arg5[%c1_59, %c0_60, %c0_61], %78 {strides = array<i32>} : memref<8x8x128xf32, #tpu.memory_space<vmem>>, vector<1x8x128xf32>,
    %c16_62 = arith.constant 16 : index
    %c0_63 = arith.constant 0 : index
    %79 = vector.load %arg7[%c16_62, %c0_63] : memref<64x128xf32, #tpu.memory_space<vmem>>, vector<8x128xf32>
    %80 = arith.truncf %68 : vector<8x128xf32> to vector<8x128xbf16>
    %cst_64 = arith.constant dense<0.000000e+00> : vector<8x128xf32>
    %81 = tpu.matmul %80, %47, %cst_64 {dimension_numbers = #tpu.dot_dimension_numbers<[1], [0], [0], [1], [0, 0, 1, 1], [], []>} : vector<8x128xbf16>, vector<128x128xbf16>, vector<8x128xf32> -> vector<8x128xf32>
    %82 = arith.addf %79, %81 : vector<8x128xf32>
    %83 = math.tanh %82 : vector<8x128xf32>
    %cst_65 = arith.constant 0.000000e+00 : f32
    %84 = vector.broadcast %cst_65 : f32 to vector<8x128xf32>
    %85 = arith.subf %84, %83 : vector<8x128xf32>
    %86 = math.exp %85 : vector<8x128xf32>
    %cst_66 = arith.constant 1.000000e+00 : f32
    %87 = vector.broadcast %cst_66 : f32 to vector<8x128xf32>
    %88 = arith.addf %87, %86 : vector<8x128xf32>
    %cst_67 = arith.constant 1.000000e+00 : f32
    %89 = vector.broadcast %cst_67 : f32 to vector<8x128xf32>
    %90 = arith.divf %89, %88 : vector<8x128xf32>
    %c2_68 = arith.constant 2 : index
    %c0_69 = arith.constant 0 : index
    %c0_70 = arith.constant 0 : index
    %91 = vector.load %arg5[%c2_68, %c0_69, %c0_70] : memref<8x8x128xf32, #tpu.memory_space<vmem>>, vector<1x8x128xf32>
    %92 = vector.shape_cast %91 : vector<1x8x128xf32> to vector<8x128xf32>
    %93 = vector.shape_cast %90 : vector<8x128xf32> to vector<1x8x128xf32>
    tpu.vector_store %arg5[%c2_68, %c0_69, %c0_70], %93 {strides = array<i32>} : memref<8x8x128xf32, #tpu.memory_space<vmem>>, vector<1x8x128xf32>,
    %c24_71 = arith.constant 24 : index
    %c0_72 = arith.constant 0 : index
    %94 = vector.load %arg7[%c24_71, %c0_72] : memref<64x128xf32, #tpu.memory_space<vmem>>, vector<8x128xf32>
    %95 = arith.truncf %83 : vector<8x128xf32> to vector<8x128xbf16>
    %cst_73 = arith.constant dense<0.000000e+00> : vector<8x128xf32>
    %96 = tpu.matmul %95, %47, %cst_73 {dimension_numbers = #tpu.dot_dimension_numbers<[1], [0], [0], [1], [0, 0, 1, 1], [], []>} : vector<8x128xbf16>, vector<128x128xbf16>, vector<8x128xf32> -> vector<8x128xf32>
    %97 = arith.addf %94, %96 : vector<8x128xf32>
    %98 = math.tanh %97 : vector<8x128xf32>
    %cst_74 = arith.constant 0.000000e+00 : f32
    %99 = vector.broadcast %cst_74 : f32 to vector<8x128xf32>
    %100 = arith.subf %99, %98 : vector<8x128xf32>
    %101 = math.exp %100 : vector<8x128xf32>
    %cst_75 = arith.constant 1.000000e+00 : f32
    %102 = vector.broadcast %cst_75 : f32 to vector<8x128xf32>
    %103 = arith.addf %102, %101 : vector<8x128xf32>
    %cst_76 = arith.constant 1.000000e+00 : f32
    %104 = vector.broadcast %cst_76 : f32 to vector<8x128xf32>
    %105 = arith.divf %104, %103 : vector<8x128xf32>
    %c3_77 = arith.constant 3 : index
    %c0_78 = arith.constant 0 : index
    %c0_79 = arith.constant 0 : index
    %106 = vector.load %arg5[%c3_77, %c0_78, %c0_79] : memref<8x8x128xf32, #tpu.memory_space<vmem>>, vector<1x8x128xf32>
    %107 = vector.shape_cast %106 : vector<1x8x128xf32> to vector<8x128xf32>
    %108 = vector.shape_cast %105 : vector<8x128xf32> to vector<1x8x128xf32>
    tpu.vector_store %arg5[%c3_77, %c0_78, %c0_79], %108 {strides = array<i32>} : memref<8x8x128xf32, #tpu.memory_space<vmem>>, vector<1x8x128xf32>,
    %c32_80 = arith.constant 32 : index
    %c0_81 = arith.constant 0 : index
    %109 = vector.load %arg7[%c32_80, %c0_81] : memref<64x128xf32, #tpu.memory_space<vmem>>, vector<8x128xf32>
    %110 = arith.truncf %98 : vector<8x128xf32> to vector<8x128xbf16>
    %cst_82 = arith.constant dense<0.000000e+00> : vector<8x128xf32>
    %111 = tpu.matmul %110, %47, %cst_82 {dimension_numbers = #tpu.dot_dimension_numbers<[1], [0], [0], [1], [0, 0, 1, 1], [], []>} : vector<8x128xbf16>, vector<128x128xbf16>, vector<8x128xf32> -> vector<8x128xf32>
    %112 = arith.addf %109, %111 : vector<8x128xf32>
    %113 = math.tanh %112 : vector<8x128xf32>
    %cst_83 = arith.constant 0.000000e+00 : f32
    %114 = vector.broadcast %cst_83 : f32 to vector<8x128xf32>
    %115 = arith.subf %114, %113 : vector<8x128xf32>
    %116 = math.exp %115 : vector<8x128xf32>
    %cst_84 = arith.constant 1.000000e+00 : f32
    %117 = vector.broadcast %cst_84 : f32 to vector<8x128xf32>
    %118 = arith.addf %117, %116 : vector<8x128xf32>
    %cst_85 = arith.constant 1.000000e+00 : f32
    %119 = vector.broadcast %cst_85 : f32 to vector<8x128xf32>
    %120 = arith.divf %119, %118 : vector<8x128xf32>
    %c4_86 = arith.constant 4 : index
    %c0_87 = arith.constant 0 : index
    %c0_88 = arith.constant 0 : index
    %121 = vector.load %arg5[%c4_86, %c0_87, %c0_88] : memref<8x8x128xf32, #tpu.memory_space<vmem>>, vector<1x8x128xf32>
    %122 = vector.shape_cast %121 : vector<1x8x128xf32> to vector<8x128xf32>
    %123 = vector.shape_cast %120 : vector<8x128xf32> to vector<1x8x128xf32>
    tpu.vector_store %arg5[%c4_86, %c0_87, %c0_88], %123 {strides = array<i32>} : memref<8x8x128xf32, #tpu.memory_space<vmem>>, vector<1x8x128xf32>,
    %c40_89 = arith.constant 40 : index
    %c0_90 = arith.constant 0 : index
    %124 = vector.load %arg7[%c40_89, %c0_90] : memref<64x128xf32, #tpu.memory_space<vmem>>, vector<8x128xf32>
    %125 = arith.truncf %113 : vector<8x128xf32> to vector<8x128xbf16>
    %cst_91 = arith.constant dense<0.000000e+00> : vector<8x128xf32>
    %126 = tpu.matmul %125, %47, %cst_91 {dimension_numbers = #tpu.dot_dimension_numbers<[1], [0], [0], [1], [0, 0, 1, 1], [], []>} : vector<8x128xbf16>, vector<128x128xbf16>, vector<8x128xf32> -> vector<8x128xf32>
    %127 = arith.addf %124, %126 : vector<8x128xf32>
    %128 = math.tanh %127 : vector<8x128xf32>
    %cst_92 = arith.constant 0.000000e+00 : f32
    %129 = vector.broadcast %cst_92 : f32 to vector<8x128xf32>
    %130 = arith.subf %129, %128 : vector<8x128xf32>
    %131 = math.exp %130 : vector<8x128xf32>
    %cst_93 = arith.constant 1.000000e+00 : f32
    %132 = vector.broadcast %cst_93 : f32 to vector<8x128xf32>
    %133 = arith.addf %132, %131 : vector<8x128xf32>
    %cst_94 = arith.constant 1.000000e+00 : f32
    %134 = vector.broadcast %cst_94 : f32 to vector<8x128xf32>
    %135 = arith.divf %134, %133 : vector<8x128xf32>
    %c5_95 = arith.constant 5 : index
    %c0_96 = arith.constant 0 : index
    %c0_97 = arith.constant 0 : index
    %136 = vector.load %arg5[%c5_95, %c0_96, %c0_97] : memref<8x8x128xf32, #tpu.memory_space<vmem>>, vector<1x8x128xf32>
    %137 = vector.shape_cast %136 : vector<1x8x128xf32> to vector<8x128xf32>
    %138 = vector.shape_cast %135 : vector<8x128xf32> to vector<1x8x128xf32>
    tpu.vector_store %arg5[%c5_95, %c0_96, %c0_97], %138 {strides = array<i32>} : memref<8x8x128xf32, #tpu.memory_space<vmem>>, vector<1x8x128xf32>,
    %c48_98 = arith.constant 48 : index
    %c0_99 = arith.constant 0 : index
    %139 = vector.load %arg7[%c48_98, %c0_99] : memref<64x128xf32, #tpu.memory_space<vmem>>, vector<8x128xf32>
    %140 = arith.truncf %128 : vector<8x128xf32> to vector<8x128xbf16>
    %cst_100 = arith.constant dense<0.000000e+00> : vector<8x128xf32>
    %141 = tpu.matmul %140, %47, %cst_100 {dimension_numbers = #tpu.dot_dimension_numbers<[1], [0], [0], [1], [0, 0, 1, 1], [], []>} : vector<8x128xbf16>, vector<128x128xbf16>, vector<8x128xf32> -> vector<8x128xf32>
    %142 = arith.addf %139, %141 : vector<8x128xf32>
    %143 = math.tanh %142 : vector<8x128xf32>
    %cst_101 = arith.constant 0.000000e+00 : f32
    %144 = vector.broadcast %cst_101 : f32 to vector<8x128xf32>
    %145 = arith.subf %144, %143 : vector<8x128xf32>
    %146 = math.exp %145 : vector<8x128xf32>
    %cst_102 = arith.constant 1.000000e+00 : f32
    %147 = vector.broadcast %cst_102 : f32 to vector<8x128xf32>
    %148 = arith.addf %147, %146 : vector<8x128xf32>
    %cst_103 = arith.constant 1.000000e+00 : f32
    %149 = vector.broadcast %cst_103 : f32 to vector<8x128xf32>
    %150 = arith.divf %149, %148 : vector<8x128xf32>
    %c6_104 = arith.constant 6 : index
    %c0_105 = arith.constant 0 : index
    %c0_106 = arith.constant 0 : index
    %151 = vector.load %arg5[%c6_104, %c0_105, %c0_106] : memref<8x8x128xf32, #tpu.memory_space<vmem>>, vector<1x8x128xf32>
    %152 = vector.shape_cast %151 : vector<1x8x128xf32> to vector<8x128xf32>
    %153 = vector.shape_cast %150 : vector<8x128xf32> to vector<1x8x128xf32>
    tpu.vector_store %arg5[%c6_104, %c0_105, %c0_106], %153 {strides = array<i32>} : memref<8x8x128xf32, #tpu.memory_space<vmem>>, vector<1x8x128xf32>,
    %c56_107 = arith.constant 56 : index
    %c0_108 = arith.constant 0 : index
    %154 = vector.load %arg7[%c56_107, %c0_108] : memref<64x128xf32, #tpu.memory_space<vmem>>, vector<8x128xf32>
    %155 = arith.truncf %143 : vector<8x128xf32> to vector<8x128xbf16>
    %cst_109 = arith.constant dense<0.000000e+00> : vector<8x128xf32>
    %156 = tpu.matmul %155, %47, %cst_109 {dimension_numbers = #tpu.dot_dimension_numbers<[1], [0], [0], [1], [0, 0, 1, 1], [], []>} : vector<8x128xbf16>, vector<128x128xbf16>, vector<8x128xf32> -> vector<8x128xf32>
    %157 = arith.addf %154, %156 : vector<8x128xf32>
    %158 = math.tanh %157 : vector<8x128xf32>
    %cst_110 = arith.constant 0.000000e+00 : f32
    %159 = vector.broadcast %cst_110 : f32 to vector<8x128xf32>
    %160 = arith.subf %159, %158 : vector<8x128xf32>
    %161 = math.exp %160 : vector<8x128xf32>
    %cst_111 = arith.constant 1.000000e+00 : f32
    %162 = vector.broadcast %cst_111 : f32 to vector<8x128xf32>
    %163 = arith.addf %162, %161 : vector<8x128xf32>
    %cst_112 = arith.constant 1.000000e+00 : f32
    %164 = vector.broadcast %cst_112 : f32 to vector<8x128xf32>
    %165 = arith.divf %164, %163 : vector<8x128xf32>
    %c7_113 = arith.constant 7 : index
    %c0_114 = arith.constant 0 : index
    %c0_115 = arith.constant 0 : index
    %166 = vector.load %arg5[%c7_113, %c0_114, %c0_115] : memref<8x8x128xf32, #tpu.memory_space<vmem>>, vector<1x8x128xf32>
    %167 = vector.shape_cast %166 : vector<1x8x128xf32> to vector<8x128xf32>
    %168 = vector.shape_cast %165 : vector<8x128xf32> to vector<1x8x128xf32>
    tpu.vector_store %arg5[%c7_113, %c0_114, %c0_115], %168 {strides = array<i32>} : memref<8x8x128xf32, #tpu.memory_space<vmem>>, vector<1x8x128xf32>,
    return
  }
  func.func @transform_0(%arg0: i32) -> (i32, i32, i32) {
    %c0_i32 = arith.constant 0 : i32
    %c0_i32_0 = arith.constant 0 : i32
    %c0_i32_1 = arith.constant 0 : i32
    return %c0_i32, %arg0, %c0_i32_0 : i32, i32, i32
  }
  func.func @transform_1(%arg0: i32) -> (i32, i32) {
    %c0_i32 = arith.constant 0 : i32
    %c0_i32_0 = arith.constant 0 : i32
    %c0_i32_1 = arith.constant 0 : i32
    return %c0_i32, %c0_i32_0 : i32, i32
  }
  func.func @transform_2(%arg0: i32) -> (i32, i32) {
    %c0_i32 = arith.constant 0 : i32
    %c0_i32_0 = arith.constant 0 : i32
    %c0_i32_1 = arith.constant 0 : i32
    return %c0_i32, %c0_i32_0 : i32, i32
  }
  func.func @transform_3(%arg0: i32) -> (i32, i32) {
    %c0_i32 = arith.constant 0 : i32
    %c0_i32_0 = arith.constant 0 : i32
    %c0_i32_1 = arith.constant 0 : i32
    return %c0_i32, %c0_i32_0 : i32, i32
  }
  func.func @transform_4(%arg0: i32) -> (i32, i32, i32) {
    %c0_i32 = arith.constant 0 : i32
    %c0_i32_0 = arith.constant 0 : i32
    %c0_i32_1 = arith.constant 0 : i32
    return %c0_i32, %arg0, %c0_i32_0 : i32, i32, i32
  }
}

module attributes {stable_mosaic.version = 11 : i64} {
  func.func @_birnn_layer_kernel(%arg0: i32, %arg1: memref<8x8x256xbf16, #tpu.memory_space<vmem>>, %arg2: memref<256x256xbf16, #tpu.memory_space<vmem>>, %arg3: memref<128x128xbf16, #tpu.memory_space<vmem>>, %arg4: memref<128x128xbf16, #tpu.memory_space<vmem>>, %arg5: memref<1x256xf32, #tpu.memory_space<vmem>>, %arg6: memref<8x8x256xbf16, #tpu.memory_space<vmem>>, %arg7: memref<64x256xbf16, #tpu.memory_space<vmem>>, %arg8: memref<64x256xf32, #tpu.memory_space<vmem>>) attributes {dimension_semantics = [#tpu.dimension_semantics<parallel>], iteration_bounds = array<i64: 1>, scalar_prefetch = 0 : i64, scratch_operands = 2 : i64, tpu.core_type = #tpu.core_type<tc>, window_params = [{transform_indices = @transform_0, window_bounds = array<i64: 8, 8, 256>}, {pipeline_mode = #tpu.pipeline_mode<synchronous>, transform_indices = @transform_1, window_bounds = array<i64: 256, 256>}, {pipeline_mode = #tpu.pipeline_mode<synchronous>, transform_indices = @transform_2, window_bounds = array<i64: 128, 128>}, {pipeline_mode = #tpu.pipeline_mode<synchronous>, transform_indices = @transform_3, window_bounds = array<i64: 128, 128>}, {pipeline_mode = #tpu.pipeline_mode<synchronous>, transform_indices = @transform_4, window_bounds = array<i64: 1, 256>}, {transform_indices = @transform_5, window_bounds = array<i64: 8, 8, 256>}]} {
    %c0 = arith.constant 0 : index
    %c0_0 = arith.constant 0 : index
    %c0_1 = arith.constant 0 : index
    %0 = vector.load %arg1[%c0, %c0_0, %c0_1] : memref<8x8x256xbf16, #tpu.memory_space<vmem>>, vector<1x8x256xbf16>
    %1 = vector.shape_cast %0 : vector<1x8x256xbf16> to vector<8x256xbf16>
    %c0_2 = arith.constant 0 : index
    %c0_3 = arith.constant 0 : index
    %2 = vector.load %arg7[%c0_2, %c0_3] : memref<64x256xbf16, #tpu.memory_space<vmem>>, vector<8x256xbf16>
    tpu.vector_store %arg7[%c0_2, %c0_3], %1 {strides = array<i32>} : memref<64x256xbf16, #tpu.memory_space<vmem>>, vector<8x256xbf16>,
    %c1 = arith.constant 1 : index
    %c0_4 = arith.constant 0 : index
    %c0_5 = arith.constant 0 : index
    %3 = vector.load %arg1[%c1, %c0_4, %c0_5] : memref<8x8x256xbf16, #tpu.memory_space<vmem>>, vector<1x8x256xbf16>
    %4 = vector.shape_cast %3 : vector<1x8x256xbf16> to vector<8x256xbf16>
    %c8 = arith.constant 8 : index
    %c0_6 = arith.constant 0 : index
    %5 = vector.load %arg7[%c8, %c0_6] : memref<64x256xbf16, #tpu.memory_space<vmem>>, vector<8x256xbf16>
    tpu.vector_store %arg7[%c8, %c0_6], %4 {strides = array<i32>} : memref<64x256xbf16, #tpu.memory_space<vmem>>, vector<8x256xbf16>,
    %c2 = arith.constant 2 : index
    %c0_7 = arith.constant 0 : index
    %c0_8 = arith.constant 0 : index
    %6 = vector.load %arg1[%c2, %c0_7, %c0_8] : memref<8x8x256xbf16, #tpu.memory_space<vmem>>, vector<1x8x256xbf16>
    %7 = vector.shape_cast %6 : vector<1x8x256xbf16> to vector<8x256xbf16>
    %c16 = arith.constant 16 : index
    %c0_9 = arith.constant 0 : index
    %8 = vector.load %arg7[%c16, %c0_9] : memref<64x256xbf16, #tpu.memory_space<vmem>>, vector<8x256xbf16>
    tpu.vector_store %arg7[%c16, %c0_9], %7 {strides = array<i32>} : memref<64x256xbf16, #tpu.memory_space<vmem>>, vector<8x256xbf16>,
    %c3 = arith.constant 3 : index
    %c0_10 = arith.constant 0 : index
    %c0_11 = arith.constant 0 : index
    %9 = vector.load %arg1[%c3, %c0_10, %c0_11] : memref<8x8x256xbf16, #tpu.memory_space<vmem>>, vector<1x8x256xbf16>
    %10 = vector.shape_cast %9 : vector<1x8x256xbf16> to vector<8x256xbf16>
    %c24 = arith.constant 24 : index
    %c0_12 = arith.constant 0 : index
    %11 = vector.load %arg7[%c24, %c0_12] : memref<64x256xbf16, #tpu.memory_space<vmem>>, vector<8x256xbf16>
    tpu.vector_store %arg7[%c24, %c0_12], %10 {strides = array<i32>} : memref<64x256xbf16, #tpu.memory_space<vmem>>, vector<8x256xbf16>,
    %c4 = arith.constant 4 : index
    %c0_13 = arith.constant 0 : index
    %c0_14 = arith.constant 0 : index
    %12 = vector.load %arg1[%c4, %c0_13, %c0_14] : memref<8x8x256xbf16, #tpu.memory_space<vmem>>, vector<1x8x256xbf16>
    %13 = vector.shape_cast %12 : vector<1x8x256xbf16> to vector<8x256xbf16>
    %c32 = arith.constant 32 : index
    %c0_15 = arith.constant 0 : index
    %14 = vector.load %arg7[%c32, %c0_15] : memref<64x256xbf16, #tpu.memory_space<vmem>>, vector<8x256xbf16>
    tpu.vector_store %arg7[%c32, %c0_15], %13 {strides = array<i32>} : memref<64x256xbf16, #tpu.memory_space<vmem>>, vector<8x256xbf16>,
    %c5 = arith.constant 5 : index
    %c0_16 = arith.constant 0 : index
    %c0_17 = arith.constant 0 : index
    %15 = vector.load %arg1[%c5, %c0_16, %c0_17] : memref<8x8x256xbf16, #tpu.memory_space<vmem>>, vector<1x8x256xbf16>
    %16 = vector.shape_cast %15 : vector<1x8x256xbf16> to vector<8x256xbf16>
    %c40 = arith.constant 40 : index
    %c0_18 = arith.constant 0 : index
    %17 = vector.load %arg7[%c40, %c0_18] : memref<64x256xbf16, #tpu.memory_space<vmem>>, vector<8x256xbf16>
    tpu.vector_store %arg7[%c40, %c0_18], %16 {strides = array<i32>} : memref<64x256xbf16, #tpu.memory_space<vmem>>, vector<8x256xbf16>,
    %c6 = arith.constant 6 : index
    %c0_19 = arith.constant 0 : index
    %c0_20 = arith.constant 0 : index
    %18 = vector.load %arg1[%c6, %c0_19, %c0_20] : memref<8x8x256xbf16, #tpu.memory_space<vmem>>, vector<1x8x256xbf16>
    %19 = vector.shape_cast %18 : vector<1x8x256xbf16> to vector<8x256xbf16>
    %c48 = arith.constant 48 : index
    %c0_21 = arith.constant 0 : index
    %20 = vector.load %arg7[%c48, %c0_21] : memref<64x256xbf16, #tpu.memory_space<vmem>>, vector<8x256xbf16>
    tpu.vector_store %arg7[%c48, %c0_21], %19 {strides = array<i32>} : memref<64x256xbf16, #tpu.memory_space<vmem>>, vector<8x256xbf16>,
    %c7 = arith.constant 7 : index
    %c0_22 = arith.constant 0 : index
    %c0_23 = arith.constant 0 : index
    %21 = vector.load %arg1[%c7, %c0_22, %c0_23] : memref<8x8x256xbf16, #tpu.memory_space<vmem>>, vector<1x8x256xbf16>
    %22 = vector.shape_cast %21 : vector<1x8x256xbf16> to vector<8x256xbf16>
    %c56 = arith.constant 56 : index
    %c0_24 = arith.constant 0 : index
    %23 = vector.load %arg7[%c56, %c0_24] : memref<64x256xbf16, #tpu.memory_space<vmem>>, vector<8x256xbf16>
    tpu.vector_store %arg7[%c56, %c0_24], %22 {strides = array<i32>} : memref<64x256xbf16, #tpu.memory_space<vmem>>, vector<8x256xbf16>,
    %c0_25 = arith.constant 0 : index
    %c0_26 = arith.constant 0 : index
    %24 = vector.load %arg7[%c0_25, %c0_26] : memref<64x256xbf16, #tpu.memory_space<vmem>>, vector<64x256xbf16>
    %c0_27 = arith.constant 0 : index
    %c0_28 = arith.constant 0 : index
    %25 = vector.load %arg2[%c0_27, %c0_28] : memref<256x256xbf16, #tpu.memory_space<vmem>>, vector<256x256xbf16>
    %cst = arith.constant dense<0.000000e+00> : vector<64x256xf32>
    %26 = tpu.matmul %24, %25, %cst {dimension_numbers = #tpu.dot_dimension_numbers<[1], [0], [0], [1], [0, 0, 1, 1], [], []>} : vector<64x256xbf16>, vector<256x256xbf16>, vector<64x256xf32> -> vector<64x256xf32>
    %c0_29 = arith.constant 0 : index
    %c0_30 = arith.constant 0 : index
    %27 = vector.load %arg5[%c0_29, %c0_30] : memref<1x256xf32, #tpu.memory_space<vmem>>, vector<1x256xf32>
    %28 = vector.broadcast %27 : vector<1x256xf32> to vector<64x256xf32>
    %29 = arith.addf %26, %28 : vector<64x256xf32>
    %c0_31 = arith.constant 0 : index
    %c0_32 = arith.constant 0 : index
    %30 = vector.load %arg8[%c0_31, %c0_32] : memref<64x256xf32, #tpu.memory_space<vmem>>, vector<64x256xf32>
    tpu.vector_store %arg8[%c0_31, %c0_32], %29 {strides = array<i32>} : memref<64x256xf32, #tpu.memory_space<vmem>>, vector<64x256xf32>,
    %c0_33 = arith.constant 0 : index
    %c0_34 = arith.constant 0 : index
    %31 = vector.load %arg3[%c0_33, %c0_34] : memref<128x128xbf16, #tpu.memory_space<vmem>>, vector<128x128xbf16>
    %c0_35 = arith.constant 0 : index
    %c0_36 = arith.constant 0 : index
    %32 = vector.load %arg4[%c0_35, %c0_36] : memref<128x128xbf16, #tpu.memory_space<vmem>>, vector<128x128xbf16>
    %cst_37 = arith.constant 0.000000e+00 : f32
    %33 = vector.broadcast %cst_37 : f32 to vector<8x128xf32>
    %cst_38 = arith.constant 0.000000e+00 : f32
    %34 = vector.broadcast %cst_38 : f32 to vector<8x128xf32>
    %c0_39 = arith.constant 0 : index
    %c0_40 = arith.constant 0 : index
    %35 = vector.load %arg8[%c0_39, %c0_40] : memref<64x256xf32, #tpu.memory_space<vmem>>, vector<8x128xf32>
    %36 = arith.truncf %33 : vector<8x128xf32> to vector<8x128xbf16>
    %cst_41 = arith.constant dense<0.000000e+00> : vector<8x128xf32>
    %37 = tpu.matmul %36, %31, %cst_41 {dimension_numbers = #tpu.dot_dimension_numbers<[1], [0], [0], [1], [0, 0, 1, 1], [], []>} : vector<8x128xbf16>, vector<128x128xbf16>, vector<8x128xf32> -> vector<8x128xf32>
    %38 = arith.addf %35, %37 : vector<8x128xf32>
    %c56_42 = arith.constant 56 : index
    %c128 = arith.constant 128 : index
    %39 = vector.load %arg8[%c56_42, %c128] : memref<64x256xf32, #tpu.memory_space<vmem>>, vector<8x128xf32>
    %40 = arith.truncf %34 : vector<8x128xf32> to vector<8x128xbf16>
    %cst_43 = arith.constant dense<0.000000e+00> : vector<8x128xf32>
    %41 = tpu.matmul %40, %32, %cst_43 {dimension_numbers = #tpu.dot_dimension_numbers<[1], [0], [0], [1], [0, 0, 1, 1], [], []>} : vector<8x128xbf16>, vector<128x128xbf16>, vector<8x128xf32> -> vector<8x128xf32>
    %42 = arith.addf %39, %41 : vector<8x128xf32>
    %43 = math.tanh %38 : vector<8x128xf32>
    %44 = math.tanh %42 : vector<8x128xf32>
    %45 = arith.truncf %43 : vector<8x128xf32> to vector<8x128xbf16>
    %c0_44 = arith.constant 0 : index
    %c0_45 = arith.constant 0 : index
    %c0_46 = arith.constant 0 : index
    %46 = vector.load %arg6[%c0_44, %c0_45, %c0_46] : memref<8x8x256xbf16, #tpu.memory_space<vmem>>, vector<1x8x128xbf16>
    %47 = vector.shape_cast %46 : vector<1x8x128xbf16> to vector<8x128xbf16>
    %48 = vector.shape_cast %45 : vector<8x128xbf16> to vector<1x8x128xbf16>
    tpu.vector_store %arg6[%c0_44, %c0_45, %c0_46], %48 {strides = array<i32>} : memref<8x8x256xbf16, #tpu.memory_space<vmem>>, vector<1x8x128xbf16>,
    %49 = arith.truncf %44 : vector<8x128xf32> to vector<8x128xbf16>
    %c7_47 = arith.constant 7 : index
    %c0_48 = arith.constant 0 : index
    %c128_49 = arith.constant 128 : index
    %50 = vector.load %arg6[%c7_47, %c0_48, %c128_49] : memref<8x8x256xbf16, #tpu.memory_space<vmem>>, vector<1x8x128xbf16>
    %51 = vector.shape_cast %50 : vector<1x8x128xbf16> to vector<8x128xbf16>
    %52 = vector.shape_cast %49 : vector<8x128xbf16> to vector<1x8x128xbf16>
    tpu.vector_store %arg6[%c7_47, %c0_48, %c128_49], %52 {strides = array<i32>} : memref<8x8x256xbf16, #tpu.memory_space<vmem>>, vector<1x8x128xbf16>,
    %c8_50 = arith.constant 8 : index
    %c0_51 = arith.constant 0 : index
    %53 = vector.load %arg8[%c8_50, %c0_51] : memref<64x256xf32, #tpu.memory_space<vmem>>, vector<8x128xf32>
    %54 = arith.truncf %43 : vector<8x128xf32> to vector<8x128xbf16>
    %cst_52 = arith.constant dense<0.000000e+00> : vector<8x128xf32>
    %55 = tpu.matmul %54, %31, %cst_52 {dimension_numbers = #tpu.dot_dimension_numbers<[1], [0], [0], [1], [0, 0, 1, 1], [], []>} : vector<8x128xbf16>, vector<128x128xbf16>, vector<8x128xf32> -> vector<8x128xf32>
    %56 = arith.addf %53, %55 : vector<8x128xf32>
    %c48_53 = arith.constant 48 : index
    %c128_54 = arith.constant 128 : index
    %57 = vector.load %arg8[%c48_53, %c128_54] : memref<64x256xf32, #tpu.memory_space<vmem>>, vector<8x128xf32>
    %58 = arith.truncf %44 : vector<8x128xf32> to vector<8x128xbf16>
    %cst_55 = arith.constant dense<0.000000e+00> : vector<8x128xf32>
    %59 = tpu.matmul %58, %32, %cst_55 {dimension_numbers = #tpu.dot_dimension_numbers<[1], [0], [0], [1], [0, 0, 1, 1], [], []>} : vector<8x128xbf16>, vector<128x128xbf16>, vector<8x128xf32> -> vector<8x128xf32>
    %60 = arith.addf %57, %59 : vector<8x128xf32>
    %61 = math.tanh %56 : vector<8x128xf32>
    %62 = math.tanh %60 : vector<8x128xf32>
    %63 = arith.truncf %61 : vector<8x128xf32> to vector<8x128xbf16>
    %c1_56 = arith.constant 1 : index
    %c0_57 = arith.constant 0 : index
    %c0_58 = arith.constant 0 : index
    %64 = vector.load %arg6[%c1_56, %c0_57, %c0_58] : memref<8x8x256xbf16, #tpu.memory_space<vmem>>, vector<1x8x128xbf16>
    %65 = vector.shape_cast %64 : vector<1x8x128xbf16> to vector<8x128xbf16>
    %66 = vector.shape_cast %63 : vector<8x128xbf16> to vector<1x8x128xbf16>
    tpu.vector_store %arg6[%c1_56, %c0_57, %c0_58], %66 {strides = array<i32>} : memref<8x8x256xbf16, #tpu.memory_space<vmem>>, vector<1x8x128xbf16>,
    %67 = arith.truncf %62 : vector<8x128xf32> to vector<8x128xbf16>
    %c6_59 = arith.constant 6 : index
    %c0_60 = arith.constant 0 : index
    %c128_61 = arith.constant 128 : index
    %68 = vector.load %arg6[%c6_59, %c0_60, %c128_61] : memref<8x8x256xbf16, #tpu.memory_space<vmem>>, vector<1x8x128xbf16>
    %69 = vector.shape_cast %68 : vector<1x8x128xbf16> to vector<8x128xbf16>
    %70 = vector.shape_cast %67 : vector<8x128xbf16> to vector<1x8x128xbf16>
    tpu.vector_store %arg6[%c6_59, %c0_60, %c128_61], %70 {strides = array<i32>} : memref<8x8x256xbf16, #tpu.memory_space<vmem>>, vector<1x8x128xbf16>,
    %c16_62 = arith.constant 16 : index
    %c0_63 = arith.constant 0 : index
    %71 = vector.load %arg8[%c16_62, %c0_63] : memref<64x256xf32, #tpu.memory_space<vmem>>, vector<8x128xf32>
    %72 = arith.truncf %61 : vector<8x128xf32> to vector<8x128xbf16>
    %cst_64 = arith.constant dense<0.000000e+00> : vector<8x128xf32>
    %73 = tpu.matmul %72, %31, %cst_64 {dimension_numbers = #tpu.dot_dimension_numbers<[1], [0], [0], [1], [0, 0, 1, 1], [], []>} : vector<8x128xbf16>, vector<128x128xbf16>, vector<8x128xf32> -> vector<8x128xf32>
    %74 = arith.addf %71, %73 : vector<8x128xf32>
    %c40_65 = arith.constant 40 : index
    %c128_66 = arith.constant 128 : index
    %75 = vector.load %arg8[%c40_65, %c128_66] : memref<64x256xf32, #tpu.memory_space<vmem>>, vector<8x128xf32>
    %76 = arith.truncf %62 : vector<8x128xf32> to vector<8x128xbf16>
    %cst_67 = arith.constant dense<0.000000e+00> : vector<8x128xf32>
    %77 = tpu.matmul %76, %32, %cst_67 {dimension_numbers = #tpu.dot_dimension_numbers<[1], [0], [0], [1], [0, 0, 1, 1], [], []>} : vector<8x128xbf16>, vector<128x128xbf16>, vector<8x128xf32> -> vector<8x128xf32>
    %78 = arith.addf %75, %77 : vector<8x128xf32>
    %79 = math.tanh %74 : vector<8x128xf32>
    %80 = math.tanh %78 : vector<8x128xf32>
    %81 = arith.truncf %79 : vector<8x128xf32> to vector<8x128xbf16>
    %c2_68 = arith.constant 2 : index
    %c0_69 = arith.constant 0 : index
    %c0_70 = arith.constant 0 : index
    %82 = vector.load %arg6[%c2_68, %c0_69, %c0_70] : memref<8x8x256xbf16, #tpu.memory_space<vmem>>, vector<1x8x128xbf16>
    %83 = vector.shape_cast %82 : vector<1x8x128xbf16> to vector<8x128xbf16>
    %84 = vector.shape_cast %81 : vector<8x128xbf16> to vector<1x8x128xbf16>
    tpu.vector_store %arg6[%c2_68, %c0_69, %c0_70], %84 {strides = array<i32>} : memref<8x8x256xbf16, #tpu.memory_space<vmem>>, vector<1x8x128xbf16>,
    %85 = arith.truncf %80 : vector<8x128xf32> to vector<8x128xbf16>
    %c5_71 = arith.constant 5 : index
    %c0_72 = arith.constant 0 : index
    %c128_73 = arith.constant 128 : index
    %86 = vector.load %arg6[%c5_71, %c0_72, %c128_73] : memref<8x8x256xbf16, #tpu.memory_space<vmem>>, vector<1x8x128xbf16>
    %87 = vector.shape_cast %86 : vector<1x8x128xbf16> to vector<8x128xbf16>
    %88 = vector.shape_cast %85 : vector<8x128xbf16> to vector<1x8x128xbf16>
    tpu.vector_store %arg6[%c5_71, %c0_72, %c128_73], %88 {strides = array<i32>} : memref<8x8x256xbf16, #tpu.memory_space<vmem>>, vector<1x8x128xbf16>,
    %c24_74 = arith.constant 24 : index
    %c0_75 = arith.constant 0 : index
    %89 = vector.load %arg8[%c24_74, %c0_75] : memref<64x256xf32, #tpu.memory_space<vmem>>, vector<8x128xf32>
    %90 = arith.truncf %79 : vector<8x128xf32> to vector<8x128xbf16>
    %cst_76 = arith.constant dense<0.000000e+00> : vector<8x128xf32>
    %91 = tpu.matmul %90, %31, %cst_76 {dimension_numbers = #tpu.dot_dimension_numbers<[1], [0], [0], [1], [0, 0, 1, 1], [], []>} : vector<8x128xbf16>, vector<128x128xbf16>, vector<8x128xf32> -> vector<8x128xf32>
    %92 = arith.addf %89, %91 : vector<8x128xf32>
    %c32_77 = arith.constant 32 : index
    %c128_78 = arith.constant 128 : index
    %93 = vector.load %arg8[%c32_77, %c128_78] : memref<64x256xf32, #tpu.memory_space<vmem>>, vector<8x128xf32>
    %94 = arith.truncf %80 : vector<8x128xf32> to vector<8x128xbf16>
    %cst_79 = arith.constant dense<0.000000e+00> : vector<8x128xf32>
    %95 = tpu.matmul %94, %32, %cst_79 {dimension_numbers = #tpu.dot_dimension_numbers<[1], [0], [0], [1], [0, 0, 1, 1], [], []>} : vector<8x128xbf16>, vector<128x128xbf16>, vector<8x128xf32> -> vector<8x128xf32>
    %96 = arith.addf %93, %95 : vector<8x128xf32>
    %97 = math.tanh %92 : vector<8x128xf32>
    %98 = math.tanh %96 : vector<8x128xf32>
    %99 = arith.truncf %97 : vector<8x128xf32> to vector<8x128xbf16>
    %c3_80 = arith.constant 3 : index
    %c0_81 = arith.constant 0 : index
    %c0_82 = arith.constant 0 : index
    %100 = vector.load %arg6[%c3_80, %c0_81, %c0_82] : memref<8x8x256xbf16, #tpu.memory_space<vmem>>, vector<1x8x128xbf16>
    %101 = vector.shape_cast %100 : vector<1x8x128xbf16> to vector<8x128xbf16>
    %102 = vector.shape_cast %99 : vector<8x128xbf16> to vector<1x8x128xbf16>
    tpu.vector_store %arg6[%c3_80, %c0_81, %c0_82], %102 {strides = array<i32>} : memref<8x8x256xbf16, #tpu.memory_space<vmem>>, vector<1x8x128xbf16>,
    %103 = arith.truncf %98 : vector<8x128xf32> to vector<8x128xbf16>
    %c4_83 = arith.constant 4 : index
    %c0_84 = arith.constant 0 : index
    %c128_85 = arith.constant 128 : index
    %104 = vector.load %arg6[%c4_83, %c0_84, %c128_85] : memref<8x8x256xbf16, #tpu.memory_space<vmem>>, vector<1x8x128xbf16>
    %105 = vector.shape_cast %104 : vector<1x8x128xbf16> to vector<8x128xbf16>
    %106 = vector.shape_cast %103 : vector<8x128xbf16> to vector<1x8x128xbf16>
    tpu.vector_store %arg6[%c4_83, %c0_84, %c128_85], %106 {strides = array<i32>} : memref<8x8x256xbf16, #tpu.memory_space<vmem>>, vector<1x8x128xbf16>,
    %c32_86 = arith.constant 32 : index
    %c0_87 = arith.constant 0 : index
    %107 = vector.load %arg8[%c32_86, %c0_87] : memref<64x256xf32, #tpu.memory_space<vmem>>, vector<8x128xf32>
    %108 = arith.truncf %97 : vector<8x128xf32> to vector<8x128xbf16>
    %cst_88 = arith.constant dense<0.000000e+00> : vector<8x128xf32>
    %109 = tpu.matmul %108, %31, %cst_88 {dimension_numbers = #tpu.dot_dimension_numbers<[1], [0], [0], [1], [0, 0, 1, 1], [], []>} : vector<8x128xbf16>, vector<128x128xbf16>, vector<8x128xf32> -> vector<8x128xf32>
    %110 = arith.addf %107, %109 : vector<8x128xf32>
    %c24_89 = arith.constant 24 : index
    %c128_90 = arith.constant 128 : index
    %111 = vector.load %arg8[%c24_89, %c128_90] : memref<64x256xf32, #tpu.memory_space<vmem>>, vector<8x128xf32>
    %112 = arith.truncf %98 : vector<8x128xf32> to vector<8x128xbf16>
    %cst_91 = arith.constant dense<0.000000e+00> : vector<8x128xf32>
    %113 = tpu.matmul %112, %32, %cst_91 {dimension_numbers = #tpu.dot_dimension_numbers<[1], [0], [0], [1], [0, 0, 1, 1], [], []>} : vector<8x128xbf16>, vector<128x128xbf16>, vector<8x128xf32> -> vector<8x128xf32>
    %114 = arith.addf %111, %113 : vector<8x128xf32>
    %115 = math.tanh %110 : vector<8x128xf32>
    %116 = math.tanh %114 : vector<8x128xf32>
    %117 = arith.truncf %115 : vector<8x128xf32> to vector<8x128xbf16>
    %c4_92 = arith.constant 4 : index
    %c0_93 = arith.constant 0 : index
    %c0_94 = arith.constant 0 : index
    %118 = vector.load %arg6[%c4_92, %c0_93, %c0_94] : memref<8x8x256xbf16, #tpu.memory_space<vmem>>, vector<1x8x128xbf16>
    %119 = vector.shape_cast %118 : vector<1x8x128xbf16> to vector<8x128xbf16>
    %120 = vector.shape_cast %117 : vector<8x128xbf16> to vector<1x8x128xbf16>
    tpu.vector_store %arg6[%c4_92, %c0_93, %c0_94], %120 {strides = array<i32>} : memref<8x8x256xbf16, #tpu.memory_space<vmem>>, vector<1x8x128xbf16>,
    %121 = arith.truncf %116 : vector<8x128xf32> to vector<8x128xbf16>
    %c3_95 = arith.constant 3 : index
    %c0_96 = arith.constant 0 : index
    %c128_97 = arith.constant 128 : index
    %122 = vector.load %arg6[%c3_95, %c0_96, %c128_97] : memref<8x8x256xbf16, #tpu.memory_space<vmem>>, vector<1x8x128xbf16>
    %123 = vector.shape_cast %122 : vector<1x8x128xbf16> to vector<8x128xbf16>
    %124 = vector.shape_cast %121 : vector<8x128xbf16> to vector<1x8x128xbf16>
    tpu.vector_store %arg6[%c3_95, %c0_96, %c128_97], %124 {strides = array<i32>} : memref<8x8x256xbf16, #tpu.memory_space<vmem>>, vector<1x8x128xbf16>,
    %c40_98 = arith.constant 40 : index
    %c0_99 = arith.constant 0 : index
    %125 = vector.load %arg8[%c40_98, %c0_99] : memref<64x256xf32, #tpu.memory_space<vmem>>, vector<8x128xf32>
    %126 = arith.truncf %115 : vector<8x128xf32> to vector<8x128xbf16>
    %cst_100 = arith.constant dense<0.000000e+00> : vector<8x128xf32>
    %127 = tpu.matmul %126, %31, %cst_100 {dimension_numbers = #tpu.dot_dimension_numbers<[1], [0], [0], [1], [0, 0, 1, 1], [], []>} : vector<8x128xbf16>, vector<128x128xbf16>, vector<8x128xf32> -> vector<8x128xf32>
    %128 = arith.addf %125, %127 : vector<8x128xf32>
    %c16_101 = arith.constant 16 : index
    %c128_102 = arith.constant 128 : index
    %129 = vector.load %arg8[%c16_101, %c128_102] : memref<64x256xf32, #tpu.memory_space<vmem>>, vector<8x128xf32>
    %130 = arith.truncf %116 : vector<8x128xf32> to vector<8x128xbf16>
    %cst_103 = arith.constant dense<0.000000e+00> : vector<8x128xf32>
    %131 = tpu.matmul %130, %32, %cst_103 {dimension_numbers = #tpu.dot_dimension_numbers<[1], [0], [0], [1], [0, 0, 1, 1], [], []>} : vector<8x128xbf16>, vector<128x128xbf16>, vector<8x128xf32> -> vector<8x128xf32>
    %132 = arith.addf %129, %131 : vector<8x128xf32>
    %133 = math.tanh %128 : vector<8x128xf32>
    %134 = math.tanh %132 : vector<8x128xf32>
    %135 = arith.truncf %133 : vector<8x128xf32> to vector<8x128xbf16>
    %c5_104 = arith.constant 5 : index
    %c0_105 = arith.constant 0 : index
    %c0_106 = arith.constant 0 : index
    %136 = vector.load %arg6[%c5_104, %c0_105, %c0_106] : memref<8x8x256xbf16, #tpu.memory_space<vmem>>, vector<1x8x128xbf16>
    %137 = vector.shape_cast %136 : vector<1x8x128xbf16> to vector<8x128xbf16>
    %138 = vector.shape_cast %135 : vector<8x128xbf16> to vector<1x8x128xbf16>
    tpu.vector_store %arg6[%c5_104, %c0_105, %c0_106], %138 {strides = array<i32>} : memref<8x8x256xbf16, #tpu.memory_space<vmem>>, vector<1x8x128xbf16>,
    %139 = arith.truncf %134 : vector<8x128xf32> to vector<8x128xbf16>
    %c2_107 = arith.constant 2 : index
    %c0_108 = arith.constant 0 : index
    %c128_109 = arith.constant 128 : index
    %140 = vector.load %arg6[%c2_107, %c0_108, %c128_109] : memref<8x8x256xbf16, #tpu.memory_space<vmem>>, vector<1x8x128xbf16>
    %141 = vector.shape_cast %140 : vector<1x8x128xbf16> to vector<8x128xbf16>
    %142 = vector.shape_cast %139 : vector<8x128xbf16> to vector<1x8x128xbf16>
    tpu.vector_store %arg6[%c2_107, %c0_108, %c128_109], %142 {strides = array<i32>} : memref<8x8x256xbf16, #tpu.memory_space<vmem>>, vector<1x8x128xbf16>,
    %c48_110 = arith.constant 48 : index
    %c0_111 = arith.constant 0 : index
    %143 = vector.load %arg8[%c48_110, %c0_111] : memref<64x256xf32, #tpu.memory_space<vmem>>, vector<8x128xf32>
    %144 = arith.truncf %133 : vector<8x128xf32> to vector<8x128xbf16>
    %cst_112 = arith.constant dense<0.000000e+00> : vector<8x128xf32>
    %145 = tpu.matmul %144, %31, %cst_112 {dimension_numbers = #tpu.dot_dimension_numbers<[1], [0], [0], [1], [0, 0, 1, 1], [], []>} : vector<8x128xbf16>, vector<128x128xbf16>, vector<8x128xf32> -> vector<8x128xf32>
    %146 = arith.addf %143, %145 : vector<8x128xf32>
    %c8_113 = arith.constant 8 : index
    %c128_114 = arith.constant 128 : index
    %147 = vector.load %arg8[%c8_113, %c128_114] : memref<64x256xf32, #tpu.memory_space<vmem>>, vector<8x128xf32>
    %148 = arith.truncf %134 : vector<8x128xf32> to vector<8x128xbf16>
    %cst_115 = arith.constant dense<0.000000e+00> : vector<8x128xf32>
    %149 = tpu.matmul %148, %32, %cst_115 {dimension_numbers = #tpu.dot_dimension_numbers<[1], [0], [0], [1], [0, 0, 1, 1], [], []>} : vector<8x128xbf16>, vector<128x128xbf16>, vector<8x128xf32> -> vector<8x128xf32>
    %150 = arith.addf %147, %149 : vector<8x128xf32>
    %151 = math.tanh %146 : vector<8x128xf32>
    %152 = math.tanh %150 : vector<8x128xf32>
    %153 = arith.truncf %151 : vector<8x128xf32> to vector<8x128xbf16>
    %c6_116 = arith.constant 6 : index
    %c0_117 = arith.constant 0 : index
    %c0_118 = arith.constant 0 : index
    %154 = vector.load %arg6[%c6_116, %c0_117, %c0_118] : memref<8x8x256xbf16, #tpu.memory_space<vmem>>, vector<1x8x128xbf16>
    %155 = vector.shape_cast %154 : vector<1x8x128xbf16> to vector<8x128xbf16>
    %156 = vector.shape_cast %153 : vector<8x128xbf16> to vector<1x8x128xbf16>
    tpu.vector_store %arg6[%c6_116, %c0_117, %c0_118], %156 {strides = array<i32>} : memref<8x8x256xbf16, #tpu.memory_space<vmem>>, vector<1x8x128xbf16>,
    %157 = arith.truncf %152 : vector<8x128xf32> to vector<8x128xbf16>
    %c1_119 = arith.constant 1 : index
    %c0_120 = arith.constant 0 : index
    %c128_121 = arith.constant 128 : index
    %158 = vector.load %arg6[%c1_119, %c0_120, %c128_121] : memref<8x8x256xbf16, #tpu.memory_space<vmem>>, vector<1x8x128xbf16>
    %159 = vector.shape_cast %158 : vector<1x8x128xbf16> to vector<8x128xbf16>
    %160 = vector.shape_cast %157 : vector<8x128xbf16> to vector<1x8x128xbf16>
    tpu.vector_store %arg6[%c1_119, %c0_120, %c128_121], %160 {strides = array<i32>} : memref<8x8x256xbf16, #tpu.memory_space<vmem>>, vector<1x8x128xbf16>,
    %c56_122 = arith.constant 56 : index
    %c0_123 = arith.constant 0 : index
    %161 = vector.load %arg8[%c56_122, %c0_123] : memref<64x256xf32, #tpu.memory_space<vmem>>, vector<8x128xf32>
    %162 = arith.truncf %151 : vector<8x128xf32> to vector<8x128xbf16>
    %cst_124 = arith.constant dense<0.000000e+00> : vector<8x128xf32>
    %163 = tpu.matmul %162, %31, %cst_124 {dimension_numbers = #tpu.dot_dimension_numbers<[1], [0], [0], [1], [0, 0, 1, 1], [], []>} : vector<8x128xbf16>, vector<128x128xbf16>, vector<8x128xf32> -> vector<8x128xf32>
    %164 = arith.addf %161, %163 : vector<8x128xf32>
    %c0_125 = arith.constant 0 : index
    %c128_126 = arith.constant 128 : index
    %165 = vector.load %arg8[%c0_125, %c128_126] : memref<64x256xf32, #tpu.memory_space<vmem>>, vector<8x128xf32>
    %166 = arith.truncf %152 : vector<8x128xf32> to vector<8x128xbf16>
    %cst_127 = arith.constant dense<0.000000e+00> : vector<8x128xf32>
    %167 = tpu.matmul %166, %32, %cst_127 {dimension_numbers = #tpu.dot_dimension_numbers<[1], [0], [0], [1], [0, 0, 1, 1], [], []>} : vector<8x128xbf16>, vector<128x128xbf16>, vector<8x128xf32> -> vector<8x128xf32>
    %168 = arith.addf %165, %167 : vector<8x128xf32>
    %169 = math.tanh %164 : vector<8x128xf32>
    %170 = math.tanh %168 : vector<8x128xf32>
    %171 = arith.truncf %169 : vector<8x128xf32> to vector<8x128xbf16>
    %c7_128 = arith.constant 7 : index
    %c0_129 = arith.constant 0 : index
    %c0_130 = arith.constant 0 : index
    %172 = vector.load %arg6[%c7_128, %c0_129, %c0_130] : memref<8x8x256xbf16, #tpu.memory_space<vmem>>, vector<1x8x128xbf16>
    %173 = vector.shape_cast %172 : vector<1x8x128xbf16> to vector<8x128xbf16>
    %174 = vector.shape_cast %171 : vector<8x128xbf16> to vector<1x8x128xbf16>
    tpu.vector_store %arg6[%c7_128, %c0_129, %c0_130], %174 {strides = array<i32>} : memref<8x8x256xbf16, #tpu.memory_space<vmem>>, vector<1x8x128xbf16>,
    %175 = arith.truncf %170 : vector<8x128xf32> to vector<8x128xbf16>
    %c0_131 = arith.constant 0 : index
    %c0_132 = arith.constant 0 : index
    %c128_133 = arith.constant 128 : index
    %176 = vector.load %arg6[%c0_131, %c0_132, %c128_133] : memref<8x8x256xbf16, #tpu.memory_space<vmem>>, vector<1x8x128xbf16>
    %177 = vector.shape_cast %176 : vector<1x8x128xbf16> to vector<8x128xbf16>
    %178 = vector.shape_cast %175 : vector<8x128xbf16> to vector<1x8x128xbf16>
    tpu.vector_store %arg6[%c0_131, %c0_132, %c128_133], %178 {strides = array<i32>} : memref<8x8x256xbf16, #tpu.memory_space<vmem>>, vector<1x8x128xbf16>,
    return
  }
  func.func @transform_0(%arg0: i32) -> (i32, i32, i32) {
    %c0_i32 = arith.constant 0 : i32
    %c0_i32_0 = arith.constant 0 : i32
    %c0_i32_1 = arith.constant 0 : i32
    return %c0_i32, %arg0, %c0_i32_0 : i32, i32, i32
  }
  func.func @transform_1(%arg0: i32) -> (i32, i32) {
    %c0_i32 = arith.constant 0 : i32
    %c0_i32_0 = arith.constant 0 : i32
    %c0_i32_1 = arith.constant 0 : i32
    return %c0_i32, %c0_i32_0 : i32, i32
  }
  func.func @transform_2(%arg0: i32) -> (i32, i32) {
    %c0_i32 = arith.constant 0 : i32
    %c0_i32_0 = arith.constant 0 : i32
    %c0_i32_1 = arith.constant 0 : i32
    return %c0_i32, %c0_i32_0 : i32, i32
  }
  func.func @transform_3(%arg0: i32) -> (i32, i32) {
    %c0_i32 = arith.constant 0 : i32
    %c0_i32_0 = arith.constant 0 : i32
    %c0_i32_1 = arith.constant 0 : i32
    return %c0_i32, %c0_i32_0 : i32, i32
  }
  func.func @transform_4(%arg0: i32) -> (i32, i32) {
    %c0_i32 = arith.constant 0 : i32
    %c0_i32_0 = arith.constant 0 : i32
    %c0_i32_1 = arith.constant 0 : i32
    return %c0_i32, %c0_i32_0 : i32, i32
  }
  func.func @transform_5(%arg0: i32) -> (i32, i32, i32) {
    %c0_i32 = arith.constant 0 : i32
    %c0_i32_0 = arith.constant 0 : i32
    %c0_i32_1 = arith.constant 0 : i32
    return %c0_i32, %arg0, %c0_i32_0 : i32, i32, i32
  }
}

</mosaic_0001>

<llo_original>
// kernel: rnn_bidireccional_forward.5
$region0: #{rnn_bidireccional_forward.5}
  #allocation0 [shape = 'u32[]', space=smem, size = 0x4, offset = 0x4, fixed_abs, tag = 'smem constant byte address 0x4 - core index']
  #allocation1 [shape = 'u32[144,128]{1,0:T(1,128)}', space=vmem, size = 0x12000, scoped, tag = 'internal scratch']
  #allocation2 [shape = 'bf16[64,256]{1,0:T(16,128)(2,1)}', space=vmem, size = 0x8000, scoped, tag = 'scratch operand']
  #allocation3 [shape = 'f32[64,128]{1,0:T(8,128)}', space=vmem, size = 0x8000, scoped, tag = 'scratch operand']
  %s0 = inlined_call_operand.vmem [shape: bf16[8,8,256], index: 0, kind: input, shape index: {}]
  %s1 = inlined_call_operand.vmem [shape: bf16[256,128], index: 1, kind: input, shape index: {}]
  %s2 = inlined_call_operand.vmem [shape: bf16[128,128], index: 2, kind: input, shape index: {}]
  %s3 = inlined_call_operand.vmem [shape: f32[1,128], index: 3, kind: input, shape index: {}]
  %s4 = inlined_call_operand.vmem [shape: f32[8,8,128], index: 4, kind: output, shape index: {}]
  %s5 = sld [smem:[#allocation0]]
  $region26: #{rnn_bidireccional_forward.5} parent=0
    _
  %s7 = ssub.s32 1, %s5
  %s8 = scalar_select 0, %s7, %s5
  // Predicated region
  $region2: #{rnn_bidireccional_forward.5} parent=0 // pred_check
    _
  $region3: #{rnn_bidireccional_forward.5} parent=0 // pred_check_branch
    %10 = sbr.rel (0) target = $region5
  $region4: #{rnn_bidireccional_forward.5} parent=0 // pred_region
    _
  $region5: #{rnn_bidireccional_forward.5} parent=0 // pred_fallthru
    _
  // Predicated region
  $region6: #{rnn_bidireccional_forward.5} parent=0 // pred_check
    _
  $region7: #{rnn_bidireccional_forward.5} parent=0 // pred_check_branch
    %12 = sbr.rel (0) target = $region9
  $region8: #{rnn_bidireccional_forward.5} parent=0 // pred_region
    _
  $region9: #{rnn_bidireccional_forward.5} parent=0 // pred_fallthru
    _
  // Predicated region
  $region10: #{rnn_bidireccional_forward.5} parent=0 // pred_check
    _
  $region11: #{rnn_bidireccional_forward.5} parent=0 // pred_check_branch
    %14 = sbr.rel (0) target = $region13
  $region12: #{rnn_bidireccional_forward.5} parent=0 // pred_region
    _
  $region13: #{rnn_bidireccional_forward.5} parent=0 // pred_fallthru
    _
  // Predicated region
  $region14: #{rnn_bidireccional_forward.5} parent=0 // pred_check
    _
  $region15: #{rnn_bidireccional_forward.5} parent=0 // pred_check_branch
    %16 = sbr.rel (0) target = $region17
  $region16: #{rnn_bidireccional_forward.5} parent=0 // pred_region
    _
  $region17: #{rnn_bidireccional_forward.5} parent=0 // pred_fallthru
    _
  %v18 = vld [vmem:[%s0] sm:$0xff]
  %v19 = vmax.bf16 %v18, 0
  %v21 = vunpack.c.l.b16 %v19
  %v22 = vunpack.c.h.b16 %v19
  %v23 = vpack.c.b16 %v21, %v21
  %v24 = vpack.c.b16 %v22, %v22
  %27 = vst [vmem:[#allocation2] sm:$0xf] %v23
  %28 = vst [vmem:[#allocation2 + $0x8] sm:$0xf] %v24
  %s29 = scalar_lea.vmem %s0, 8
  %v30 = vld [vmem:[%s29] sm:$0xff]
  %v31 = vmax.bf16 %v30, 0
  %v33 = vunpack.c.l.b16 %v31
  %v34 = vunpack.c.h.b16 %v31
  %v35 = vpack.c.b16 %v33, %v33
  %v36 = vpack.c.b16 %v34, %v34
  %39 = vst [vmem:[#allocation2] sm:$0xf0] %v35
  %40 = vst [vmem:[#allocation2 + $0x8] sm:$0xf0] %v36
  %s41 = scalar_lea.vmem %s0, 16
  %v42 = vld [vmem:[%s41] sm:$0xff]
  %v43 = vmax.bf16 %v42, 0
  %v45 = vunpack.c.l.b16 %v43
  %v46 = vunpack.c.h.b16 %v43
  %v47 = vpack.c.b16 %v45, %v45
  %v48 = vpack.c.b16 %v46, %v46
  %51 = vst [vmem:[#allocation2 + $0x10] sm:$0xf] %v47
  %52 = vst [vmem:[#allocation2 + $0x18] sm:$0xf] %v48
  %s53 = scalar_lea.vmem %s0, 24
  %v54 = vld [vmem:[%s53] sm:$0xff]
  %v55 = vmax.bf16 %v54, 0
  %v57 = vunpack.c.l.b16 %v55
  %v58 = vunpack.c.h.b16 %v55
  %v59 = vpack.c.b16 %v57, %v57
  %v60 = vpack.c.b16 %v58, %v58
  %63 = vst [vmem:[#allocation2 + $0x10] sm:$0xf0] %v59
  %64 = vst [vmem:[#allocation2 + $0x18] sm:$0xf0] %v60
  %s65 = scalar_lea.vmem %s0, 32
  %v66 = vld [vmem:[%s65] sm:$0xff]
  %v67 = vmax.bf16 %v66, 0
  %v69 = vunpack.c.l.b16 %v67
  %v70 = vunpack.c.h.b16 %v67
  %v71 = vpack.c.b16 %v69, %v69
  %v72 = vpack.c.b16 %v70, %v70
  %75 = vst [vmem:[#allocation2 + $0x20] sm:$0xf] %v71
  %76 = vst [vmem:[#allocation2 + $0x28] sm:$0xf] %v72
  %s77 = scalar_lea.vmem %s0, 40
  %v78 = vld [vmem:[%s77] sm:$0xff]
  %v79 = vmax.bf16 %v78, 0
  %v81 = vunpack.c.l.b16 %v79
  %v82 = vunpack.c.h.b16 %v79
  %v83 = vpack.c.b16 %v81, %v81
  %v84 = vpack.c.b16 %v82, %v82
  %87 = vst [vmem:[#allocation2 + $0x20] sm:$0xf0] %v83
  %88 = vst [vmem:[#allocation2 + $0x28] sm:$0xf0] %v84
  %s89 = scalar_lea.vmem %s0, 48
  %v90 = vld [vmem:[%s89] sm:$0xff]
  %v91 = vmax.bf16 %v90, 0
  %v93 = vunpack.c.l.b16 %v91
  %v94 = vunpack.c.h.b16 %v91
  %v95 = vpack.c.b16 %v93, %v93
  %v96 = vpack.c.b16 %v94, %v94
  %99 = vst [vmem:[#allocation2 + $0x30] sm:$0xf] %v95
  %100 = vst [vmem:[#allocation2 + $0x38] sm:$0xf] %v96
  %s101 = scalar_lea.vmem %s0, 56
  %v102 = vld [vmem:[%s101] sm:$0xff]
  %v103 = vmax.bf16 %v102, 0
  %v105 = vunpack.c.l.b16 %v103
  %v106 = vunpack.c.h.b16 %v103
  %v107 = vpack.c.b16 %v105, %v105
  %v108 = vpack.c.b16 %v106, %v106
  %111 = vst [vmem:[#allocation2 + $0x30] sm:$0xf0] %v107
  %112 = vst [vmem:[#allocation2 + $0x38] sm:$0xf0] %v108
  %v113 = vld [vmem:[#allocation2] sm:$0xff]
  %v114 = vld [vmem:[#allocation2 + $0x8] sm:$0xff]
  %v115 = vld [vmem:[#allocation2 + $0x10] sm:$0xff]
  %v116 = vld [vmem:[#allocation2 + $0x18] sm:$0xff]
  %v117 = vld [vmem:[#allocation2 + $0x20] sm:$0xff]
  %v118 = vld [vmem:[#allocation2 + $0x28] sm:$0xff]
  %v119 = vld [vmem:[#allocation2 + $0x30] sm:$0xff]
  %v120 = vld [vmem:[#allocation2 + $0x38] sm:$0xff]
  %v121 = vld [vmem:[%s1] sm:$0xf]
  %v122 = vld [vmem:[%s1 + $0x4] sm:$0xf]
  %v123 = vld [vmem:[%s1 + $0x8] sm:$0xf]
  %v124 = vld [vmem:[%s1 + $0xc] sm:$0xf]
  %v125 = vld [vmem:[%s1 + $0x10] sm:$0xf]
  %v126 = vld [vmem:[%s1 + $0x14] sm:$0xf]
  %v127 = vld [vmem:[%s1 + $0x18] sm:$0xf]
  %v128 = vld [vmem:[%s1 + $0x1c] sm:$0xf]
  %v129 = vld [vmem:[%s1 + $0x20] sm:$0xf]
  %v130 = vld [vmem:[%s1 + $0x24] sm:$0xf]
  %v131 = vld [vmem:[%s1 + $0x28] sm:$0xf]
  %v132 = vld [vmem:[%s1 + $0x2c] sm:$0xf]
  %v133 = vld [vmem:[%s1 + $0x30] sm:$0xf]
  %v134 = vld [vmem:[%s1 + $0x34] sm:$0xf]
  %v135 = vld [vmem:[%s1 + $0x38] sm:$0xf]
  %v136 = vld [vmem:[%s1 + $0x3c] sm:$0xf]
  %v137 = vld [vmem:[%s1 + $0x40] sm:$0xf]
  %v138 = vld [vmem:[%s1 + $0x44] sm:$0xf]
  %v139 = vld [vmem:[%s1 + $0x48] sm:$0xf]
  %v140 = vld [vmem:[%s1 + $0x4c] sm:$0xf]
  %v141 = vld [vmem:[%s1 + $0x50] sm:$0xf]
  %v142 = vld [vmem:[%s1 + $0x54] sm:$0xf]
  %v143 = vld [vmem:[%s1 + $0x58] sm:$0xf]
  %v144 = vld [vmem:[%s1 + $0x5c] sm:$0xf]
  %v145 = vld [vmem:[%s1 + $0x60] sm:$0xf]
  %v146 = vld [vmem:[%s1 + $0x64] sm:$0xf]
  %v147 = vld [vmem:[%s1 + $0x68] sm:$0xf]
  %v148 = vld [vmem:[%s1 + $0x6c] sm:$0xf]
  %v149 = vld [vmem:[%s1 + $0x70] sm:$0xf]
  %v150 = vld [vmem:[%s1 + $0x74] sm:$0xf]
  %v151 = vld [vmem:[%s1 + $0x78] sm:$0xf]
  %v152 = vld [vmem:[%s1 + $0x7c] sm:$0xf]
  %v153 = vld [vmem:[%s3] sm:$0x1]
  %v155 = vlaneseq
  %v156 = vshrl.u32 %v155, 7
  %v157 = vsub.s32 0, %v156
  %v158 = vrot.slane %v153, %v157
  %v192 = vunpack.c.l.b16 %v121
  %v193 = vunpack.c.l.b16 %v122
  %v194 = vunpack.c.l.b16 %v123
  %v195 = vunpack.c.l.b16 %v124
  %v196 = vunpack.c.l.b16 %v125
  %v197 = vunpack.c.l.b16 %v126
  %v198 = vunpack.c.l.b16 %v127
  %v199 = vunpack.c.l.b16 %v128
  %v200 = vunpack.c.l.b16 %v129
  %v201 = vunpack.c.l.b16 %v130
  %v202 = vunpack.c.l.b16 %v131
  %v203 = vunpack.c.l.b16 %v132
  %v204 = vunpack.c.l.b16 %v133
  %v205 = vunpack.c.l.b16 %v134
  %v206 = vunpack.c.l.b16 %v135
  %v207 = vunpack.c.l.b16 %v136
  %v208 = vunpack.c.l.b16 %v137
  %v209 = vunpack.c.l.b16 %v138
  %v210 = vunpack.c.l.b16 %v139
  %v211 = vunpack.c.l.b16 %v140
  %v212 = vunpack.c.l.b16 %v141
  %v213 = vunpack.c.l.b16 %v142
  %v214 = vunpack.c.l.b16 %v143
  %v215 = vunpack.c.l.b16 %v144
  %v216 = vunpack.c.l.b16 %v145
  %v217 = vunpack.c.l.b16 %v146
  %v218 = vunpack.c.l.b16 %v147
  %v219 = vunpack.c.l.b16 %v148
  %v220 = vunpack.c.l.b16 %v149
  %v221 = vunpack.c.l.b16 %v150
  %v222 = vunpack.c.l.b16 %v151
  %v223 = vunpack.c.l.b16 %v152
  %v224 = vpack.c.b16 %v193, %v192
  %v225 = vpack.c.b16 %v195, %v194
  %v226 = vpack.c.b16 %v197, %v196
  %v227 = vpack.c.b16 %v199, %v198
  %v228 = vpack.c.b16 %v201, %v200
  %v229 = vpack.c.b16 %v203, %v202
  %v230 = vpack.c.b16 %v205, %v204
  %v231 = vpack.c.b16 %v207, %v206
  %v232 = vpack.c.b16 %v209, %v208
  %v233 = vpack.c.b16 %v211, %v210
  %v234 = vpack.c.b16 %v213, %v212
  %v235 = vpack.c.b16 %v215, %v214
  %v236 = vpack.c.b16 %v217, %v216
  %v237 = vpack.c.b16 %v219, %v218
  %v238 = vpack.c.b16 %v221, %v220
  %v239 = vpack.c.b16 %v223, %v222
  %256 = vmatprep.subr.bf16.mxu0 0
  %257 = vmatpush1.bf16.msra.mxu0 %v224
  %258 = vmatprep.subr.bf16.mxu0 0
  %259 = vmatpush1.bf16.msra.mxu0 %v225
  %260 = vmatprep.subr.bf16.mxu0 0
  %261 = vmatpush1.bf16.msra.mxu0 %v226
  %262 = vmatprep.subr.bf16.mxu0 0
  %263 = vmatpush1.bf16.msra.mxu0 %v227
  %264 = vmatprep.subr.bf16.mxu0 0
  %265 = vmatpush1.bf16.msra.mxu0 %v228
  %266 = vmatprep.subr.bf16.mxu0 0
  %267 = vmatpush1.bf16.msra.mxu0 %v229
  %268 = vmatprep.subr.bf16.mxu0 0
  %269 = vmatpush1.bf16.msra.mxu0 %v230
  %270 = vmatprep.subr.bf16.mxu0 0
  %271 = vmatpush1.bf16.msra.mxu0 %v231
  %272 = vmatprep.subr.bf16.mxu0 0
  %273 = vmatpush1.bf16.msra.mxu0 %v232
  %274 = vmatprep.subr.bf16.mxu0 0
  %275 = vmatpush1.bf16.msra.mxu0 %v233
  %276 = vmatprep.subr.bf16.mxu0 0
  %277 = vmatpush1.bf16.msra.mxu0 %v234
  %278 = vmatprep.subr.bf16.mxu0 0
  %279 = vmatpush1.bf16.msra.mxu0 %v235
  %280 = vmatprep.subr.bf16.mxu0 0
  %281 = vmatpush1.bf16.msra.mxu0 %v236
  %282 = vmatprep.subr.bf16.mxu0 0
  %283 = vmatpush1.bf16.msra.mxu0 %v237
  %284 = vmatprep.subr.bf16.mxu0 0
  %285 = vmatpush1.bf16.msra.mxu0 %v238
  %286 = vmatprep.subr.bf16.mxu0 0
  %287 = vmatpush1.bf16.msra.mxu0 %v239
  %288 = vmatprep.mubr.bf16.mxu0 %v114
  %289 = vmatmul.mubr.bf16.gmra.mrb[0].mxu0 %v113
  %v290 = vpop.f32.mrb[0].mxu0
  %v291 = vadd.f32 %v158, %v290
  %v292 = vpop.f32.mrb[0].mxu0
  %v293 = vpop.f32.mrb[0].mxu0
  %v294 = vadd.f32 %v158, %v293
  %v295 = vpop.f32.mrb[0].mxu0
  %296 = vmatprep.mubr.bf16.mxu0 %v116
  %297 = vmatmul.mubr.bf16.gmra.mrb[0].mxu0 %v115
  %v298 = vpop.f32.mrb[0].mxu0
  %v299 = vadd.f32 %v158, %v298
  %v300 = vpop.f32.mrb[0].mxu0
  %v301 = vpop.f32.mrb[0].mxu0
  %v302 = vadd.f32 %v158, %v301
  %v303 = vpop.f32.mrb[0].mxu0
  %304 = vmatprep.mubr.bf16.mxu0 %v118
  %305 = vmatmul.mubr.bf16.gmra.mrb[0].mxu0 %v117
  %v306 = vpop.f32.mrb[0].mxu0
  %v307 = vadd.f32 %v158, %v306
  %v308 = vpop.f32.mrb[0].mxu0
  %v309 = vpop.f32.mrb[0].mxu0
  %v310 = vadd.f32 %v158, %v309
  %v311 = vpop.f32.mrb[0].mxu0
  %312 = vmatprep.mubr.bf16.mxu0 %v120
  %313 = vmatmul.mubr.bf16.gmra.mrb[0].mxu0 %v119
  %v314 = vpop.f32.mrb[0].mxu0
  %v315 = vadd.f32 %v158, %v314
  %v316 = vpop.f32.mrb[0].mxu0
  %v317 = vpop.f32.mrb[0].mxu0
  %v318 = vadd.f32 %v158, %v317
  %v319 = vpop.f32.mrb[0].mxu0
  %320 = vdwg.mxu0
  %321 = vst [vmem:[#allocation3] sm:$0xff] %v291
  %322 = vst [vmem:[#allocation3 + $0x8] sm:$0xff] %v294
  %323 = vst [vmem:[#allocation3 + $0x10] sm:$0xff] %v299
  %324 = vst [vmem:[#allocation3 + $0x18] sm:$0xff] %v302
  %325 = vst [vmem:[#allocation3 + $0x20] sm:$0xff] %v307
  %326 = vst [vmem:[#allocation3 + $0x28] sm:$0xff] %v310
  %327 = vst [vmem:[#allocation3 + $0x30] sm:$0xff] %v315
  %328 = vst [vmem:[#allocation3 + $0x38] sm:$0xff] %v318
  %v329 = vld [vmem:[%s2] sm:$0xf]
  %v330 = vld [vmem:[%s2 + $0x4] sm:$0xf]
  %v331 = vld [vmem:[%s2 + $0x8] sm:$0xf]
  %v332 = vld [vmem:[%s2 + $0xc] sm:$0xf]
  %v333 = vld [vmem:[%s2 + $0x10] sm:$0xf]
  %v334 = vld [vmem:[%s2 + $0x14] sm:$0xf]
  %v335 = vld [vmem:[%s2 + $0x18] sm:$0xf]
  %v336 = vld [vmem:[%s2 + $0x1c] sm:$0xf]
  %v337 = vld [vmem:[%s2 + $0x20] sm:$0xf]
  %v338 = vld [vmem:[%s2 + $0x24] sm:$0xf]
  %v339 = vld [vmem:[%s2 + $0x28] sm:$0xf]
  %v340 = vld [vmem:[%s2 + $0x2c] sm:$0xf]
  %v341 = vld [vmem:[%s2 + $0x30] sm:$0xf]
  %v342 = vld [vmem:[%s2 + $0x34] sm:$0xf]
  %v343 = vld [vmem:[%s2 + $0x38] sm:$0xf]
  %v344 = vld [vmem:[%s2 + $0x3c] sm:$0xf]
  %v345 = vld [vmem:[#allocation3] sm:$0xff]
  %v362 = vunpack.c.l.b16 %v329
  %v363 = vunpack.c.l.b16 %v330
  %v364 = vunpack.c.l.b16 %v331
  %v365 = vunpack.c.l.b16 %v332
  %v366 = vunpack.c.l.b16 %v333
  %v367 = vunpack.c.l.b16 %v334
  %v368 = vunpack.c.l.b16 %v335
  %v369 = vunpack.c.l.b16 %v336
  %v370 = vunpack.c.l.b16 %v337
  %v371 = vunpack.c.l.b16 %v338
  %v372 = vunpack.c.l.b16 %v339
  %v373 = vunpack.c.l.b16 %v340
  %v374 = vunpack.c.l.b16 %v341
  %v375 = vunpack.c.l.b16 %v342
  %v376 = vunpack.c.l.b16 %v343
  %v377 = vunpack.c.l.b16 %v344
  %v378 = vpack.c.b16 %v363, %v362
  %v379 = vpack.c.b16 %v365, %v364
  %v380 = vpack.c.b16 %v367, %v366
  %v381 = vpack.c.b16 %v369, %v368
  %v382 = vpack.c.b16 %v371, %v370
  %v383 = vpack.c.b16 %v373, %v372
  %v384 = vpack.c.b16 %v375, %v374
  %v385 = vpack.c.b16 %v377, %v376
  %394 = vmatprep.subr.bf16.mxu0 0
  %395 = vmatpush1.bf16.msra.mxu0 %v378
  %396 = vmatprep.subr.bf16.mxu0 0
  %397 = vmatpush1.bf16.msra.mxu0 %v379
  %398 = vmatprep.subr.bf16.mxu0 0
  %399 = vmatpush1.bf16.msra.mxu0 %v380
  %400 = vmatprep.subr.bf16.mxu0 0
  %401 = vmatpush1.bf16.msra.mxu0 %v381
  %402 = vmatprep.subr.bf16.mxu0 0
  %403 = vmatpush1.bf16.msra.mxu0 %v382
  %404 = vmatprep.subr.bf16.mxu0 0
  %405 = vmatpush1.bf16.msra.mxu0 %v383
  %406 = vmatprep.subr.bf16.mxu0 0
  %407 = vmatpush1.bf16.msra.mxu0 %v384
  %408 = vmatprep.subr.bf16.mxu0 0
  %409 = vmatpush1.bf16.msra.mxu0 %v385
  %410 = vmatprep.subr.bf16.mxu0 0
  %411 = vmatpush1.bf16.msra.mxu0 0
  %412 = vmatprep.subr.bf16.mxu0 0
  %413 = vmatpush1.bf16.msra.mxu0 0
  %414 = vmatprep.subr.bf16.mxu0 0
  %415 = vmatpush1.bf16.msra.mxu0 0
  %416 = vmatprep.subr.bf16.mxu0 0
  %417 = vmatpush1.bf16.msra.mxu0 0
  %418 = vmatprep.subr.bf16.mxu0 0
  %419 = vmatpush1.bf16.msra.mxu0 0
  %420 = vmatprep.subr.bf16.mxu0 0
  %421 = vmatpush1.bf16.msra.mxu0 0
  %422 = vmatprep.subr.bf16.mxu0 0
  %423 = vmatpush1.bf16.msra.mxu0 0
  %424 = vmatprep.subr.bf16.mxu0 0
  %425 = vmatpush1.bf16.msra.mxu0 0
  %426 = vmatprep.mubr.bf16.mxu0 0
  %427 = vmatmul.mubr.bf16.gmra.mrb[0].mxu0 0
  %v428 = vpop.f32.mrb[0].mxu0
  %v429 = vadd.f32 0.0, %v428
  %v430 = vpop.f32.mrb[0].mxu0
  %v431 = vpop.f32.mrb[0].mxu0
  %v432 = vpop.f32.mrb[0].mxu0
  %433 = vdwg.mxu0
  %v434 = vadd.f32 %v345, %v429
  %v435 = vtanh.pop %v434
  %v436 = vsub.f32 0.0, %v435
  %v437 = vmul.f32 %v436, 1.442695
  %v438 = vpow.pop %v437
  %v439 = vadd.f32 %v438, 1.0
  %v440 = vrcp.pop %v439
  %v441 = vmul.f32 1.0, %v440
  %442 = vst [vmem:[%s4] sm:$0xff] %v441
  %v443 = vld [vmem:[#allocation3 + $0x8] sm:$0xff]
  %v444 = vpack.c.bf16 %v435, %v435
  %445 = vmatprep.subr.bf16.mxu0 0
  %446 = vmatpush1.bf16.msra.mxu0 %v378
  %447 = vmatprep.subr.bf16.mxu0 0
  %448 = vmatpush1.bf16.msra.mxu0 %v379
  %449 = vmatprep.subr.bf16.mxu0 0
  %450 = vmatpush1.bf16.msra.mxu0 %v380
  %451 = vmatprep.subr.bf16.mxu0 0
  %452 = vmatpush1.bf16.msra.mxu0 %v381
  %453 = vmatprep.subr.bf16.mxu0 0
  %454 = vmatpush1.bf16.msra.mxu0 %v382
  %455 = vmatprep.subr.bf16.mxu0 0
  %456 = vmatpush1.bf16.msra.mxu0 %v383
  %457 = vmatprep.subr.bf16.mxu0 0
  %458 = vmatpush1.bf16.msra.mxu0 %v384
  %459 = vmatprep.subr.bf16.mxu0 0
  %460 = vmatpush1.bf16.msra.mxu0 %v385
  %461 = vmatprep.subr.bf16.mxu0 0
  %462 = vmatpush1.bf16.msra.mxu0 0
  %463 = vmatprep.subr.bf16.mxu0 0
  %464 = vmatpush1.bf16.msra.mxu0 0
  %465 = vmatprep.subr.bf16.mxu0 0
  %466 = vmatpush1.bf16.msra.mxu0 0
  %467 = vmatprep.subr.bf16.mxu0 0
  %468 = vmatpush1.bf16.msra.mxu0 0
  %469 = vmatprep.subr.bf16.mxu0 0
  %470 = vmatpush1.bf16.msra.mxu0 0
  %471 = vmatprep.subr.bf16.mxu0 0
  %472 = vmatpush1.bf16.msra.mxu0 0
  %473 = vmatprep.subr.bf16.mxu0 0
  %474 = vmatpush1.bf16.msra.mxu0 0
  %475 = vmatprep.subr.bf16.mxu0 0
  %476 = vmatpush1.bf16.msra.mxu0 0
  %477 = vmatprep.mubr.bf16.mxu0 0
  %478 = vmatmul.mubr.bf16.gmra.mrb[0].mxu0 %v444
  %v479 = vpop.f32.mrb[0].mxu0
  %v480 = vadd.f32 0.0, %v479
  %v481 = vpop.f32.mrb[0].mxu0
  %v482 = vpop.f32.mrb[0].mxu0
  %v483 = vpop.f32.mrb[0].mxu0
  %484 = vdwg.mxu0
  %v485 = vadd.f32 %v443, %v480
  %v486 = vtanh.pop %v485
  %v487 = vsub.f32 0.0, %v486
  %v488 = vmul.f32 %v487, 1.442695
  %v489 = vpow.pop %v488
  %v490 = vadd.f32 %v489, 1.0
  %v491 = vrcp.pop %v490
  %v492 = vmul.f32 1.0, %v491
  %s493 = scalar_lea.vmem %s4, 8
  %494 = vst [vmem:[%s493] sm:$0xff] %v492
  %v495 = vld [vmem:[#allocation3 + $0x10] sm:$0xff]
  %v496 = vpack.c.bf16 %v486, %v486
  %497 = vmatprep.subr.bf16.mxu0 0
  %498 = vmatpush1.bf16.msra.mxu0 %v378
  %499 = vmatprep.subr.bf16.mxu0 0
  %500 = vmatpush1.bf16.msra.mxu0 %v379
  %501 = vmatprep.subr.bf16.mxu0 0
  %502 = vmatpush1.bf16.msra.mxu0 %v380
  %503 = vmatprep.subr.bf16.mxu0 0
  %504 = vmatpush1.bf16.msra.mxu0 %v381
  %505 = vmatprep.subr.bf16.mxu0 0
  %506 = vmatpush1.bf16.msra.mxu0 %v382
  %507 = vmatprep.subr.bf16.mxu0 0
  %508 = vmatpush1.bf16.msra.mxu0 %v383
  %509 = vmatprep.subr.bf16.mxu0 0
  %510 = vmatpush1.bf16.msra.mxu0 %v384
  %511 = vmatprep.subr.bf16.mxu0 0
  %512 = vmatpush1.bf16.msra.mxu0 %v385
  %513 = vmatprep.subr.bf16.mxu0 0
  %514 = vmatpush1.bf16.msra.mxu0 0
  %515 = vmatprep.subr.bf16.mxu0 0
  %516 = vmatpush1.bf16.msra.mxu0 0
  %517 = vmatprep.subr.bf16.mxu0 0
  %518 = vmatpush1.bf16.msra.mxu0 0
  %519 = vmatprep.subr.bf16.mxu0 0
  %520 = vmatpush1.bf16.msra.mxu0 0
  %521 = vmatprep.subr.bf16.mxu0 0
  %522 = vmatpush1.bf16.msra.mxu0 0
  %523 = vmatprep.subr.bf16.mxu0 0
  %524 = vmatpush1.bf16.msra.mxu0 0
  %525 = vmatprep.subr.bf16.mxu0 0
  %526 = vmatpush1.bf16.msra.mxu0 0
  %527 = vmatprep.subr.bf16.mxu0 0
  %528 = vmatpush1.bf16.msra.mxu0 0
  %529 = vmatprep.mubr.bf16.mxu0 0
  %530 = vmatmul.mubr.bf16.gmra.mrb[0].mxu0 %v496
  %v531 = vpop.f32.mrb[0].mxu0
  %v532 = vadd.f32 0.0, %v531
  %v533 = vpop.f32.mrb[0].mxu0
  %v534 = vpop.f32.mrb[0].mxu0
  %v535 = vpop.f32.mrb[0].mxu0
  %536 = vdwg.mxu0
  %v537 = vadd.f32 %v495, %v532
  %v538 = vtanh.pop %v537
  %v539 = vsub.f32 0.0, %v538
  %v540 = vmul.f32 %v539, 1.442695
  %v541 = vpow.pop %v540
  %v542 = vadd.f32 %v541, 1.0
  %v543 = vrcp.pop %v542
  %v544 = vmul.f32 1.0, %v543
  %s545 = scalar_lea.vmem %s4, 16
  %546 = vst [vmem:[%s545] sm:$0xff] %v544
  %v547 = vld [vmem:[#allocation3 + $0x18] sm:$0xff]
  %v548 = vpack.c.bf16 %v538, %v538
  %549 = vmatprep.subr.bf16.mxu0 0
  %550 = vmatpush1.bf16.msra.mxu0 %v378
  %551 = vmatprep.subr.bf16.mxu0 0
  %552 = vmatpush1.bf16.msra.mxu0 %v379
  %553 = vmatprep.subr.bf16.mxu0 0
  %554 = vmatpush1.bf16.msra.mxu0 %v380
  %555 = vmatprep.subr.bf16.mxu0 0
  %556 = vmatpush1.bf16.msra.mxu0 %v381
  %557 = vmatprep.subr.bf16.mxu0 0
  %558 = vmatpush1.bf16.msra.mxu0 %v382
  %559 = vmatprep.subr.bf16.mxu0 0
  %560 = vmatpush1.bf16.msra.mxu0 %v383
  %561 = vmatprep.subr.bf16.mxu0 0
  %562 = vmatpush1.bf16.msra.mxu0 %v384
  %563 = vmatprep.subr.bf16.mxu0 0
  %564 = vmatpush1.bf16.msra.mxu0 %v385
  %565 = vmatprep.subr.bf16.mxu0 0
  %566 = vmatpush1.bf16.msra.mxu0 0
  %567 = vmatprep.subr.bf16.mxu0 0
  %568 = vmatpush1.bf16.msra.mxu0 0
  %569 = vmatprep.subr.bf16.mxu0 0
  %570 = vmatpush1.bf16.msra.mxu0 0
  %571 = vmatprep.subr.bf16.mxu0 0
  %572 = vmatpush1.bf16.msra.mxu0 0
  %573 = vmatprep.subr.bf16.mxu0 0
  %574 = vmatpush1.bf16.msra.mxu0 0
  %575 = vmatprep.subr.bf16.mxu0 0
  %576 = vmatpush1.bf16.msra.mxu0 0
  %577 = vmatprep.subr.bf16.mxu0 0
  %578 = vmatpush1.bf16.msra.mxu0 0
  %579 = vmatprep.subr.bf16.mxu0 0
  %580 = vmatpush1.bf16.msra.mxu0 0
  %581 = vmatprep.mubr.bf16.mxu0 0
  %582 = vmatmul.mubr.bf16.gmra.mrb[0].mxu0 %v548
  %v583 = vpop.f32.mrb[0].mxu0
  %v584 = vadd.f32 0.0, %v583
  %v585 = vpop.f32.mrb[0].mxu0
  %v586 = vpop.f32.mrb[0].mxu0
  %v587 = vpop.f32.mrb[0].mxu0
  %588 = vdwg.mxu0
  %v589 = vadd.f32 %v547, %v584
  %v590 = vtanh.pop %v589
  %v591 = vsub.f32 0.0, %v590
  %v592 = vmul.f32 %v591, 1.442695
  %v593 = vpow.pop %v592
  %v594 = vadd.f32 %v593, 1.0
  %v595 = vrcp.pop %v594
  %v596 = vmul.f32 1.0, %v595
  %s597 = scalar_lea.vmem %s4, 24
  %598 = vst [vmem:[%s597] sm:$0xff] %v596
  %v599 = vld [vmem:[#allocation3 + $0x20] sm:$0xff]
  %v600 = vpack.c.bf16 %v590, %v590
  %601 = vmatprep.subr.bf16.mxu0 0
  %602 = vmatpush1.bf16.msra.mxu0 %v378
  %603 = vmatprep.subr.bf16.mxu0 0
  %604 = vmatpush1.bf16.msra.mxu0 %v379
  %605 = vmatprep.subr.bf16.mxu0 0
  %606 = vmatpush1.bf16.msra.mxu0 %v380
  %607 = vmatprep.subr.bf16.mxu0 0
  %608 = vmatpush1.bf16.msra.mxu0 %v381
  %609 = vmatprep.subr.bf16.mxu0 0
  %610 = vmatpush1.bf16.msra.mxu0 %v382
  %611 = vmatprep.subr.bf16.mxu0 0
  %612 = vmatpush1.bf16.msra.mxu0 %v383
  %613 = vmatprep.subr.bf16.mxu0 0
  %614 = vmatpush1.bf16.msra.mxu0 %v384
  %615 = vmatprep.subr.bf16.mxu0 0
  %616 = vmatpush1.bf16.msra.mxu0 %v385
  %617 = vmatprep.subr.bf16.mxu0 0
  %618 = vmatpush1.bf16.msra.mxu0 0
  %619 = vmatprep.subr.bf16.mxu0 0
  %620 = vmatpush1.bf16.msra.mxu0 0
  %621 = vmatprep.subr.bf16.mxu0 0
  %622 = vmatpush1.bf16.msra.mxu0 0
  %623 = vmatprep.subr.bf16.mxu0 0
  %624 = vmatpush1.bf16.msra.mxu0 0
  %625 = vmatprep.subr.bf16.mxu0 0
  %626 = vmatpush1.bf16.msra.mxu0 0
  %627 = vmatprep.subr.bf16.mxu0 0
  %628 = vmatpush1.bf16.msra.mxu0 0
  %629 = vmatprep.subr.bf16.mxu0 0
  %630 = vmatpush1.bf16.msra.mxu0 0
  %631 = vmatprep.subr.bf16.mxu0 0
  %632 = vmatpush1.bf16.msra.mxu0 0
  %633 = vmatprep.mubr.bf16.mxu0 0
  %634 = vmatmul.mubr.bf16.gmra.mrb[0].mxu0 %v600
  %v635 = vpop.f32.mrb[0].mxu0
  %v636 = vadd.f32 0.0, %v635
  %v637 = vpop.f32.mrb[0].mxu0
  %v638 = vpop.f32.mrb[0].mxu0
  %v639 = vpop.f32.mrb[0].mxu0
  %640 = vdwg.mxu0
  %v641 = vadd.f32 %v599, %v636
  %v642 = vtanh.pop %v641
  %v643 = vsub.f32 0.0, %v642
  %v644 = vmul.f32 %v643, 1.442695
  %v645 = vpow.pop %v644
  %v646 = vadd.f32 %v645, 1.0
  %v647 = vrcp.pop %v646
  %v648 = vmul.f32 1.0, %v647
  %s649 = scalar_lea.vmem %s4, 32
  %650 = vst [vmem:[%s649] sm:$0xff] %v648
  %v651 = vld [vmem:[#allocation3 + $0x28] sm:$0xff]
  %v652 = vpack.c.bf16 %v642, %v642
  %653 = vmatprep.subr.bf16.mxu0 0
  %654 = vmatpush1.bf16.msra.mxu0 %v378
  %655 = vmatprep.subr.bf16.mxu0 0
  %656 = vmatpush1.bf16.msra.mxu0 %v379
  %657 = vmatprep.subr.bf16.mxu0 0
  %658 = vmatpush1.bf16.msra.mxu0 %v380
  %659 = vmatprep.subr.bf16.mxu0 0
  %660 = vmatpush1.bf16.msra.mxu0 %v381
  %661 = vmatprep.subr.bf16.mxu0 0
  %662 = vmatpush1.bf16.msra.mxu0 %v382
  %663 = vmatprep.subr.bf16.mxu0 0
  %664 = vmatpush1.bf16.msra.mxu0 %v383
  %665 = vmatprep.subr.bf16.mxu0 0
  %666 = vmatpush1.bf16.msra.mxu0 %v384
  %667 = vmatprep.subr.bf16.mxu0 0
  %668 = vmatpush1.bf16.msra.mxu0 %v385
  %669 = vmatprep.subr.bf16.mxu0 0
  %670 = vmatpush1.bf16.msra.mxu0 0
  %671 = vmatprep.subr.bf16.mxu0 0
  %672 = vmatpush1.bf16.msra.mxu0 0
  %673 = vmatprep.subr.bf16.mxu0 0
  %674 = vmatpush1.bf16.msra.mxu0 0
  %675 = vmatprep.subr.bf16.mxu0 0
  %676 = vmatpush1.bf16.msra.mxu0 0
  %677 = vmatprep.subr.bf16.mxu0 0
  %678 = vmatpush1.bf16.msra.mxu0 0
  %679 = vmatprep.subr.bf16.mxu0 0
  %680 = vmatpush1.bf16.msra.mxu0 0
  %681 = vmatprep.subr.bf16.mxu0 0
  %682 = vmatpush1.bf16.msra.mxu0 0
  %683 = vmatprep.subr.bf16.mxu0 0
  %684 = vmatpush1.bf16.msra.mxu0 0
  %685 = vmatprep.mubr.bf16.mxu0 0
  %686 = vmatmul.mubr.bf16.gmra.mrb[0].mxu0 %v652
  %v687 = vpop.f32.mrb[0].mxu0
  %v688 = vadd.f32 0.0, %v687
  %v689 = vpop.f32.mrb[0].mxu0
  %v690 = vpop.f32.mrb[0].mxu0
  %v691 = vpop.f32.mrb[0].mxu0
  %692 = vdwg.mxu0
  %v693 = vadd.f32 %v651, %v688
  %v694 = vtanh.pop %v693
  %v695 = vsub.f32 0.0, %v694
  %v696 = vmul.f32 %v695, 1.442695
  %v697 = vpow.pop %v696
  %v698 = vadd.f32 %v697, 1.0
  %v699 = vrcp.pop %v698
  %v700 = vmul.f32 1.0, %v699
  %s701 = scalar_lea.vmem %s4, 40
  %702 = vst [vmem:[%s701] sm:$0xff] %v700
  %v703 = vld [vmem:[#allocation3 + $0x30] sm:$0xff]
  %v704 = vpack.c.bf16 %v694, %v694
  %705 = vmatprep.subr.bf16.mxu0 0
  %706 = vmatpush1.bf16.msra.mxu0 %v378
  %707 = vmatprep.subr.bf16.mxu0 0
  %708 = vmatpush1.bf16.msra.mxu0 %v379
  %709 = vmatprep.subr.bf16.mxu0 0
  %710 = vmatpush1.bf16.msra.mxu0 %v380
  %711 = vmatprep.subr.bf16.mxu0 0
  %712 = vmatpush1.bf16.msra.mxu0 %v381
  %713 = vmatprep.subr.bf16.mxu0 0
  %714 = vmatpush1.bf16.msra.mxu0 %v382
  %715 = vmatprep.subr.bf16.mxu0 0
  %716 = vmatpush1.bf16.msra.mxu0 %v383
  %717 = vmatprep.subr.bf16.mxu0 0
  %718 = vmatpush1.bf16.msra.mxu0 %v384
  %719 = vmatprep.subr.bf16.mxu0 0
  %720 = vmatpush1.bf16.msra.mxu0 %v385
  %721 = vmatprep.subr.bf16.mxu0 0
  %722 = vmatpush1.bf16.msra.mxu0 0
  %723 = vmatprep.subr.bf16.mxu0 0
  %724 = vmatpush1.bf16.msra.mxu0 0
  %725 = vmatprep.subr.bf16.mxu0 0
  %726 = vmatpush1.bf16.msra.mxu0 0
  %727 = vmatprep.subr.bf16.mxu0 0
  %728 = vmatpush1.bf16.msra.mxu0 0
  %729 = vmatprep.subr.bf16.mxu0 0
  %730 = vmatpush1.bf16.msra.mxu0 0
  %731 = vmatprep.subr.bf16.mxu0 0
  %732 = vmatpush1.bf16.msra.mxu0 0
  %733 = vmatprep.subr.bf16.mxu0 0
  %734 = vmatpush1.bf16.msra.mxu0 0
  %735 = vmatprep.subr.bf16.mxu0 0
  %736 = vmatpush1.bf16.msra.mxu0 0
  %737 = vmatprep.mubr.bf16.mxu0 0
  %738 = vmatmul.mubr.bf16.gmra.mrb[0].mxu0 %v704
  %v739 = vpop.f32.mrb[0].mxu0
  %v740 = vadd.f32 0.0, %v739
  %v741 = vpop.f32.mrb[0].mxu0
  %v742 = vpop.f32.mrb[0].mxu0
  %v743 = vpop.f32.mrb[0].mxu0
  %744 = vdwg.mxu0
  %v745 = vadd.f32 %v703, %v740
  %v746 = vtanh.pop %v745
  %v747 = vsub.f32 0.0, %v746
  %v748 = vmul.f32 %v747, 1.442695
  %v749 = vpow.pop %v748
  %v750 = vadd.f32 %v749, 1.0
  %v751 = vrcp.pop %v750
  %v752 = vmul.f32 1.0, %v751
  %s753 = scalar_lea.vmem %s4, 48
  %754 = vst [vmem:[%s753] sm:$0xff] %v752
  %v755 = vld [vmem:[#allocation3 + $0x38] sm:$0xff]
  %v756 = vpack.c.bf16 %v746, %v746
  %757 = vmatprep.subr.bf16.mxu0 0
  %758 = vmatpush1.bf16.msra.mxu0 %v378
  %759 = vmatprep.subr.bf16.mxu0 0
  %760 = vmatpush1.bf16.msra.mxu0 %v379
  %761 = vmatprep.subr.bf16.mxu0 0
  %762 = vmatpush1.bf16.msra.mxu0 %v380
  %763 = vmatprep.subr.bf16.mxu0 0
  %764 = vmatpush1.bf16.msra.mxu0 %v381
  %765 = vmatprep.subr.bf16.mxu0 0
  %766 = vmatpush1.bf16.msra.mxu0 %v382
  %767 = vmatprep.subr.bf16.mxu0 0
  %768 = vmatpush1.bf16.msra.mxu0 %v383
  %769 = vmatprep.subr.bf16.mxu0 0
  %770 = vmatpush1.bf16.msra.mxu0 %v384
  %771 = vmatprep.subr.bf16.mxu0 0
  %772 = vmatpush1.bf16.msra.mxu0 %v385
  %773 = vmatprep.subr.bf16.mxu0 0
  %774 = vmatpush1.bf16.msra.mxu0 0
  %775 = vmatprep.subr.bf16.mxu0 0
  %776 = vmatpush1.bf16.msra.mxu0 0
  %777 = vmatprep.subr.bf16.mxu0 0
  %778 = vmatpush1.bf16.msra.mxu0 0
  %779 = vmatprep.subr.bf16.mxu0 0
  %780 = vmatpush1.bf16.msra.mxu0 0
  %781 = vmatprep.subr.bf16.mxu0 0
  %782 = vmatpush1.bf16.msra.mxu0 0
  %783 = vmatprep.subr.bf16.mxu0 0
  %784 = vmatpush1.bf16.msra.mxu0 0
  %785 = vmatprep.subr.bf16.mxu0 0
  %786 = vmatpush1.bf16.msra.mxu0 0
  %787 = vmatprep.subr.bf16.mxu0 0
  %788 = vmatpush1.bf16.msra.mxu0 0
  %789 = vmatprep.mubr.bf16.mxu0 0
  %790 = vmatmul.mubr.bf16.gmra.mrb[0].mxu0 %v756
  %v791 = vpop.f32.mrb[0].mxu0
  %v792 = vadd.f32 0.0, %v791
  %v793 = vpop.f32.mrb[0].mxu0
  %v794 = vpop.f32.mrb[0].mxu0
  %v795 = vpop.f32.mrb[0].mxu0
  %796 = vdwg.mxu0
  %v797 = vadd.f32 %v755, %v792
  %v798 = vtanh.pop %v797
  %v799 = vsub.f32 0.0, %v798
  %v800 = vmul.f32 %v799, 1.442695
  %v801 = vpow.pop %v800
  %v802 = vadd.f32 %v801, 1.0
  %v803 = vrcp.pop %v802
  %v804 = vmul.f32 1.0, %v803
  %s805 = scalar_lea.vmem %s4, 56
  %806 = vst [vmem:[%s805] sm:$0xff] %v804
  // Predicated region
  $region18: #{rnn_bidireccional_forward.5} parent=0 // pred_check
    _
  $region19: #{rnn_bidireccional_forward.5} parent=0 // pred_check_branch
    %808 = sbr.rel (0) target = $region21
  $region20: #{rnn_bidireccional_forward.5} parent=0 // pred_region
    _
  $region21: #{rnn_bidireccional_forward.5} parent=0 // pred_fallthru
    _
  // Predicated region
  $region22: #{rnn_bidireccional_forward.5} parent=0 // pred_check
    _
  $region23: #{rnn_bidireccional_forward.5} parent=0 // pred_check_branch
    %810 = sbr.rel (0) target = $region25
  $region24: #{rnn_bidireccional_forward.5} parent=0 // pred_region
    _
  $region25: #{rnn_bidireccional_forward.5} parent=0 // pred_fallthru
    _

// kernel: rnn_bidireccional_forward.3
$region0: #{rnn_bidireccional_forward.3}
  #allocation0 [shape = 'u32[]', space=smem, size = 0x4, offset = 0x4, fixed_abs, tag = 'smem constant byte address 0x4 - core index']
  #allocation1 [shape = 'u32[144,128]{1,0:T(1,128)}', space=vmem, size = 0x12000, scoped, tag = 'internal scratch']
  #allocation2 [shape = 'bf16[64,128]{1,0:T(16,128)(2,1)}', space=vmem, size = 0x4000, scoped, tag = 'scratch operand']
  #allocation3 [shape = 'f32[64,256]{1,0:T(8,128)}', space=vmem, size = 0x10000, scoped, tag = 'scratch operand']
  %s0 = inlined_call_operand.vmem [shape: bf16[8,8,128], index: 0, kind: input, shape index: {}]
  %s1 = inlined_call_operand.vmem [shape: bf16[128,256], index: 1, kind: input, shape index: {}]
  %s2 = inlined_call_operand.vmem [shape: bf16[128,128], index: 2, kind: input, shape index: {}]
  %s3 = inlined_call_operand.vmem [shape: bf16[128,128], index: 3, kind: input, shape index: {}]
  %s4 = inlined_call_operand.vmem [shape: f32[1,256], index: 4, kind: input, shape index: {}]
  %s5 = inlined_call_operand.vmem [shape: bf16[8,8,256], index: 5, kind: output, shape index: {}]
  %s6 = sld [smem:[#allocation0]]
  $region30: #{rnn_bidireccional_forward.3} parent=0
    _
  %s8 = ssub.s32 1, %s6
  %s9 = scalar_select 0, %s8, %s6
  // Predicated region
  $region2: #{rnn_bidireccional_forward.3} parent=0 // pred_check
    _
  $region3: #{rnn_bidireccional_forward.3} parent=0 // pred_check_branch
    %11 = sbr.rel (0) target = $region5
  $region4: #{rnn_bidireccional_forward.3} parent=0 // pred_region
    _
  $region5: #{rnn_bidireccional_forward.3} parent=0 // pred_fallthru
    _
  // Predicated region
  $region6: #{rnn_bidireccional_forward.3} parent=0 // pred_check
    _
  $region7: #{rnn_bidireccional_forward.3} parent=0 // pred_check_branch
    %13 = sbr.rel (0) target = $region9
  $region8: #{rnn_bidireccional_forward.3} parent=0 // pred_region
    _
  $region9: #{rnn_bidireccional_forward.3} parent=0 // pred_fallthru
    _
  // Predicated region
  $region10: #{rnn_bidireccional_forward.3} parent=0 // pred_check
    _
  $region11: #{rnn_bidireccional_forward.3} parent=0 // pred_check_branch
    %15 = sbr.rel (0) target = $region13
  $region12: #{rnn_bidireccional_forward.3} parent=0 // pred_region
    _
  $region13: #{rnn_bidireccional_forward.3} parent=0 // pred_fallthru
    _
  // Predicated region
  $region14: #{rnn_bidireccional_forward.3} parent=0 // pred_check
    _
  $region15: #{rnn_bidireccional_forward.3} parent=0 // pred_check_branch
    %17 = sbr.rel (0) target = $region17
  $region16: #{rnn_bidireccional_forward.3} parent=0 // pred_region
    _
  $region17: #{rnn_bidireccional_forward.3} parent=0 // pred_fallthru
    _
  // Predicated region
  $region18: #{rnn_bidireccional_forward.3} parent=0 // pred_check
    _
  $region19: #{rnn_bidireccional_forward.3} parent=0 // pred_check_branch
    %19 = sbr.rel (0) target = $region21
  $region20: #{rnn_bidireccional_forward.3} parent=0 // pred_region
    _
  $region21: #{rnn_bidireccional_forward.3} parent=0 // pred_fallthru
    _
  %v21 = vld [vmem:[%s0] sm:$0xf]
  %22 = vst [vmem:[#allocation2] sm:$0xf] %v21
  %s23 = scalar_lea.vmem %s0, 4
  %v24 = vld [vmem:[%s23] sm:$0xf]
  %v26 = vunpack.c.l.b16 %v24
  %v27 = vpack.c.b16 %v26, %v26
  %29 = vst [vmem:[#allocation2] sm:$0xf0] %v27
  %s30 = scalar_lea.vmem %s0, 8
  %v31 = vld [vmem:[%s30] sm:$0xf]
  %32 = vst [vmem:[#allocation2 + $0x8] sm:$0xf] %v31
  %s33 = scalar_lea.vmem %s0, 12
  %v34 = vld [vmem:[%s33] sm:$0xf]
  %v36 = vunpack.c.l.b16 %v34
  %v37 = vpack.c.b16 %v36, %v36
  %39 = vst [vmem:[#allocation2 + $0x8] sm:$0xf0] %v37
  %s40 = scalar_lea.vmem %s0, 16
  %v41 = vld [vmem:[%s40] sm:$0xf]
  %42 = vst [vmem:[#allocation2 + $0x10] sm:$0xf] %v41
  %s43 = scalar_lea.vmem %s0, 20
  %v44 = vld [vmem:[%s43] sm:$0xf]
  %v46 = vunpack.c.l.b16 %v44
  %v47 = vpack.c.b16 %v46, %v46
  %49 = vst [vmem:[#allocation2 + $0x10] sm:$0xf0] %v47
  %s50 = scalar_lea.vmem %s0, 24
  %v51 = vld [vmem:[%s50] sm:$0xf]
  %52 = vst [vmem:[#allocation2 + $0x18] sm:$0xf] %v51
  %s53 = scalar_lea.vmem %s0, 28
  %v54 = vld [vmem:[%s53] sm:$0xf]
  %v56 = vunpack.c.l.b16 %v54
  %v57 = vpack.c.b16 %v56, %v56
  %59 = vst [vmem:[#allocation2 + $0x18] sm:$0xf0] %v57
  %v60 = vld [vmem:[#allocation2] sm:$0xff]
  %v61 = vld [vmem:[#allocation2 + $0x8] sm:$0xff]
  %v62 = vld [vmem:[#allocation2 + $0x10] sm:$0xff]
  %v63 = vld [vmem:[#allocation2 + $0x18] sm:$0xff]
  %v64 = vld [vmem:[%s1] sm:$0xff]
  %v65 = vld [vmem:[%s1 + $0x8] sm:$0xff]
  %v66 = vld [vmem:[%s1 + $0x10] sm:$0xff]
  %v67 = vld [vmem:[%s1 + $0x18] sm:$0xff]
  %v68 = vld [vmem:[%s1 + $0x20] sm:$0xff]
  %v69 = vld [vmem:[%s1 + $0x28] sm:$0xff]
  %v70 = vld [vmem:[%s1 + $0x30] sm:$0xff]
  %v71 = vld [vmem:[%s1 + $0x38] sm:$0xff]
  %v72 = vld [vmem:[%s1 + $0x40] sm:$0xff]
  %v73 = vld [vmem:[%s1 + $0x48] sm:$0xff]
  %v74 = vld [vmem:[%s1 + $0x50] sm:$0xff]
  %v75 = vld [vmem:[%s1 + $0x58] sm:$0xff]
  %v76 = vld [vmem:[%s1 + $0x60] sm:$0xff]
  %v77 = vld [vmem:[%s1 + $0x68] sm:$0xff]
  %v78 = vld [vmem:[%s1 + $0x70] sm:$0xff]
  %v79 = vld [vmem:[%s1 + $0x78] sm:$0xff]
  %v80 = vld [vmem:[%s4] sm:$0x3]
  %v82 = vlaneseq
  %v83 = vshrl.u32 %v82, 7
  %v84 = vsub.s32 0, %v83
  %v85 = vrot.slane %v80, %v84
  %v86 = vlaneseq
  %v87 = vshrl.u32 %v86, 7
  %v88 = vsub.s32 1, %v87
  %v89 = vrot.slane %v80, %v88
  %v108 = vunpack.c.l.b16 %v64
  %v109 = vunpack.c.h.b16 %v64
  %v110 = vunpack.c.l.b16 %v65
  %v111 = vunpack.c.h.b16 %v65
  %v112 = vunpack.c.l.b16 %v66
  %v113 = vunpack.c.h.b16 %v66
  %v114 = vunpack.c.l.b16 %v67
  %v115 = vunpack.c.h.b16 %v67
  %v116 = vunpack.c.l.b16 %v68
  %v117 = vunpack.c.h.b16 %v68
  %v118 = vunpack.c.l.b16 %v69
  %v119 = vunpack.c.h.b16 %v69
  %v120 = vunpack.c.l.b16 %v70
  %v121 = vunpack.c.h.b16 %v70
  %v122 = vunpack.c.l.b16 %v71
  %v123 = vunpack.c.h.b16 %v71
  %v124 = vunpack.c.l.b16 %v72
  %v125 = vunpack.c.h.b16 %v72
  %v126 = vunpack.c.l.b16 %v73
  %v127 = vunpack.c.h.b16 %v73
  %v128 = vunpack.c.l.b16 %v74
  %v129 = vunpack.c.h.b16 %v74
  %v130 = vunpack.c.l.b16 %v75
  %v131 = vunpack.c.h.b16 %v75
  %v132 = vunpack.c.l.b16 %v76
  %v133 = vunpack.c.h.b16 %v76
  %v134 = vunpack.c.l.b16 %v77
  %v135 = vunpack.c.h.b16 %v77
  %v136 = vunpack.c.l.b16 %v78
  %v137 = vunpack.c.h.b16 %v78
  %v138 = vunpack.c.l.b16 %v79
  %v139 = vunpack.c.h.b16 %v79
  %v140 = vpack.c.b16 %v110, %v108
  %v141 = vpack.c.b16 %v111, %v109
  %v142 = vpack.c.b16 %v114, %v112
  %v143 = vpack.c.b16 %v115, %v113
  %v144 = vpack.c.b16 %v118, %v116
  %v145 = vpack.c.b16 %v119, %v117
  %v146 = vpack.c.b16 %v122, %v120
  %v147 = vpack.c.b16 %v123, %v121
  %v148 = vpack.c.b16 %v126, %v124
  %v149 = vpack.c.b16 %v127, %v125
  %v150 = vpack.c.b16 %v130, %v128
  %v151 = vpack.c.b16 %v131, %v129
  %v152 = vpack.c.b16 %v134, %v132
  %v153 = vpack.c.b16 %v135, %v133
  %v154 = vpack.c.b16 %v138, %v136
  %v155 = vpack.c.b16 %v139, %v137
  %172 = vmatprep.subr.bf16.mxu0 %v141
  %173 = vmatpush1.bf16.msra.mxu0 %v140
  %174 = vmatprep.subr.bf16.mxu0 %v143
  %175 = vmatpush1.bf16.msra.mxu0 %v142
  %176 = vmatprep.subr.bf16.mxu0 %v145
  %177 = vmatpush1.bf16.msra.mxu0 %v144
  %178 = vmatprep.subr.bf16.mxu0 %v147
  %179 = vmatpush1.bf16.msra.mxu0 %v146
  %180 = vmatprep.subr.bf16.mxu0 %v149
  %181 = vmatpush1.bf16.msra.mxu0 %v148
  %182 = vmatprep.subr.bf16.mxu0 %v151
  %183 = vmatpush1.bf16.msra.mxu0 %v150
  %184 = vmatprep.subr.bf16.mxu0 %v153
  %185 = vmatpush1.bf16.msra.mxu0 %v152
  %186 = vmatprep.subr.bf16.mxu0 %v155
  %187 = vmatpush1.bf16.msra.mxu0 %v154
  %188 = vmatprep.subr.bf16.mxu0 0
  %189 = vmatpush1.bf16.msra.mxu0 0
  %190 = vmatprep.subr.bf16.mxu0 0
  %191 = vmatpush1.bf16.msra.mxu0 0
  %192 = vmatprep.subr.bf16.mxu0 0
  %193 = vmatpush1.bf16.msra.mxu0 0
  %194 = vmatprep.subr.bf16.mxu0 0
  %195 = vmatpush1.bf16.msra.mxu0 0
  %196 = vmatprep.subr.bf16.mxu0 0
  %197 = vmatpush1.bf16.msra.mxu0 0
  %198 = vmatprep.subr.bf16.mxu0 0
  %199 = vmatpush1.bf16.msra.mxu0 0
  %200 = vmatprep.subr.bf16.mxu0 0
  %201 = vmatpush1.bf16.msra.mxu0 0
  %202 = vmatprep.subr.bf16.mxu0 0
  %203 = vmatpush1.bf16.msra.mxu0 0
  %204 = vmatprep.mubr.bf16.mxu0 0
  %205 = vmatmul.mubr.bf16.gmra.mrb[0].mxu0 %v60
  %v206 = vpop.f32.mrb[0].mxu0
  %v207 = vadd.f32 %v85, %v206
  %v208 = vpop.f32.mrb[0].mxu0
  %v209 = vadd.f32 %v89, %v208
  %v210 = vpop.f32.mrb[0].mxu0
  %v211 = vadd.f32 %v85, %v210
  %v212 = vpop.f32.mrb[0].mxu0
  %v213 = vadd.f32 %v89, %v212
  %214 = vmatprep.mubr.bf16.mxu0 0
  %215 = vmatmul.mubr.bf16.gmra.mrb[0].mxu0 %v61
  %v216 = vpop.f32.mrb[0].mxu0
  %v217 = vadd.f32 %v85, %v216
  %v218 = vpop.f32.mrb[0].mxu0
  %v219 = vadd.f32 %v89, %v218
  %v220 = vpop.f32.mrb[0].mxu0
  %v221 = vadd.f32 %v85, %v220
  %v222 = vpop.f32.mrb[0].mxu0
  %v223 = vadd.f32 %v89, %v222
  %224 = vmatprep.mubr.bf16.mxu0 0
  %225 = vmatmul.mubr.bf16.gmra.mrb[0].mxu0 %v62
  %v226 = vpop.f32.mrb[0].mxu0
  %v227 = vadd.f32 %v85, %v226
  %v228 = vpop.f32.mrb[0].mxu0
  %v229 = vadd.f32 %v89, %v228
  %v230 = vpop.f32.mrb[0].mxu0
  %v231 = vadd.f32 %v85, %v230
  %v232 = vpop.f32.mrb[0].mxu0
  %v233 = vadd.f32 %v89, %v232
  %234 = vmatprep.mubr.bf16.mxu0 0
  %235 = vmatmul.mubr.bf16.gmra.mrb[0].mxu0 %v63
  %v236 = vpop.f32.mrb[0].mxu0
  %v237 = vadd.f32 %v85, %v236
  %v238 = vpop.f32.mrb[0].mxu0
  %v239 = vadd.f32 %v89, %v238
  %v240 = vpop.f32.mrb[0].mxu0
  %v241 = vadd.f32 %v85, %v240
  %v242 = vpop.f32.mrb[0].mxu0
  %v243 = vadd.f32 %v89, %v242
  %244 = vdwg.mxu0
  %245 = vst [vmem:[#allocation3] sm:$0xff] %v207
  %246 = vst [vmem:[#allocation3 + $0x8] sm:$0xff] %v209
  %247 = vst [vmem:[#allocation3 + $0x10] sm:$0xff] %v211
  %248 = vst [vmem:[#allocation3 + $0x18] sm:$0xff] %v213
  %249 = vst [vmem:[#allocation3 + $0x20] sm:$0xff] %v217
  %250 = vst [vmem:[#allocation3 + $0x28] sm:$0xff] %v219
  %251 = vst [vmem:[#allocation3 + $0x30] sm:$0xff] %v221
  %252 = vst [vmem:[#allocation3 + $0x38] sm:$0xff] %v223
  %253 = vst [vmem:[#allocation3 + $0x40] sm:$0xff] %v227
  %254 = vst [vmem:[#allocation3 + $0x48] sm:$0xff] %v229
  %255 = vst [vmem:[#allocation3 + $0x50] sm:$0xff] %v231
  %256 = vst [vmem:[#allocation3 + $0x58] sm:$0xff] %v233
  %257 = vst [vmem:[#allocation3 + $0x60] sm:$0xff] %v237
  %258 = vst [vmem:[#allocation3 + $0x68] sm:$0xff] %v239
  %259 = vst [vmem:[#allocation3 + $0x70] sm:$0xff] %v241
  %260 = vst [vmem:[#allocation3 + $0x78] sm:$0xff] %v243
  %v261 = vld [vmem:[%s2] sm:$0xf]
  %v262 = vld [vmem:[%s2 + $0x4] sm:$0xf]
  %v263 = vld [vmem:[%s2 + $0x8] sm:$0xf]
  %v264 = vld [vmem:[%s2 + $0xc] sm:$0xf]
  %v265 = vld [vmem:[%s2 + $0x10] sm:$0xf]
  %v266 = vld [vmem:[%s2 + $0x14] sm:$0xf]
  %v267 = vld [vmem:[%s2 + $0x18] sm:$0xf]
  %v268 = vld [vmem:[%s2 + $0x1c] sm:$0xf]
  %v269 = vld [vmem:[%s2 + $0x20] sm:$0xf]
  %v270 = vld [vmem:[%s2 + $0x24] sm:$0xf]
  %v271 = vld [vmem:[%s2 + $0x28] sm:$0xf]
  %v272 = vld [vmem:[%s2 + $0x2c] sm:$0xf]
  %v273 = vld [vmem:[%s2 + $0x30] sm:$0xf]
  %v274 = vld [vmem:[%s2 + $0x34] sm:$0xf]
  %v275 = vld [vmem:[%s2 + $0x38] sm:$0xf]
  %v276 = vld [vmem:[%s2 + $0x3c] sm:$0xf]
  %v277 = vld [vmem:[%s3] sm:$0xf]
  %v278 = vld [vmem:[%s3 + $0x4] sm:$0xf]
  %v279 = vld [vmem:[%s3 + $0x8] sm:$0xf]
  %v280 = vld [vmem:[%s3 + $0xc] sm:$0xf]
  %v281 = vld [vmem:[%s3 + $0x10] sm:$0xf]
  %v282 = vld [vmem:[%s3 + $0x14] sm:$0xf]
  %v283 = vld [vmem:[%s3 + $0x18] sm:$0xf]
  %v284 = vld [vmem:[%s3 + $0x1c] sm:$0xf]
  %v285 = vld [vmem:[%s3 + $0x20] sm:$0xf]
  %v286 = vld [vmem:[%s3 + $0x24] sm:$0xf]
  %v287 = vld [vmem:[%s3 + $0x28] sm:$0xf]
  %v288 = vld [vmem:[%s3 + $0x2c] sm:$0xf]
  %v289 = vld [vmem:[%s3 + $0x30] sm:$0xf]
  %v290 = vld [vmem:[%s3 + $0x34] sm:$0xf]
  %v291 = vld [vmem:[%s3 + $0x38] sm:$0xf]
  %v292 = vld [vmem:[%s3 + $0x3c] sm:$0xf]
  %v293 = vld [vmem:[#allocation3] sm:$0xff]
  %v310 = vunpack.c.l.b16 %v261
  %v311 = vunpack.c.l.b16 %v262
  %v312 = vunpack.c.l.b16 %v263
  %v313 = vunpack.c.l.b16 %v264
  %v314 = vunpack.c.l.b16 %v265
  %v315 = vunpack.c.l.b16 %v266
  %v316 = vunpack.c.l.b16 %v267
  %v317 = vunpack.c.l.b16 %v268
  %v318 = vunpack.c.l.b16 %v269
  %v319 = vunpack.c.l.b16 %v270
  %v320 = vunpack.c.l.b16 %v271
  %v321 = vunpack.c.l.b16 %v272
  %v322 = vunpack.c.l.b16 %v273
  %v323 = vunpack.c.l.b16 %v274
  %v324 = vunpack.c.l.b16 %v275
  %v325 = vunpack.c.l.b16 %v276
  %v326 = vpack.c.b16 %v311, %v310
  %v327 = vpack.c.b16 %v313, %v312
  %v328 = vpack.c.b16 %v315, %v314
  %v329 = vpack.c.b16 %v317, %v316
  %v330 = vpack.c.b16 %v319, %v318
  %v331 = vpack.c.b16 %v321, %v320
  %v332 = vpack.c.b16 %v323, %v322
  %v333 = vpack.c.b16 %v325, %v324
  %342 = vmatprep.subr.bf16.mxu0 0
  %343 = vmatpush1.bf16.msra.mxu0 %v326
  %344 = vmatprep.subr.bf16.mxu0 0
  %345 = vmatpush1.bf16.msra.mxu0 %v327
  %346 = vmatprep.subr.bf16.mxu0 0
  %347 = vmatpush1.bf16.msra.mxu0 %v328
  %348 = vmatprep.subr.bf16.mxu0 0
  %349 = vmatpush1.bf16.msra.mxu0 %v329
  %350 = vmatprep.subr.bf16.mxu0 0
  %351 = vmatpush1.bf16.msra.mxu0 %v330
  %352 = vmatprep.subr.bf16.mxu0 0
  %353 = vmatpush1.bf16.msra.mxu0 %v331
  %354 = vmatprep.subr.bf16.mxu0 0
  %355 = vmatpush1.bf16.msra.mxu0 %v332
  %356 = vmatprep.subr.bf16.mxu0 0
  %357 = vmatpush1.bf16.msra.mxu0 %v333
  %358 = vmatprep.subr.bf16.mxu0 0
  %359 = vmatpush1.bf16.msra.mxu0 0
  %360 = vmatprep.subr.bf16.mxu0 0
  %361 = vmatpush1.bf16.msra.mxu0 0
  %362 = vmatprep.subr.bf16.mxu0 0
  %363 = vmatpush1.bf16.msra.mxu0 0
  %364 = vmatprep.subr.bf16.mxu0 0
  %365 = vmatpush1.bf16.msra.mxu0 0
  %366 = vmatprep.subr.bf16.mxu0 0
  %367 = vmatpush1.bf16.msra.mxu0 0
  %368 = vmatprep.subr.bf16.mxu0 0
  %369 = vmatpush1.bf16.msra.mxu0 0
  %370 = vmatprep.subr.bf16.mxu0 0
  %371 = vmatpush1.bf16.msra.mxu0 0
  %372 = vmatprep.subr.bf16.mxu0 0
  %373 = vmatpush1.bf16.msra.mxu0 0
  %374 = vmatprep.mubr.bf16.mxu0 0
  %375 = vmatmul.mubr.bf16.gmra.mrb[0].mxu0 0
  %v376 = vpop.f32.mrb[0].mxu0
  %v377 = vadd.f32 0.0, %v376
  %v378 = vpop.f32.mrb[0].mxu0
  %v379 = vpop.f32.mrb[0].mxu0
  %v380 = vpop.f32.mrb[0].mxu0
  %381 = vdwg.mxu0
  %v382 = vadd.f32 %v293, %v377
  %v383 = vld [vmem:[#allocation3 + $0x78] sm:$0xff]
  %v400 = vunpack.c.l.b16 %v277
  %v401 = vunpack.c.l.b16 %v278
  %v402 = vunpack.c.l.b16 %v279
  %v403 = vunpack.c.l.b16 %v280
  %v404 = vunpack.c.l.b16 %v281
  %v405 = vunpack.c.l.b16 %v282
  %v406 = vunpack.c.l.b16 %v283
  %v407 = vunpack.c.l.b16 %v284
  %v408 = vunpack.c.l.b16 %v285
  %v409 = vunpack.c.l.b16 %v286
  %v410 = vunpack.c.l.b16 %v287
  %v411 = vunpack.c.l.b16 %v288
  %v412 = vunpack.c.l.b16 %v289
  %v413 = vunpack.c.l.b16 %v290
  %v414 = vunpack.c.l.b16 %v291
  %v415 = vunpack.c.l.b16 %v292
  %v416 = vpack.c.b16 %v401, %v400
  %v417 = vpack.c.b16 %v403, %v402
  %v418 = vpack.c.b16 %v405, %v404
  %v419 = vpack.c.b16 %v407, %v406
  %v420 = vpack.c.b16 %v409, %v408
  %v421 = vpack.c.b16 %v411, %v410
  %v422 = vpack.c.b16 %v413, %v412
  %v423 = vpack.c.b16 %v415, %v414
  %432 = vmatprep.subr.bf16.mxu0 0
  %433 = vmatpush1.bf16.msra.mxu0 %v416
  %434 = vmatprep.subr.bf16.mxu0 0
  %435 = vmatpush1.bf16.msra.mxu0 %v417
  %436 = vmatprep.subr.bf16.mxu0 0
  %437 = vmatpush1.bf16.msra.mxu0 %v418
  %438 = vmatprep.subr.bf16.mxu0 0
  %439 = vmatpush1.bf16.msra.mxu0 %v419
  %440 = vmatprep.subr.bf16.mxu0 0
  %441 = vmatpush1.bf16.msra.mxu0 %v420
  %442 = vmatprep.subr.bf16.mxu0 0
  %443 = vmatpush1.bf16.msra.mxu0 %v421
  %444 = vmatprep.subr.bf16.mxu0 0
  %445 = vmatpush1.bf16.msra.mxu0 %v422
  %446 = vmatprep.subr.bf16.mxu0 0
  %447 = vmatpush1.bf16.msra.mxu0 %v423
  %448 = vmatprep.subr.bf16.mxu0 0
  %449 = vmatpush1.bf16.msra.mxu0 0
  %450 = vmatprep.subr.bf16.mxu0 0
  %451 = vmatpush1.bf16.msra.mxu0 0
  %452 = vmatprep.subr.bf16.mxu0 0
  %453 = vmatpush1.bf16.msra.mxu0 0
  %454 = vmatprep.subr.bf16.mxu0 0
  %455 = vmatpush1.bf16.msra.mxu0 0
  %456 = vmatprep.subr.bf16.mxu0 0
  %457 = vmatpush1.bf16.msra.mxu0 0
  %458 = vmatprep.subr.bf16.mxu0 0
  %459 = vmatpush1.bf16.msra.mxu0 0
  %460 = vmatprep.subr.bf16.mxu0 0
  %461 = vmatpush1.bf16.msra.mxu0 0
  %462 = vmatprep.subr.bf16.mxu0 0
  %463 = vmatpush1.bf16.msra.mxu0 0
  %464 = vmatprep.mubr.bf16.mxu0 0
  %465 = vmatmul.mubr.bf16.gmra.mrb[0].mxu0 0
  %v466 = vpop.f32.mrb[0].mxu0
  %v467 = vadd.f32 0.0, %v466
  %v468 = vpop.f32.mrb[0].mxu0
  %v469 = vpop.f32.mrb[0].mxu0
  %v470 = vpop.f32.mrb[0].mxu0
  %471 = vdwg.mxu0
  %v472 = vadd.f32 %v383, %v467
  %v473 = vtanh.pop %v382
  %v474 = vtanh.pop %v472
  %v475 = vpack.c.bf16 %v473, %v473
  %476 = vst [vmem:[%s5] sm:$0xf] %v475
  %v477 = vpack.c.bf16 %v474, %v474
  %s478 = scalar_lea.vmem %s5, 56
  %479 = vst [vmem:[%s478 + $0x4] sm:$0xf] %v477
  %v480 = vld [vmem:[#allocation3 + $0x10] sm:$0xff]
  %481 = vmatprep.subr.bf16.mxu0 0
  %482 = vmatpush1.bf16.msra.mxu0 %v326
  %483 = vmatprep.subr.bf16.mxu0 0
  %484 = vmatpush1.bf16.msra.mxu0 %v327
  %485 = vmatprep.subr.bf16.mxu0 0
  %486 = vmatpush1.bf16.msra.mxu0 %v328
  %487 = vmatprep.subr.bf16.mxu0 0
  %488 = vmatpush1.bf16.msra.mxu0 %v329
  %489 = vmatprep.subr.bf16.mxu0 0
  %490 = vmatpush1.bf16.msra.mxu0 %v330
  %491 = vmatprep.subr.bf16.mxu0 0
  %492 = vmatpush1.bf16.msra.mxu0 %v331
  %493 = vmatprep.subr.bf16.mxu0 0
  %494 = vmatpush1.bf16.msra.mxu0 %v332
  %495 = vmatprep.subr.bf16.mxu0 0
  %496 = vmatpush1.bf16.msra.mxu0 %v333
  %497 = vmatprep.subr.bf16.mxu0 0
  %498 = vmatpush1.bf16.msra.mxu0 0
  %499 = vmatprep.subr.bf16.mxu0 0
  %500 = vmatpush1.bf16.msra.mxu0 0
  %501 = vmatprep.subr.bf16.mxu0 0
  %502 = vmatpush1.bf16.msra.mxu0 0
  %503 = vmatprep.subr.bf16.mxu0 0
  %504 = vmatpush1.bf16.msra.mxu0 0
  %505 = vmatprep.subr.bf16.mxu0 0
  %506 = vmatpush1.bf16.msra.mxu0 0
  %507 = vmatprep.subr.bf16.mxu0 0
  %508 = vmatpush1.bf16.msra.mxu0 0
  %509 = vmatprep.subr.bf16.mxu0 0
  %510 = vmatpush1.bf16.msra.mxu0 0
  %511 = vmatprep.subr.bf16.mxu0 0
  %512 = vmatpush1.bf16.msra.mxu0 0
  %513 = vmatprep.mubr.bf16.mxu0 0
  %514 = vmatmul.mubr.bf16.gmra.mrb[0].mxu0 %v475
  %v515 = vpop.f32.mrb[0].mxu0
  %v516 = vadd.f32 0.0, %v515
  %v517 = vpop.f32.mrb[0].mxu0
  %v518 = vpop.f32.mrb[0].mxu0
  %v519 = vpop.f32.mrb[0].mxu0
  %520 = vdwg.mxu0
  %v521 = vadd.f32 %v480, %v516
  %v522 = vld [vmem:[#allocation3 + $0x68] sm:$0xff]
  %523 = vmatprep.subr.bf16.mxu0 0
  %524 = vmatpush1.bf16.msra.mxu0 %v416
  %525 = vmatprep.subr.bf16.mxu0 0
  %526 = vmatpush1.bf16.msra.mxu0 %v417
  %527 = vmatprep.subr.bf16.mxu0 0
  %528 = vmatpush1.bf16.msra.mxu0 %v418
  %529 = vmatprep.subr.bf16.mxu0 0
  %530 = vmatpush1.bf16.msra.mxu0 %v419
  %531 = vmatprep.subr.bf16.mxu0 0
  %532 = vmatpush1.bf16.msra.mxu0 %v420
  %533 = vmatprep.subr.bf16.mxu0 0
  %534 = vmatpush1.bf16.msra.mxu0 %v421
  %535 = vmatprep.subr.bf16.mxu0 0
  %536 = vmatpush1.bf16.msra.mxu0 %v422
  %537 = vmatprep.subr.bf16.mxu0 0
  %538 = vmatpush1.bf16.msra.mxu0 %v423
  %539 = vmatprep.subr.bf16.mxu0 0
  %540 = vmatpush1.bf16.msra.mxu0 0
  %541 = vmatprep.subr.bf16.mxu0 0
  %542 = vmatpush1.bf16.msra.mxu0 0
  %543 = vmatprep.subr.bf16.mxu0 0
  %544 = vmatpush1.bf16.msra.mxu0 0
  %545 = vmatprep.subr.bf16.mxu0 0
  %546 = vmatpush1.bf16.msra.mxu0 0
  %547 = vmatprep.subr.bf16.mxu0 0
  %548 = vmatpush1.bf16.msra.mxu0 0
  %549 = vmatprep.subr.bf16.mxu0 0
  %550 = vmatpush1.bf16.msra.mxu0 0
  %551 = vmatprep.subr.bf16.mxu0 0
  %552 = vmatpush1.bf16.msra.mxu0 0
  %553 = vmatprep.subr.bf16.mxu0 0
  %554 = vmatpush1.bf16.msra.mxu0 0
  %555 = vmatprep.mubr.bf16.mxu0 0
  %556 = vmatmul.mubr.bf16.gmra.mrb[0].mxu0 %v477
  %v557 = vpop.f32.mrb[0].mxu0
  %v558 = vadd.f32 0.0, %v557
  %v559 = vpop.f32.mrb[0].mxu0
  %v560 = vpop.f32.mrb[0].mxu0
  %v561 = vpop.f32.mrb[0].mxu0
  %562 = vdwg.mxu0
  %v563 = vadd.f32 %v522, %v558
  %v564 = vtanh.pop %v521
  %v565 = vtanh.pop %v563
  %v566 = vpack.c.bf16 %v564, %v564
  %s567 = scalar_lea.vmem %s5, 8
  %568 = vst [vmem:[%s567] sm:$0xf] %v566
  %v569 = vpack.c.bf16 %v565, %v565
  %s570 = scalar_lea.vmem %s5, 48
  %571 = vst [vmem:[%s570 + $0x4] sm:$0xf] %v569
  %v572 = vld [vmem:[#allocation3 + $0x20] sm:$0xff]
  %573 = vmatprep.subr.bf16.mxu0 0
  %574 = vmatpush1.bf16.msra.mxu0 %v326
  %575 = vmatprep.subr.bf16.mxu0 0
  %576 = vmatpush1.bf16.msra.mxu0 %v327
  %577 = vmatprep.subr.bf16.mxu0 0
  %578 = vmatpush1.bf16.msra.mxu0 %v328
  %579 = vmatprep.subr.bf16.mxu0 0
  %580 = vmatpush1.bf16.msra.mxu0 %v329
  %581 = vmatprep.subr.bf16.mxu0 0
  %582 = vmatpush1.bf16.msra.mxu0 %v330
  %583 = vmatprep.subr.bf16.mxu0 0
  %584 = vmatpush1.bf16.msra.mxu0 %v331
  %585 = vmatprep.subr.bf16.mxu0 0
  %586 = vmatpush1.bf16.msra.mxu0 %v332
  %587 = vmatprep.subr.bf16.mxu0 0
  %588 = vmatpush1.bf16.msra.mxu0 %v333
  %589 = vmatprep.subr.bf16.mxu0 0
  %590 = vmatpush1.bf16.msra.mxu0 0
  %591 = vmatprep.subr.bf16.mxu0 0
  %592 = vmatpush1.bf16.msra.mxu0 0
  %593 = vmatprep.subr.bf16.mxu0 0
  %594 = vmatpush1.bf16.msra.mxu0 0
  %595 = vmatprep.subr.bf16.mxu0 0
  %596 = vmatpush1.bf16.msra.mxu0 0
  %597 = vmatprep.subr.bf16.mxu0 0
  %598 = vmatpush1.bf16.msra.mxu0 0
  %599 = vmatprep.subr.bf16.mxu0 0
  %600 = vmatpush1.bf16.msra.mxu0 0
  %601 = vmatprep.subr.bf16.mxu0 0
  %602 = vmatpush1.bf16.msra.mxu0 0
  %603 = vmatprep.subr.bf16.mxu0 0
  %604 = vmatpush1.bf16.msra.mxu0 0
  %605 = vmatprep.mubr.bf16.mxu0 0
  %606 = vmatmul.mubr.bf16.gmra.mrb[0].mxu0 %v566
  %v607 = vpop.f32.mrb[0].mxu0
  %v608 = vadd.f32 0.0, %v607
  %v609 = vpop.f32.mrb[0].mxu0
  %v610 = vpop.f32.mrb[0].mxu0
  %v611 = vpop.f32.mrb[0].mxu0
  %612 = vdwg.mxu0
  %v613 = vadd.f32 %v572, %v608
  %v614 = vld [vmem:[#allocation3 + $0x58] sm:$0xff]
  %615 = vmatprep.subr.bf16.mxu0 0
  %616 = vmatpush1.bf16.msra.mxu0 %v416
  %617 = vmatprep.subr.bf16.mxu0 0
  %618 = vmatpush1.bf16.msra.mxu0 %v417
  %619 = vmatprep.subr.bf16.mxu0 0
  %620 = vmatpush1.bf16.msra.mxu0 %v418
  %621 = vmatprep.subr.bf16.mxu0 0
  %622 = vmatpush1.bf16.msra.mxu0 %v419
  %623 = vmatprep.subr.bf16.mxu0 0
  %624 = vmatpush1.bf16.msra.mxu0 %v420
  %625 = vmatprep.subr.bf16.mxu0 0
  %626 = vmatpush1.bf16.msra.mxu0 %v421
  %627 = vmatprep.subr.bf16.mxu0 0
  %628 = vmatpush1.bf16.msra.mxu0 %v422
  %629 = vmatprep.subr.bf16.mxu0 0
  %630 = vmatpush1.bf16.msra.mxu0 %v423
  %631 = vmatprep.subr.bf16.mxu0 0
  %632 = vmatpush1.bf16.msra.mxu0 0
  %633 = vmatprep.subr.bf16.mxu0 0
  %634 = vmatpush1.bf16.msra.mxu0 0
  %635 = vmatprep.subr.bf16.mxu0 0
  %636 = vmatpush1.bf16.msra.mxu0 0
  %637 = vmatprep.subr.bf16.mxu0 0
  %638 = vmatpush1.bf16.msra.mxu0 0
  %639 = vmatprep.subr.bf16.mxu0 0
  %640 = vmatpush1.bf16.msra.mxu0 0
  %641 = vmatprep.subr.bf16.mxu0 0
  %642 = vmatpush1.bf16.msra.mxu0 0
  %643 = vmatprep.subr.bf16.mxu0 0
  %644 = vmatpush1.bf16.msra.mxu0 0
  %645 = vmatprep.subr.bf16.mxu0 0
  %646 = vmatpush1.bf16.msra.mxu0 0
  %647 = vmatprep.mubr.bf16.mxu0 0
  %648 = vmatmul.mubr.bf16.gmra.mrb[0].mxu0 %v569
  %v649 = vpop.f32.mrb[0].mxu0
  %v650 = vadd.f32 0.0, %v649
  %v651 = vpop.f32.mrb[0].mxu0
  %v652 = vpop.f32.mrb[0].mxu0
  %v653 = vpop.f32.mrb[0].mxu0
  %654 = vdwg.mxu0
  %v655 = vadd.f32 %v614, %v650
  %v656 = vtanh.pop %v613
  %v657 = vtanh.pop %v655
  %v658 = vpack.c.bf16 %v656, %v656
  %s659 = scalar_lea.vmem %s5, 16
  %660 = vst [vmem:[%s659] sm:$0xf] %v658
  %v661 = vpack.c.bf16 %v657, %v657
  %s662 = scalar_lea.vmem %s5, 40
  %663 = vst [vmem:[%s662 + $0x4] sm:$0xf] %v661
  %v664 = vld [vmem:[#allocation3 + $0x30] sm:$0xff]
  %665 = vmatprep.subr.bf16.mxu0 0
  %666 = vmatpush1.bf16.msra.mxu0 %v326
  %667 = vmatprep.subr.bf16.mxu0 0
  %668 = vmatpush1.bf16.msra.mxu0 %v327
  %669 = vmatprep.subr.bf16.mxu0 0
  %670 = vmatpush1.bf16.msra.mxu0 %v328
  %671 = vmatprep.subr.bf16.mxu0 0
  %672 = vmatpush1.bf16.msra.mxu0 %v329
  %673 = vmatprep.subr.bf16.mxu0 0
  %674 = vmatpush1.bf16.msra.mxu0 %v330
  %675 = vmatprep.subr.bf16.mxu0 0
  %676 = vmatpush1.bf16.msra.mxu0 %v331
  %677 = vmatprep.subr.bf16.mxu0 0
  %678 = vmatpush1.bf16.msra.mxu0 %v332
  %679 = vmatprep.subr.bf16.mxu0 0
  %680 = vmatpush1.bf16.msra.mxu0 %v333
  %681 = vmatprep.subr.bf16.mxu0 0
  %682 = vmatpush1.bf16.msra.mxu0 0
  %683 = vmatprep.subr.bf16.mxu0 0
  %684 = vmatpush1.bf16.msra.mxu0 0
  %685 = vmatprep.subr.bf16.mxu0 0
  %686 = vmatpush1.bf16.msra.mxu0 0
  %687 = vmatprep.subr.bf16.mxu0 0
  %688 = vmatpush1.bf16.msra.mxu0 0
  %689 = vmatprep.subr.bf16.mxu0 0
  %690 = vmatpush1.bf16.msra.mxu0 0
  %691 = vmatprep.subr.bf16.mxu0 0
  %692 = vmatpush1.bf16.msra.mxu0 0
  %693 = vmatprep.subr.bf16.mxu0 0
  %694 = vmatpush1.bf16.msra.mxu0 0
  %695 = vmatprep.subr.bf16.mxu0 0
  %696 = vmatpush1.bf16.msra.mxu0 0
  %697 = vmatprep.mubr.bf16.mxu0 0
  %698 = vmatmul.mubr.bf16.gmra.mrb[0].mxu0 %v658
  %v699 = vpop.f32.mrb[0].mxu0
  %v700 = vadd.f32 0.0, %v699
  %v701 = vpop.f32.mrb[0].mxu0
  %v702 = vpop.f32.mrb[0].mxu0
  %v703 = vpop.f32.mrb[0].mxu0
  %704 = vdwg.mxu0
  %v705 = vadd.f32 %v664, %v700
  %v706 = vld [vmem:[#allocation3 + $0x48] sm:$0xff]
  %707 = vmatprep.subr.bf16.mxu0 0
  %708 = vmatpush1.bf16.msra.mxu0 %v416
  %709 = vmatprep.subr.bf16.mxu0 0
  %710 = vmatpush1.bf16.msra.mxu0 %v417
  %711 = vmatprep.subr.bf16.mxu0 0
  %712 = vmatpush1.bf16.msra.mxu0 %v418
  %713 = vmatprep.subr.bf16.mxu0 0
  %714 = vmatpush1.bf16.msra.mxu0 %v419
  %715 = vmatprep.subr.bf16.mxu0 0
  %716 = vmatpush1.bf16.msra.mxu0 %v420
  %717 = vmatprep.subr.bf16.mxu0 0
  %718 = vmatpush1.bf16.msra.mxu0 %v421
  %719 = vmatprep.subr.bf16.mxu0 0
  %720 = vmatpush1.bf16.msra.mxu0 %v422
  %721 = vmatprep.subr.bf16.mxu0 0
  %722 = vmatpush1.bf16.msra.mxu0 %v423
  %723 = vmatprep.subr.bf16.mxu0 0
  %724 = vmatpush1.bf16.msra.mxu0 0
  %725 = vmatprep.subr.bf16.mxu0 0
  %726 = vmatpush1.bf16.msra.mxu0 0
  %727 = vmatprep.subr.bf16.mxu0 0
  %728 = vmatpush1.bf16.msra.mxu0 0
  %729 = vmatprep.subr.bf16.mxu0 0
  %730 = vmatpush1.bf16.msra.mxu0 0
  %731 = vmatprep.subr.bf16.mxu0 0
  %732 = vmatpush1.bf16.msra.mxu0 0
  %733 = vmatprep.subr.bf16.mxu0 0
  %734 = vmatpush1.bf16.msra.mxu0 0
  %735 = vmatprep.subr.bf16.mxu0 0
  %736 = vmatpush1.bf16.msra.mxu0 0
  %737 = vmatprep.subr.bf16.mxu0 0
  %738 = vmatpush1.bf16.msra.mxu0 0
  %739 = vmatprep.mubr.bf16.mxu0 0
  %740 = vmatmul.mubr.bf16.gmra.mrb[0].mxu0 %v661
  %v741 = vpop.f32.mrb[0].mxu0
  %v742 = vadd.f32 0.0, %v741
  %v743 = vpop.f32.mrb[0].mxu0
  %v744 = vpop.f32.mrb[0].mxu0
  %v745 = vpop.f32.mrb[0].mxu0
  %746 = vdwg.mxu0
  %v747 = vadd.f32 %v706, %v742
  %v748 = vtanh.pop %v705
  %v749 = vtanh.pop %v747
  %v750 = vpack.c.bf16 %v748, %v748
  %s751 = scalar_lea.vmem %s5, 24
  %752 = vst [vmem:[%s751] sm:$0xf] %v750
  %v753 = vpack.c.bf16 %v749, %v749
  %s754 = scalar_lea.vmem %s5, 32
  %755 = vst [vmem:[%s754 + $0x4] sm:$0xf] %v753
  %v756 = vld [vmem:[#allocation3 + $0x40] sm:$0xff]
  %757 = vmatprep.subr.bf16.mxu0 0
  %758 = vmatpush1.bf16.msra.mxu0 %v326
  %759 = vmatprep.subr.bf16.mxu0 0
  %760 = vmatpush1.bf16.msra.mxu0 %v327
  %761 = vmatprep.subr.bf16.mxu0 0
  %762 = vmatpush1.bf16.msra.mxu0 %v328
  %763 = vmatprep.subr.bf16.mxu0 0
  %764 = vmatpush1.bf16.msra.mxu0 %v329
  %765 = vmatprep.subr.bf16.mxu0 0
  %766 = vmatpush1.bf16.msra.mxu0 %v330
  %767 = vmatprep.subr.bf16.mxu0 0
  %768 = vmatpush1.bf16.msra.mxu0 %v331
  %769 = vmatprep.subr.bf16.mxu0 0
  %770 = vmatpush1.bf16.msra.mxu0 %v332
  %771 = vmatprep.subr.bf16.mxu0 0
  %772 = vmatpush1.bf16.msra.mxu0 %v333
  %773 = vmatprep.subr.bf16.mxu0 0
  %774 = vmatpush1.bf16.msra.mxu0 0
  %775 = vmatprep.subr.bf16.mxu0 0
  %776 = vmatpush1.bf16.msra.mxu0 0
  %777 = vmatprep.subr.bf16.mxu0 0
  %778 = vmatpush1.bf16.msra.mxu0 0
  %779 = vmatprep.subr.bf16.mxu0 0
  %780 = vmatpush1.bf16.msra.mxu0 0
  %781 = vmatprep.subr.bf16.mxu0 0
  %782 = vmatpush1.bf16.msra.mxu0 0
  %783 = vmatprep.subr.bf16.mxu0 0
  %784 = vmatpush1.bf16.msra.mxu0 0
  %785 = vmatprep.subr.bf16.mxu0 0
  %786 = vmatpush1.bf16.msra.mxu0 0
  %787 = vmatprep.subr.bf16.mxu0 0
  %788 = vmatpush1.bf16.msra.mxu0 0
  %789 = vmatprep.mubr.bf16.mxu0 0
  %790 = vmatmul.mubr.bf16.gmra.mrb[0].mxu0 %v750
  %v791 = vpop.f32.mrb[0].mxu0
  %v792 = vadd.f32 0.0, %v791
  %v793 = vpop.f32.mrb[0].mxu0
  %v794 = vpop.f32.mrb[0].mxu0
  %v795 = vpop.f32.mrb[0].mxu0
  %796 = vdwg.mxu0
  %v797 = vadd.f32 %v756, %v792
  %v798 = vld [vmem:[#allocation3 + $0x38] sm:$0xff]
  %799 = vmatprep.subr.bf16.mxu0 0
  %800 = vmatpush1.bf16.msra.mxu0 %v416
  %801 = vmatprep.subr.bf16.mxu0 0
  %802 = vmatpush1.bf16.msra.mxu0 %v417
  %803 = vmatprep.subr.bf16.mxu0 0
  %804 = vmatpush1.bf16.msra.mxu0 %v418
  %805 = vmatprep.subr.bf16.mxu0 0
  %806 = vmatpush1.bf16.msra.mxu0 %v419
  %807 = vmatprep.subr.bf16.mxu0 0
  %808 = vmatpush1.bf16.msra.mxu0 %v420
  %809 = vmatprep.subr.bf16.mxu0 0
  %810 = vmatpush1.bf16.msra.mxu0 %v421
  %811 = vmatprep.subr.bf16.mxu0 0
  %812 = vmatpush1.bf16.msra.mxu0 %v422
  %813 = vmatprep.subr.bf16.mxu0 0
  %814 = vmatpush1.bf16.msra.mxu0 %v423
  %815 = vmatprep.subr.bf16.mxu0 0
  %816 = vmatpush1.bf16.msra.mxu0 0
  %817 = vmatprep.subr.bf16.mxu0 0
  %818 = vmatpush1.bf16.msra.mxu0 0
  %819 = vmatprep.subr.bf16.mxu0 0
  %820 = vmatpush1.bf16.msra.mxu0 0
  %821 = vmatprep.subr.bf16.mxu0 0
  %822 = vmatpush1.bf16.msra.mxu0 0
  %823 = vmatprep.subr.bf16.mxu0 0
  %824 = vmatpush1.bf16.msra.mxu0 0
  %825 = vmatprep.subr.bf16.mxu0 0
  %826 = vmatpush1.bf16.msra.mxu0 0
  %827 = vmatprep.subr.bf16.mxu0 0
  %828 = vmatpush1.bf16.msra.mxu0 0
  %829 = vmatprep.subr.bf16.mxu0 0
  %830 = vmatpush1.bf16.msra.mxu0 0
  %831 = vmatprep.mubr.bf16.mxu0 0
  %832 = vmatmul.mubr.bf16.gmra.mrb[0].mxu0 %v753
  %v833 = vpop.f32.mrb[0].mxu0
  %v834 = vadd.f32 0.0, %v833
  %v835 = vpop.f32.mrb[0].mxu0
  %v836 = vpop.f32.mrb[0].mxu0
  %v837 = vpop.f32.mrb[0].mxu0
  %838 = vdwg.mxu0
  %v839 = vadd.f32 %v798, %v834
  %v840 = vtanh.pop %v797
  %v841 = vtanh.pop %v839
  %v842 = vpack.c.bf16 %v840, %v840
  %843 = vst [vmem:[%s754] sm:$0xf] %v842
  %v844 = vpack.c.bf16 %v841, %v841
  %845 = vst [vmem:[%s751 + $0x4] sm:$0xf] %v844
  %v846 = vld [vmem:[#allocation3 + $0x50] sm:$0xff]
  %847 = vmatprep.subr.bf16.mxu0 0
  %848 = vmatpush1.bf16.msra.mxu0 %v326
  %849 = vmatprep.subr.bf16.mxu0 0
  %850 = vmatpush1.bf16.msra.mxu0 %v327
  %851 = vmatprep.subr.bf16.mxu0 0
  %852 = vmatpush1.bf16.msra.mxu0 %v328
  %853 = vmatprep.subr.bf16.mxu0 0
  %854 = vmatpush1.bf16.msra.mxu0 %v329
  %855 = vmatprep.subr.bf16.mxu0 0
  %856 = vmatpush1.bf16.msra.mxu0 %v330
  %857 = vmatprep.subr.bf16.mxu0 0
  %858 = vmatpush1.bf16.msra.mxu0 %v331
  %859 = vmatprep.subr.bf16.mxu0 0
  %860 = vmatpush1.bf16.msra.mxu0 %v332
  %861 = vmatprep.subr.bf16.mxu0 0
  %862 = vmatpush1.bf16.msra.mxu0 %v333
  %863 = vmatprep.subr.bf16.mxu0 0
  %864 = vmatpush1.bf16.msra.mxu0 0
  %865 = vmatprep.subr.bf16.mxu0 0
  %866 = vmatpush1.bf16.msra.mxu0 0
  %867 = vmatprep.subr.bf16.mxu0 0
  %868 = vmatpush1.bf16.msra.mxu0 0
  %869 = vmatprep.subr.bf16.mxu0 0
  %870 = vmatpush1.bf16.msra.mxu0 0
  %871 = vmatprep.subr.bf16.mxu0 0
  %872 = vmatpush1.bf16.msra.mxu0 0
  %873 = vmatprep.subr.bf16.mxu0 0
  %874 = vmatpush1.bf16.msra.mxu0 0
  %875 = vmatprep.subr.bf16.mxu0 0
  %876 = vmatpush1.bf16.msra.mxu0 0
  %877 = vmatprep.subr.bf16.mxu0 0
  %878 = vmatpush1.bf16.msra.mxu0 0
  %879 = vmatprep.mubr.bf16.mxu0 0
  %880 = vmatmul.mubr.bf16.gmra.mrb[0].mxu0 %v842
  %v881 = vpop.f32.mrb[0].mxu0
  %v882 = vadd.f32 0.0, %v881
  %v883 = vpop.f32.mrb[0].mxu0
  %v884 = vpop.f32.mrb[0].mxu0
  %v885 = vpop.f32.mrb[0].mxu0
  %886 = vdwg.mxu0
  %v887 = vadd.f32 %v846, %v882
  %v888 = vld [vmem:[#allocation3 + $0x28] sm:$0xff]
  %889 = vmatprep.subr.bf16.mxu0 0
  %890 = vmatpush1.bf16.msra.mxu0 %v416
  %891 = vmatprep.subr.bf16.mxu0 0
  %892 = vmatpush1.bf16.msra.mxu0 %v417
  %893 = vmatprep.subr.bf16.mxu0 0
  %894 = vmatpush1.bf16.msra.mxu0 %v418
  %895 = vmatprep.subr.bf16.mxu0 0
  %896 = vmatpush1.bf16.msra.mxu0 %v419
  %897 = vmatprep.subr.bf16.mxu0 0
  %898 = vmatpush1.bf16.msra.mxu0 %v420
  %899 = vmatprep.subr.bf16.mxu0 0
  %900 = vmatpush1.bf16.msra.mxu0 %v421
  %901 = vmatprep.subr.bf16.mxu0 0
  %902 = vmatpush1.bf16.msra.mxu0 %v422
  %903 = vmatprep.subr.bf16.mxu0 0
  %904 = vmatpush1.bf16.msra.mxu0 %v423
  %905 = vmatprep.subr.bf16.mxu0 0
  %906 = vmatpush1.bf16.msra.mxu0 0
  %907 = vmatprep.subr.bf16.mxu0 0
  %908 = vmatpush1.bf16.msra.mxu0 0
  %909 = vmatprep.subr.bf16.mxu0 0
  %910 = vmatpush1.bf16.msra.mxu0 0
  %911 = vmatprep.subr.bf16.mxu0 0
  %912 = vmatpush1.bf16.msra.mxu0 0
  %913 = vmatprep.subr.bf16.mxu0 0
  %914 = vmatpush1.bf16.msra.mxu0 0
  %915 = vmatprep.subr.bf16.mxu0 0
  %916 = vmatpush1.bf16.msra.mxu0 0
  %917 = vmatprep.subr.bf16.mxu0 0
  %918 = vmatpush1.bf16.msra.mxu0 0
  %919 = vmatprep.subr.bf16.mxu0 0
  %920 = vmatpush1.bf16.msra.mxu0 0
  %921 = vmatprep.mubr.bf16.mxu0 0
  %922 = vmatmul.mubr.bf16.gmra.mrb[0].mxu0 %v844
  %v923 = vpop.f32.mrb[0].mxu0
  %v924 = vadd.f32 0.0, %v923
  %v925 = vpop.f32.mrb[0].mxu0
  %v926 = vpop.f32.mrb[0].mxu0
  %v927 = vpop.f32.mrb[0].mxu0
  %928 = vdwg.mxu0
  %v929 = vadd.f32 %v888, %v924
  %v930 = vtanh.pop %v887
  %v931 = vtanh.pop %v929
  %v932 = vpack.c.bf16 %v930, %v930
  %933 = vst [vmem:[%s662] sm:$0xf] %v932
  %v934 = vpack.c.bf16 %v931, %v931
  %935 = vst [vmem:[%s659 + $0x4] sm:$0xf] %v934
  %v936 = vld [vmem:[#allocation3 + $0x60] sm:$0xff]
  %937 = vmatprep.subr.bf16.mxu0 0
  %938 = vmatpush1.bf16.msra.mxu0 %v326
  %939 = vmatprep.subr.bf16.mxu0 0
  %940 = vmatpush1.bf16.msra.mxu0 %v327
  %941 = vmatprep.subr.bf16.mxu0 0
  %942 = vmatpush1.bf16.msra.mxu0 %v328
  %943 = vmatprep.subr.bf16.mxu0 0
  %944 = vmatpush1.bf16.msra.mxu0 %v329
  %945 = vmatprep.subr.bf16.mxu0 0
  %946 = vmatpush1.bf16.msra.mxu0 %v330
  %947 = vmatprep.subr.bf16.mxu0 0
  %948 = vmatpush1.bf16.msra.mxu0 %v331
  %949 = vmatprep.subr.bf16.mxu0 0
  %950 = vmatpush1.bf16.msra.mxu0 %v332
  %951 = vmatprep.subr.bf16.mxu0 0
  %952 = vmatpush1.bf16.msra.mxu0 %v333
  %953 = vmatprep.subr.bf16.mxu0 0
  %954 = vmatpush1.bf16.msra.mxu0 0
  %955 = vmatprep.subr.bf16.mxu0 0
  %956 = vmatpush1.bf16.msra.mxu0 0
  %957 = vmatprep.subr.bf16.mxu0 0
  %958 = vmatpush1.bf16.msra.mxu0 0
  %959 = vmatprep.subr.bf16.mxu0 0
  %960 = vmatpush1.bf16.msra.mxu0 0
  %961 = vmatprep.subr.bf16.mxu0 0
  %962 = vmatpush1.bf16.msra.mxu0 0
  %963 = vmatprep.subr.bf16.mxu0 0
  %964 = vmatpush1.bf16.msra.mxu0 0
  %965 = vmatprep.subr.bf16.mxu0 0
  %966 = vmatpush1.bf16.msra.mxu0 0
  %967 = vmatprep.subr.bf16.mxu0 0
  %968 = vmatpush1.bf16.msra.mxu0 0
  %969 = vmatprep.mubr.bf16.mxu0 0
  %970 = vmatmul.mubr.bf16.gmra.mrb[0].mxu0 %v932
  %v971 = vpop.f32.mrb[0].mxu0
  %v972 = vadd.f32 0.0, %v971
  %v973 = vpop.f32.mrb[0].mxu0
  %v974 = vpop.f32.mrb[0].mxu0
  %v975 = vpop.f32.mrb[0].mxu0
  %976 = vdwg.mxu0
  %v977 = vadd.f32 %v936, %v972
  %v978 = vld [vmem:[#allocation3 + $0x18] sm:$0xff]
  %979 = vmatprep.subr.bf16.mxu0 0
  %980 = vmatpush1.bf16.msra.mxu0 %v416
  %981 = vmatprep.subr.bf16.mxu0 0
  %982 = vmatpush1.bf16.msra.mxu0 %v417
  %983 = vmatprep.subr.bf16.mxu0 0
  %984 = vmatpush1.bf16.msra.mxu0 %v418
  %985 = vmatprep.subr.bf16.mxu0 0
  %986 = vmatpush1.bf16.msra.mxu0 %v419
  %987 = vmatprep.subr.bf16.mxu0 0
  %988 = vmatpush1.bf16.msra.mxu0 %v420
  %989 = vmatprep.subr.bf16.mxu0 0
  %990 = vmatpush1.bf16.msra.mxu0 %v421
  %991 = vmatprep.subr.bf16.mxu0 0
  %992 = vmatpush1.bf16.msra.mxu0 %v422
  %993 = vmatprep.subr.bf16.mxu0 0
  %994 = vmatpush1.bf16.msra.mxu0 %v423
  %995 = vmatprep.subr.bf16.mxu0 0
  %996 = vmatpush1.bf16.msra.mxu0 0
  %997 = vmatprep.subr.bf16.mxu0 0
  %998 = vmatpush1.bf16.msra.mxu0 0
  %999 = vmatprep.subr.bf16.mxu0 0
  %1000 = vmatpush1.bf16.msra.mxu0 0
  %1001 = vmatprep.subr.bf16.mxu0 0
  %1002 = vmatpush1.bf16.msra.mxu0 0
  %1003 = vmatprep.subr.bf16.mxu0 0
  %1004 = vmatpush1.bf16.msra.mxu0 0
  %1005 = vmatprep.subr.bf16.mxu0 0
  %1006 = vmatpush1.bf16.msra.mxu0 0
  %1007 = vmatprep.subr.bf16.mxu0 0
  %1008 = vmatpush1.bf16.msra.mxu0 0
  %1009 = vmatprep.subr.bf16.mxu0 0
  %1010 = vmatpush1.bf16.msra.mxu0 0
  %1011 = vmatprep.mubr.bf16.mxu0 0
  %1012 = vmatmul.mubr.bf16.gmra.mrb[0].mxu0 %v934
  %v1013 = vpop.f32.mrb[0].mxu0
  %v1014 = vadd.f32 0.0, %v1013
  %v1015 = vpop.f32.mrb[0].mxu0
  %v1016 = vpop.f32.mrb[0].mxu0
  %v1017 = vpop.f32.mrb[0].mxu0
  %1018 = vdwg.mxu0
  %v1019 = vadd.f32 %v978, %v1014
  %v1020 = vtanh.pop %v977
  %v1021 = vtanh.pop %v1019
  %v1022 = vpack.c.bf16 %v1020, %v1020
  %1023 = vst [vmem:[%s570] sm:$0xf] %v1022
  %v1024 = vpack.c.bf16 %v1021, %v1021
  %1025 = vst [vmem:[%s567 + $0x4] sm:$0xf] %v1024
  %v1026 = vld [vmem:[#allocation3 + $0x70] sm:$0xff]
  %1027 = vmatprep.subr.bf16.mxu0 0
  %1028 = vmatpush1.bf16.msra.mxu0 %v326
  %1029 = vmatprep.subr.bf16.mxu0 0
  %1030 = vmatpush1.bf16.msra.mxu0 %v327
  %1031 = vmatprep.subr.bf16.mxu0 0
  %1032 = vmatpush1.bf16.msra.mxu0 %v328
  %1033 = vmatprep.subr.bf16.mxu0 0
  %1034 = vmatpush1.bf16.msra.mxu0 %v329
  %1035 = vmatprep.subr.bf16.mxu0 0
  %1036 = vmatpush1.bf16.msra.mxu0 %v330
  %1037 = vmatprep.subr.bf16.mxu0 0
  %1038 = vmatpush1.bf16.msra.mxu0 %v331
  %1039 = vmatprep.subr.bf16.mxu0 0
  %1040 = vmatpush1.bf16.msra.mxu0 %v332
  %1041 = vmatprep.subr.bf16.mxu0 0
  %1042 = vmatpush1.bf16.msra.mxu0 %v333
  %1043 = vmatprep.subr.bf16.mxu0 0
  %1044 = vmatpush1.bf16.msra.mxu0 0
  %1045 = vmatprep.subr.bf16.mxu0 0
  %1046 = vmatpush1.bf16.msra.mxu0 0
  %1047 = vmatprep.subr.bf16.mxu0 0
  %1048 = vmatpush1.bf16.msra.mxu0 0
  %1049 = vmatprep.subr.bf16.mxu0 0
  %1050 = vmatpush1.bf16.msra.mxu0 0
  %1051 = vmatprep.subr.bf16.mxu0 0
  %1052 = vmatpush1.bf16.msra.mxu0 0
  %1053 = vmatprep.subr.bf16.mxu0 0
  %1054 = vmatpush1.bf16.msra.mxu0 0
  %1055 = vmatprep.subr.bf16.mxu0 0
  %1056 = vmatpush1.bf16.msra.mxu0 0
  %1057 = vmatprep.subr.bf16.mxu0 0
  %1058 = vmatpush1.bf16.msra.mxu0 0
  %1059 = vmatprep.mubr.bf16.mxu0 0
  %1060 = vmatmul.mubr.bf16.gmra.mrb[0].mxu0 %v1022
  %v1061 = vpop.f32.mrb[0].mxu0
  %v1062 = vadd.f32 0.0, %v1061
  %v1063 = vpop.f32.mrb[0].mxu0
  %v1064 = vpop.f32.mrb[0].mxu0
  %v1065 = vpop.f32.mrb[0].mxu0
  %1066 = vdwg.mxu0
  %v1067 = vadd.f32 %v1026, %v1062
  %v1068 = vld [vmem:[#allocation3 + $0x8] sm:$0xff]
  %1069 = vmatprep.subr.bf16.mxu0 0
  %1070 = vmatpush1.bf16.msra.mxu0 %v416
  %1071 = vmatprep.subr.bf16.mxu0 0
  %1072 = vmatpush1.bf16.msra.mxu0 %v417
  %1073 = vmatprep.subr.bf16.mxu0 0
  %1074 = vmatpush1.bf16.msra.mxu0 %v418
  %1075 = vmatprep.subr.bf16.mxu0 0
  %1076 = vmatpush1.bf16.msra.mxu0 %v419
  %1077 = vmatprep.subr.bf16.mxu0 0
  %1078 = vmatpush1.bf16.msra.mxu0 %v420
  %1079 = vmatprep.subr.bf16.mxu0 0
  %1080 = vmatpush1.bf16.msra.mxu0 %v421
  %1081 = vmatprep.subr.bf16.mxu0 0
  %1082 = vmatpush1.bf16.msra.mxu0 %v422
  %1083 = vmatprep.subr.bf16.mxu0 0
  %1084 = vmatpush1.bf16.msra.mxu0 %v423
  %1085 = vmatprep.subr.bf16.mxu0 0
  %1086 = vmatpush1.bf16.msra.mxu0 0
  %1087 = vmatprep.subr.bf16.mxu0 0
  %1088 = vmatpush1.bf16.msra.mxu0 0
  %1089 = vmatprep.subr.bf16.mxu0 0
  %1090 = vmatpush1.bf16.msra.mxu0 0
  %1091 = vmatprep.subr.bf16.mxu0 0
  %1092 = vmatpush1.bf16.msra.mxu0 0
  %1093 = vmatprep.subr.bf16.mxu0 0
  %1094 = vmatpush1.bf16.msra.mxu0 0
  %1095 = vmatprep.subr.bf16.mxu0 0
  %1096 = vmatpush1.bf16.msra.mxu0 0
  %1097 = vmatprep.subr.bf16.mxu0 0
  %1098 = vmatpush1.bf16.msra.mxu0 0
  %1099 = vmatprep.subr.bf16.mxu0 0
  %1100 = vmatpush1.bf16.msra.mxu0 0
  %1101 = vmatprep.mubr.bf16.mxu0 0
  %1102 = vmatmul.mubr.bf16.gmra.mrb[0].mxu0 %v1024
  %v1103 = vpop.f32.mrb[0].mxu0
  %v1104 = vadd.f32 0.0, %v1103
  %v1105 = vpop.f32.mrb[0].mxu0
  %v1106 = vpop.f32.mrb[0].mxu0
  %v1107 = vpop.f32.mrb[0].mxu0
  %1108 = vdwg.mxu0
  %v1109 = vadd.f32 %v1068, %v1104
  %v1110 = vtanh.pop %v1067
  %v1111 = vtanh.pop %v1109
  %v1112 = vpack.c.bf16 %v1110, %v1110
  %1113 = vst [vmem:[%s478] sm:$0xf] %v1112
  %v1114 = vpack.c.bf16 %v1111, %v1111
  %1115 = vst [vmem:[%s5 + $0x4] sm:$0xf] %v1114
  // Predicated region
  $region22: #{rnn_bidireccional_forward.3} parent=0 // pred_check
    _
  $region23: #{rnn_bidireccional_forward.3} parent=0 // pred_check_branch
    %1117 = sbr.rel (0) target = $region25
  $region24: #{rnn_bidireccional_forward.3} parent=0 // pred_region
    _
  $region25: #{rnn_bidireccional_forward.3} parent=0 // pred_fallthru
    _
  // Predicated region
  $region26: #{rnn_bidireccional_forward.3} parent=0 // pred_check
    _
  $region27: #{rnn_bidireccional_forward.3} parent=0 // pred_check_branch
    %1119 = sbr.rel (0) target = $region29
  $region28: #{rnn_bidireccional_forward.3} parent=0 // pred_region
    _
  $region29: #{rnn_bidireccional_forward.3} parent=0 // pred_fallthru
    _

// kernel: rnn_bidireccional_forward.4
$region0: #{rnn_bidireccional_forward.4}
  #allocation0 [shape = 'u32[]', space=smem, size = 0x4, offset = 0x4, fixed_abs, tag = 'smem constant byte address 0x4 - core index']
  #allocation1 [shape = 'u32[144,128]{1,0:T(1,128)}', space=vmem, size = 0x12000, scoped, tag = 'internal scratch']
  #allocation2 [shape = 'bf16[64,256]{1,0:T(16,128)(2,1)}', space=vmem, size = 0x8000, scoped, tag = 'scratch operand']
  #allocation3 [shape = 'f32[64,256]{1,0:T(8,128)}', space=vmem, size = 0x10000, scoped, tag = 'scratch operand']
  %s0 = inlined_call_operand.vmem [shape: bf16[8,8,256], index: 0, kind: input, shape index: {}]
  %s1 = inlined_call_operand.vmem [shape: bf16[256,256], index: 1, kind: input, shape index: {}]
  %s2 = inlined_call_operand.vmem [shape: bf16[128,128], index: 2, kind: input, shape index: {}]
  %s3 = inlined_call_operand.vmem [shape: bf16[128,128], index: 3, kind: input, shape index: {}]
  %s4 = inlined_call_operand.vmem [shape: f32[1,256], index: 4, kind: input, shape index: {}]
  %s5 = inlined_call_operand.vmem [shape: bf16[8,8,256], index: 5, kind: output, shape index: {}]
  %s6 = sld [smem:[#allocation0]]
  $region30: #{rnn_bidireccional_forward.4} parent=0
    _
  %s8 = ssub.s32 1, %s6
  %s9 = scalar_select 0, %s8, %s6
  // Predicated region
  $region2: #{rnn_bidireccional_forward.4} parent=0 // pred_check
    _
  $region3: #{rnn_bidireccional_forward.4} parent=0 // pred_check_branch
    %11 = sbr.rel (0) target = $region5
  $region4: #{rnn_bidireccional_forward.4} parent=0 // pred_region
    _
  $region5: #{rnn_bidireccional_forward.4} parent=0 // pred_fallthru
    _
  // Predicated region
  $region6: #{rnn_bidireccional_forward.4} parent=0 // pred_check
    _
  $region7: #{rnn_bidireccional_forward.4} parent=0 // pred_check_branch
    %13 = sbr.rel (0) target = $region9
  $region8: #{rnn_bidireccional_forward.4} parent=0 // pred_region
    _
  $region9: #{rnn_bidireccional_forward.4} parent=0 // pred_fallthru
    _
  // Predicated region
  $region10: #{rnn_bidireccional_forward.4} parent=0 // pred_check
    _
  $region11: #{rnn_bidireccional_forward.4} parent=0 // pred_check_branch
    %15 = sbr.rel (0) target = $region13
  $region12: #{rnn_bidireccional_forward.4} parent=0 // pred_region
    _
  $region13: #{rnn_bidireccional_forward.4} parent=0 // pred_fallthru
    _
  // Predicated region
  $region14: #{rnn_bidireccional_forward.4} parent=0 // pred_check
    _
  $region15: #{rnn_bidireccional_forward.4} parent=0 // pred_check_branch
    %17 = sbr.rel (0) target = $region17
  $region16: #{rnn_bidireccional_forward.4} parent=0 // pred_region
    _
  $region17: #{rnn_bidireccional_forward.4} parent=0 // pred_fallthru
    _
  // Predicated region
  $region18: #{rnn_bidireccional_forward.4} parent=0 // pred_check
    _
  $region19: #{rnn_bidireccional_forward.4} parent=0 // pred_check_branch
    %19 = sbr.rel (0) target = $region21
  $region20: #{rnn_bidireccional_forward.4} parent=0 // pred_region
    _
  $region21: #{rnn_bidireccional_forward.4} parent=0 // pred_fallthru
    _
  %v21 = vld [vmem:[%s0] sm:$0xff]
  %v23 = vunpack.c.l.b16 %v21
  %v24 = vunpack.c.h.b16 %v21
  %v25 = vpack.c.b16 %v23, %v23
  %v26 = vpack.c.b16 %v24, %v24
  %29 = vst [vmem:[#allocation2] sm:$0xf] %v25
  %30 = vst [vmem:[#allocation2 + $0x8] sm:$0xf] %v26
  %s31 = scalar_lea.vmem %s0, 8
  %v32 = vld [vmem:[%s31] sm:$0xff]
  %v34 = vunpack.c.l.b16 %v32
  %v35 = vunpack.c.h.b16 %v32
  %v36 = vpack.c.b16 %v34, %v34
  %v37 = vpack.c.b16 %v35, %v35
  %40 = vst [vmem:[#allocation2] sm:$0xf0] %v36
  %41 = vst [vmem:[#allocation2 + $0x8] sm:$0xf0] %v37
  %s42 = scalar_lea.vmem %s0, 16
  %v43 = vld [vmem:[%s42] sm:$0xff]
  %v45 = vunpack.c.l.b16 %v43
  %v46 = vunpack.c.h.b16 %v43
  %v47 = vpack.c.b16 %v45, %v45
  %v48 = vpack.c.b16 %v46, %v46
  %51 = vst [vmem:[#allocation2 + $0x10] sm:$0xf] %v47
  %52 = vst [vmem:[#allocation2 + $0x18] sm:$0xf] %v48
  %s53 = scalar_lea.vmem %s0, 24
  %v54 = vld [vmem:[%s53] sm:$0xff]
  %v56 = vunpack.c.l.b16 %v54
  %v57 = vunpack.c.h.b16 %v54
  %v58 = vpack.c.b16 %v56, %v56
  %v59 = vpack.c.b16 %v57, %v57
  %62 = vst [vmem:[#allocation2 + $0x10] sm:$0xf0] %v58
  %63 = vst [vmem:[#allocation2 + $0x18] sm:$0xf0] %v59
  %s64 = scalar_lea.vmem %s0, 32
  %v65 = vld [vmem:[%s64] sm:$0xff]
  %v67 = vunpack.c.l.b16 %v65
  %v68 = vunpack.c.h.b16 %v65
  %v69 = vpack.c.b16 %v67, %v67
  %v70 = vpack.c.b16 %v68, %v68
  %73 = vst [vmem:[#allocation2 + $0x20] sm:$0xf] %v69
  %74 = vst [vmem:[#allocation2 + $0x28] sm:$0xf] %v70
  %s75 = scalar_lea.vmem %s0, 40
  %v76 = vld [vmem:[%s75] sm:$0xff]
  %v78 = vunpack.c.l.b16 %v76
  %v79 = vunpack.c.h.b16 %v76
  %v80 = vpack.c.b16 %v78, %v78
  %v81 = vpack.c.b16 %v79, %v79
  %84 = vst [vmem:[#allocation2 + $0x20] sm:$0xf0] %v80
  %85 = vst [vmem:[#allocation2 + $0x28] sm:$0xf0] %v81
  %s86 = scalar_lea.vmem %s0, 48
  %v87 = vld [vmem:[%s86] sm:$0xff]
  %v89 = vunpack.c.l.b16 %v87
  %v90 = vunpack.c.h.b16 %v87
  %v91 = vpack.c.b16 %v89, %v89
  %v92 = vpack.c.b16 %v90, %v90
  %95 = vst [vmem:[#allocation2 + $0x30] sm:$0xf] %v91
  %96 = vst [vmem:[#allocation2 + $0x38] sm:$0xf] %v92
  %s97 = scalar_lea.vmem %s0, 56
  %v98 = vld [vmem:[%s97] sm:$0xff]
  %v100 = vunpack.c.l.b16 %v98
  %v101 = vunpack.c.h.b16 %v98
  %v102 = vpack.c.b16 %v100, %v100
  %v103 = vpack.c.b16 %v101, %v101
  %106 = vst [vmem:[#allocation2 + $0x30] sm:$0xf0] %v102
  %107 = vst [vmem:[#allocation2 + $0x38] sm:$0xf0] %v103
  %v108 = vld [vmem:[#allocation2] sm:$0xff]
  %v109 = vld [vmem:[#allocation2 + $0x8] sm:$0xff]
  %v110 = vld [vmem:[#allocation2 + $0x10] sm:$0xff]
  %v111 = vld [vmem:[#allocation2 + $0x18] sm:$0xff]
  %v112 = vld [vmem:[#allocation2 + $0x20] sm:$0xff]
  %v113 = vld [vmem:[#allocation2 + $0x28] sm:$0xff]
  %v114 = vld [vmem:[#allocation2 + $0x30] sm:$0xff]
  %v115 = vld [vmem:[#allocation2 + $0x38] sm:$0xff]
  %v116 = vld [vmem:[%s1] sm:$0xff]
  %v117 = vld [vmem:[%s1 + $0x8] sm:$0xff]
  %v118 = vld [vmem:[%s1 + $0x10] sm:$0xff]
  %v119 = vld [vmem:[%s1 + $0x18] sm:$0xff]
  %v120 = vld [vmem:[%s1 + $0x20] sm:$0xff]
  %v121 = vld [vmem:[%s1 + $0x28] sm:$0xff]
  %v122 = vld [vmem:[%s1 + $0x30] sm:$0xff]
  %v123 = vld [vmem:[%s1 + $0x38] sm:$0xff]
  %v124 = vld [vmem:[%s1 + $0x40] sm:$0xff]
  %v125 = vld [vmem:[%s1 + $0x48] sm:$0xff]
  %v126 = vld [vmem:[%s1 + $0x50] sm:$0xff]
  %v127 = vld [vmem:[%s1 + $0x58] sm:$0xff]
  %v128 = vld [vmem:[%s1 + $0x60] sm:$0xff]
  %v129 = vld [vmem:[%s1 + $0x68] sm:$0xff]
  %v130 = vld [vmem:[%s1 + $0x70] sm:$0xff]
  %v131 = vld [vmem:[%s1 + $0x78] sm:$0xff]
  %v132 = vld [vmem:[%s1 + $0x80] sm:$0xff]
  %v133 = vld [vmem:[%s1 + $0x88] sm:$0xff]
  %v134 = vld [vmem:[%s1 + $0x90] sm:$0xff]
  %v135 = vld [vmem:[%s1 + $0x98] sm:$0xff]
  %v136 = vld [vmem:[%s1 + $0xa0] sm:$0xff]
  %v137 = vld [vmem:[%s1 + $0xa8] sm:$0xff]
  %v138 = vld [vmem:[%s1 + $0xb0] sm:$0xff]
  %v139 = vld [vmem:[%s1 + $0xb8] sm:$0xff]
  %v140 = vld [vmem:[%s1 + $0xc0] sm:$0xff]
  %v141 = vld [vmem:[%s1 + $0xc8] sm:$0xff]
  %v142 = vld [vmem:[%s1 + $0xd0] sm:$0xff]
  %v143 = vld [vmem:[%s1 + $0xd8] sm:$0xff]
  %v144 = vld [vmem:[%s1 + $0xe0] sm:$0xff]
  %v145 = vld [vmem:[%s1 + $0xe8] sm:$0xff]
  %v146 = vld [vmem:[%s1 + $0xf0] sm:$0xff]
  %v147 = vld [vmem:[%s1 + $0xf8] sm:$0xff]
  %v148 = vld [vmem:[%s4] sm:$0x3]
  %v150 = vlaneseq
  %v151 = vshrl.u32 %v150, 7
  %v152 = vsub.s32 0, %v151
  %v153 = vrot.slane %v148, %v152
  %v154 = vlaneseq
  %v155 = vshrl.u32 %v154, 7
  %v156 = vsub.s32 1, %v155
  %v157 = vrot.slane %v148, %v156
  %v192 = vunpack.c.l.b16 %v116
  %v193 = vunpack.c.h.b16 %v116
  %v194 = vunpack.c.l.b16 %v117
  %v195 = vunpack.c.h.b16 %v117
  %v196 = vunpack.c.l.b16 %v118
  %v197 = vunpack.c.h.b16 %v118
  %v198 = vunpack.c.l.b16 %v119
  %v199 = vunpack.c.h.b16 %v119
  %v200 = vunpack.c.l.b16 %v120
  %v201 = vunpack.c.h.b16 %v120
  %v202 = vunpack.c.l.b16 %v121
  %v203 = vunpack.c.h.b16 %v121
  %v204 = vunpack.c.l.b16 %v122
  %v205 = vunpack.c.h.b16 %v122
  %v206 = vunpack.c.l.b16 %v123
  %v207 = vunpack.c.h.b16 %v123
  %v208 = vunpack.c.l.b16 %v124
  %v209 = vunpack.c.h.b16 %v124
  %v210 = vunpack.c.l.b16 %v125
  %v211 = vunpack.c.h.b16 %v125
  %v212 = vunpack.c.l.b16 %v126
  %v213 = vunpack.c.h.b16 %v126
  %v214 = vunpack.c.l.b16 %v127
  %v215 = vunpack.c.h.b16 %v127
  %v216 = vunpack.c.l.b16 %v128
  %v217 = vunpack.c.h.b16 %v128
  %v218 = vunpack.c.l.b16 %v129
  %v219 = vunpack.c.h.b16 %v129
  %v220 = vunpack.c.l.b16 %v130
  %v221 = vunpack.c.h.b16 %v130
  %v222 = vunpack.c.l.b16 %v131
  %v223 = vunpack.c.h.b16 %v131
  %v224 = vunpack.c.l.b16 %v132
  %v225 = vunpack.c.h.b16 %v132
  %v226 = vunpack.c.l.b16 %v133
  %v227 = vunpack.c.h.b16 %v133
  %v228 = vunpack.c.l.b16 %v134
  %v229 = vunpack.c.h.b16 %v134
  %v230 = vunpack.c.l.b16 %v135
  %v231 = vunpack.c.h.b16 %v135
  %v232 = vunpack.c.l.b16 %v136
  %v233 = vunpack.c.h.b16 %v136
  %v234 = vunpack.c.l.b16 %v137
  %v235 = vunpack.c.h.b16 %v137
  %v236 = vunpack.c.l.b16 %v138
  %v237 = vunpack.c.h.b16 %v138
  %v238 = vunpack.c.l.b16 %v139
  %v239 = vunpack.c.h.b16 %v139
  %v240 = vunpack.c.l.b16 %v140
  %v241 = vunpack.c.h.b16 %v140
  %v242 = vunpack.c.l.b16 %v141
  %v243 = vunpack.c.h.b16 %v141
  %v244 = vunpack.c.l.b16 %v142
  %v245 = vunpack.c.h.b16 %v142
  %v246 = vunpack.c.l.b16 %v143
  %v247 = vunpack.c.h.b16 %v143
  %v248 = vunpack.c.l.b16 %v144
  %v249 = vunpack.c.h.b16 %v144
  %v250 = vunpack.c.l.b16 %v145
  %v251 = vunpack.c.h.b16 %v145
  %v252 = vunpack.c.l.b16 %v146
  %v253 = vunpack.c.h.b16 %v146
  %v254 = vunpack.c.l.b16 %v147
  %v255 = vunpack.c.h.b16 %v147
  %v256 = vpack.c.b16 %v194, %v192
  %v257 = vpack.c.b16 %v195, %v193
  %v258 = vpack.c.b16 %v198, %v196
  %v259 = vpack.c.b16 %v199, %v197
  %v260 = vpack.c.b16 %v202, %v200
  %v261 = vpack.c.b16 %v203, %v201
  %v262 = vpack.c.b16 %v206, %v204
  %v263 = vpack.c.b16 %v207, %v205
  %v264 = vpack.c.b16 %v210, %v208
  %v265 = vpack.c.b16 %v211, %v209
  %v266 = vpack.c.b16 %v214, %v212
  %v267 = vpack.c.b16 %v215, %v213
  %v268 = vpack.c.b16 %v218, %v216
  %v269 = vpack.c.b16 %v219, %v217
  %v270 = vpack.c.b16 %v222, %v220
  %v271 = vpack.c.b16 %v223, %v221
  %v272 = vpack.c.b16 %v226, %v224
  %v273 = vpack.c.b16 %v227, %v225
  %v274 = vpack.c.b16 %v230, %v228
  %v275 = vpack.c.b16 %v231, %v229
  %v276 = vpack.c.b16 %v234, %v232
  %v277 = vpack.c.b16 %v235, %v233
  %v278 = vpack.c.b16 %v238, %v236
  %v279 = vpack.c.b16 %v239, %v237
  %v280 = vpack.c.b16 %v242, %v240
  %v281 = vpack.c.b16 %v243, %v241
  %v282 = vpack.c.b16 %v246, %v244
  %v283 = vpack.c.b16 %v247, %v245
  %v284 = vpack.c.b16 %v250, %v248
  %v285 = vpack.c.b16 %v251, %v249
  %v286 = vpack.c.b16 %v254, %v252
  %v287 = vpack.c.b16 %v255, %v253
  %320 = vmatprep.subr.bf16.mxu0 %v257
  %321 = vmatpush1.bf16.msra.mxu0 %v256
  %322 = vmatprep.subr.bf16.mxu0 %v259
  %323 = vmatpush1.bf16.msra.mxu0 %v258
  %324 = vmatprep.subr.bf16.mxu0 %v261
  %325 = vmatpush1.bf16.msra.mxu0 %v260
  %326 = vmatprep.subr.bf16.mxu0 %v263
  %327 = vmatpush1.bf16.msra.mxu0 %v262
  %328 = vmatprep.subr.bf16.mxu0 %v265
  %329 = vmatpush1.bf16.msra.mxu0 %v264
  %330 = vmatprep.subr.bf16.mxu0 %v267
  %331 = vmatpush1.bf16.msra.mxu0 %v266
  %332 = vmatprep.subr.bf16.mxu0 %v269
  %333 = vmatpush1.bf16.msra.mxu0 %v268
  %334 = vmatprep.subr.bf16.mxu0 %v271
  %335 = vmatpush1.bf16.msra.mxu0 %v270
  %336 = vmatprep.subr.bf16.mxu0 %v273
  %337 = vmatpush1.bf16.msra.mxu0 %v272
  %338 = vmatprep.subr.bf16.mxu0 %v275
  %339 = vmatpush1.bf16.msra.mxu0 %v274
  %340 = vmatprep.subr.bf16.mxu0 %v277
  %341 = vmatpush1.bf16.msra.mxu0 %v276
  %342 = vmatprep.subr.bf16.mxu0 %v279
  %343 = vmatpush1.bf16.msra.mxu0 %v278
  %344 = vmatprep.subr.bf16.mxu0 %v281
  %345 = vmatpush1.bf16.msra.mxu0 %v280
  %346 = vmatprep.subr.bf16.mxu0 %v283
  %347 = vmatpush1.bf16.msra.mxu0 %v282
  %348 = vmatprep.subr.bf16.mxu0 %v285
  %349 = vmatpush1.bf16.msra.mxu0 %v284
  %350 = vmatprep.subr.bf16.mxu0 %v287
  %351 = vmatpush1.bf16.msra.mxu0 %v286
  %352 = vmatprep.mubr.bf16.mxu0 %v109
  %353 = vmatmul.mubr.bf16.gmra.mrb[0].mxu0 %v108
  %v354 = vpop.f32.mrb[0].mxu0
  %v355 = vadd.f32 %v153, %v354
  %v356 = vpop.f32.mrb[0].mxu0
  %v357 = vadd.f32 %v157, %v356
  %v358 = vpop.f32.mrb[0].mxu0
  %v359 = vadd.f32 %v153, %v358
  %v360 = vpop.f32.mrb[0].mxu0
  %v361 = vadd.f32 %v157, %v360
  %362 = vmatprep.mubr.bf16.mxu0 %v111
  %363 = vmatmul.mubr.bf16.gmra.mrb[0].mxu0 %v110
  %v364 = vpop.f32.mrb[0].mxu0
  %v365 = vadd.f32 %v153, %v364
  %v366 = vpop.f32.mrb[0].mxu0
  %v367 = vadd.f32 %v157, %v366
  %v368 = vpop.f32.mrb[0].mxu0
  %v369 = vadd.f32 %v153, %v368
  %v370 = vpop.f32.mrb[0].mxu0
  %v371 = vadd.f32 %v157, %v370
  %372 = vmatprep.mubr.bf16.mxu0 %v113
  %373 = vmatmul.mubr.bf16.gmra.mrb[0].mxu0 %v112
  %v374 = vpop.f32.mrb[0].mxu0
  %v375 = vadd.f32 %v153, %v374
  %v376 = vpop.f32.mrb[0].mxu0
  %v377 = vadd.f32 %v157, %v376
  %v378 = vpop.f32.mrb[0].mxu0
  %v379 = vadd.f32 %v153, %v378
  %v380 = vpop.f32.mrb[0].mxu0
  %v381 = vadd.f32 %v157, %v380
  %382 = vmatprep.mubr.bf16.mxu0 %v115
  %383 = vmatmul.mubr.bf16.gmra.mrb[0].mxu0 %v114
  %v384 = vpop.f32.mrb[0].mxu0
  %v385 = vadd.f32 %v153, %v384
  %v386 = vpop.f32.mrb[0].mxu0
  %v387 = vadd.f32 %v157, %v386
  %v388 = vpop.f32.mrb[0].mxu0
  %v389 = vadd.f32 %v153, %v388
  %v390 = vpop.f32.mrb[0].mxu0
  %v391 = vadd.f32 %v157, %v390
  %392 = vdwg.mxu0
  %393 = vst [vmem:[#allocation3] sm:$0xff] %v355
  %394 = vst [vmem:[#allocation3 + $0x8] sm:$0xff] %v357
  %395 = vst [vmem:[#allocation3 + $0x10] sm:$0xff] %v359
  %396 = vst [vmem:[#allocation3 + $0x18] sm:$0xff] %v361
  %397 = vst [vmem:[#allocation3 + $0x20] sm:$0xff] %v365
  %398 = vst [vmem:[#allocation3 + $0x28] sm:$0xff] %v367
  %399 = vst [vmem:[#allocation3 + $0x30] sm:$0xff] %v369
  %400 = vst [vmem:[#allocation3 + $0x38] sm:$0xff] %v371
  %401 = vst [vmem:[#allocation3 + $0x40] sm:$0xff] %v375
  %402 = vst [vmem:[#allocation3 + $0x48] sm:$0xff] %v377
  %403 = vst [vmem:[#allocation3 + $0x50] sm:$0xff] %v379
  %404 = vst [vmem:[#allocation3 + $0x58] sm:$0xff] %v381
  %405 = vst [vmem:[#allocation3 + $0x60] sm:$0xff] %v385
  %406 = vst [vmem:[#allocation3 + $0x68] sm:$0xff] %v387
  %407 = vst [vmem:[#allocation3 + $0x70] sm:$0xff] %v389
  %408 = vst [vmem:[#allocation3 + $0x78] sm:$0xff] %v391
  %v409 = vld [vmem:[%s2] sm:$0xf]
  %v410 = vld [vmem:[%s2 + $0x4] sm:$0xf]
  %v411 = vld [vmem:[%s2 + $0x8] sm:$0xf]
  %v412 = vld [vmem:[%s2 + $0xc] sm:$0xf]
  %v413 = vld [vmem:[%s2 + $0x10] sm:$0xf]
  %v414 = vld [vmem:[%s2 + $0x14] sm:$0xf]
  %v415 = vld [vmem:[%s2 + $0x18] sm:$0xf]
  %v416 = vld [vmem:[%s2 + $0x1c] sm:$0xf]
  %v417 = vld [vmem:[%s2 + $0x20] sm:$0xf]
  %v418 = vld [vmem:[%s2 + $0x24] sm:$0xf]
  %v419 = vld [vmem:[%s2 + $0x28] sm:$0xf]
  %v420 = vld [vmem:[%s2 + $0x2c] sm:$0xf]
  %v421 = vld [vmem:[%s2 + $0x30] sm:$0xf]
  %v422 = vld [vmem:[%s2 + $0x34] sm:$0xf]
  %v423 = vld [vmem:[%s2 + $0x38] sm:$0xf]
  %v424 = vld [vmem:[%s2 + $0x3c] sm:$0xf]
  %v425 = vld [vmem:[%s3] sm:$0xf]
  %v426 = vld [vmem:[%s3 + $0x4] sm:$0xf]
  %v427 = vld [vmem:[%s3 + $0x8] sm:$0xf]
  %v428 = vld [vmem:[%s3 + $0xc] sm:$0xf]
  %v429 = vld [vmem:[%s3 + $0x10] sm:$0xf]
  %v430 = vld [vmem:[%s3 + $0x14] sm:$0xf]
  %v431 = vld [vmem:[%s3 + $0x18] sm:$0xf]
  %v432 = vld [vmem:[%s3 + $0x1c] sm:$0xf]
  %v433 = vld [vmem:[%s3 + $0x20] sm:$0xf]
  %v434 = vld [vmem:[%s3 + $0x24] sm:$0xf]
  %v435 = vld [vmem:[%s3 + $0x28] sm:$0xf]
  %v436 = vld [vmem:[%s3 + $0x2c] sm:$0xf]
  %v437 = vld [vmem:[%s3 + $0x30] sm:$0xf]
  %v438 = vld [vmem:[%s3 + $0x34] sm:$0xf]
  %v439 = vld [vmem:[%s3 + $0x38] sm:$0xf]
  %v440 = vld [vmem:[%s3 + $0x3c] sm:$0xf]
  %v441 = vld [vmem:[#allocation3] sm:$0xff]
  %v458 = vunpack.c.l.b16 %v409
  %v459 = vunpack.c.l.b16 %v410
  %v460 = vunpack.c.l.b16 %v411
  %v461 = vunpack.c.l.b16 %v412
  %v462 = vunpack.c.l.b16 %v413
  %v463 = vunpack.c.l.b16 %v414
  %v464 = vunpack.c.l.b16 %v415
  %v465 = vunpack.c.l.b16 %v416
  %v466 = vunpack.c.l.b16 %v417
  %v467 = vunpack.c.l.b16 %v418
  %v468 = vunpack.c.l.b16 %v419
  %v469 = vunpack.c.l.b16 %v420
  %v470 = vunpack.c.l.b16 %v421
  %v471 = vunpack.c.l.b16 %v422
  %v472 = vunpack.c.l.b16 %v423
  %v473 = vunpack.c.l.b16 %v424
  %v474 = vpack.c.b16 %v459, %v458
  %v475 = vpack.c.b16 %v461, %v460
  %v476 = vpack.c.b16 %v463, %v462
  %v477 = vpack.c.b16 %v465, %v464
  %v478 = vpack.c.b16 %v467, %v466
  %v479 = vpack.c.b16 %v469, %v468
  %v480 = vpack.c.b16 %v471, %v470
  %v481 = vpack.c.b16 %v473, %v472
  %490 = vmatprep.subr.bf16.mxu0 0
  %491 = vmatpush1.bf16.msra.mxu0 %v474
  %492 = vmatprep.subr.bf16.mxu0 0
  %493 = vmatpush1.bf16.msra.mxu0 %v475
  %494 = vmatprep.subr.bf16.mxu0 0
  %495 = vmatpush1.bf16.msra.mxu0 %v476
  %496 = vmatprep.subr.bf16.mxu0 0
  %497 = vmatpush1.bf16.msra.mxu0 %v477
  %498 = vmatprep.subr.bf16.mxu0 0
  %499 = vmatpush1.bf16.msra.mxu0 %v478
  %500 = vmatprep.subr.bf16.mxu0 0
  %501 = vmatpush1.bf16.msra.mxu0 %v479
  %502 = vmatprep.subr.bf16.mxu0 0
  %503 = vmatpush1.bf16.msra.mxu0 %v480
  %504 = vmatprep.subr.bf16.mxu0 0
  %505 = vmatpush1.bf16.msra.mxu0 %v481
  %506 = vmatprep.subr.bf16.mxu0 0
  %507 = vmatpush1.bf16.msra.mxu0 0
  %508 = vmatprep.subr.bf16.mxu0 0
  %509 = vmatpush1.bf16.msra.mxu0 0
  %510 = vmatprep.subr.bf16.mxu0 0
  %511 = vmatpush1.bf16.msra.mxu0 0
  %512 = vmatprep.subr.bf16.mxu0 0
  %513 = vmatpush1.bf16.msra.mxu0 0
  %514 = vmatprep.subr.bf16.mxu0 0
  %515 = vmatpush1.bf16.msra.mxu0 0
  %516 = vmatprep.subr.bf16.mxu0 0
  %517 = vmatpush1.bf16.msra.mxu0 0
  %518 = vmatprep.subr.bf16.mxu0 0
  %519 = vmatpush1.bf16.msra.mxu0 0
  %520 = vmatprep.subr.bf16.mxu0 0
  %521 = vmatpush1.bf16.msra.mxu0 0
  %522 = vmatprep.mubr.bf16.mxu0 0
  %523 = vmatmul.mubr.bf16.gmra.mrb[0].mxu0 0
  %v524 = vpop.f32.mrb[0].mxu0
  %v525 = vadd.f32 0.0, %v524
  %v526 = vpop.f32.mrb[0].mxu0
  %v527 = vpop.f32.mrb[0].mxu0
  %v528 = vpop.f32.mrb[0].mxu0
  %529 = vdwg.mxu0
  %v530 = vadd.f32 %v441, %v525
  %v531 = vld [vmem:[#allocation3 + $0x78] sm:$0xff]
  %v548 = vunpack.c.l.b16 %v425
  %v549 = vunpack.c.l.b16 %v426
  %v550 = vunpack.c.l.b16 %v427
  %v551 = vunpack.c.l.b16 %v428
  %v552 = vunpack.c.l.b16 %v429
  %v553 = vunpack.c.l.b16 %v430
  %v554 = vunpack.c.l.b16 %v431
  %v555 = vunpack.c.l.b16 %v432
  %v556 = vunpack.c.l.b16 %v433
  %v557 = vunpack.c.l.b16 %v434
  %v558 = vunpack.c.l.b16 %v435
  %v559 = vunpack.c.l.b16 %v436
  %v560 = vunpack.c.l.b16 %v437
  %v561 = vunpack.c.l.b16 %v438
  %v562 = vunpack.c.l.b16 %v439
  %v563 = vunpack.c.l.b16 %v440
  %v564 = vpack.c.b16 %v549, %v548
  %v565 = vpack.c.b16 %v551, %v550
  %v566 = vpack.c.b16 %v553, %v552
  %v567 = vpack.c.b16 %v555, %v554
  %v568 = vpack.c.b16 %v557, %v556
  %v569 = vpack.c.b16 %v559, %v558
  %v570 = vpack.c.b16 %v561, %v560
  %v571 = vpack.c.b16 %v563, %v562
  %580 = vmatprep.subr.bf16.mxu0 0
  %581 = vmatpush1.bf16.msra.mxu0 %v564
  %582 = vmatprep.subr.bf16.mxu0 0
  %583 = vmatpush1.bf16.msra.mxu0 %v565
  %584 = vmatprep.subr.bf16.mxu0 0
  %585 = vmatpush1.bf16.msra.mxu0 %v566
  %586 = vmatprep.subr.bf16.mxu0 0
  %587 = vmatpush1.bf16.msra.mxu0 %v567
  %588 = vmatprep.subr.bf16.mxu0 0
  %589 = vmatpush1.bf16.msra.mxu0 %v568
  %590 = vmatprep.subr.bf16.mxu0 0
  %591 = vmatpush1.bf16.msra.mxu0 %v569
  %592 = vmatprep.subr.bf16.mxu0 0
  %593 = vmatpush1.bf16.msra.mxu0 %v570
  %594 = vmatprep.subr.bf16.mxu0 0
  %595 = vmatpush1.bf16.msra.mxu0 %v571
  %596 = vmatprep.subr.bf16.mxu0 0
  %597 = vmatpush1.bf16.msra.mxu0 0
  %598 = vmatprep.subr.bf16.mxu0 0
  %599 = vmatpush1.bf16.msra.mxu0 0
  %600 = vmatprep.subr.bf16.mxu0 0
  %601 = vmatpush1.bf16.msra.mxu0 0
  %602 = vmatprep.subr.bf16.mxu0 0
  %603 = vmatpush1.bf16.msra.mxu0 0
  %604 = vmatprep.subr.bf16.mxu0 0
  %605 = vmatpush1.bf16.msra.mxu0 0
  %606 = vmatprep.subr.bf16.mxu0 0
  %607 = vmatpush1.bf16.msra.mxu0 0
  %608 = vmatprep.subr.bf16.mxu0 0
  %609 = vmatpush1.bf16.msra.mxu0 0
  %610 = vmatprep.subr.bf16.mxu0 0
  %611 = vmatpush1.bf16.msra.mxu0 0
  %612 = vmatprep.mubr.bf16.mxu0 0
  %613 = vmatmul.mubr.bf16.gmra.mrb[0].mxu0 0
  %v614 = vpop.f32.mrb[0].mxu0
  %v615 = vadd.f32 0.0, %v614
  %v616 = vpop.f32.mrb[0].mxu0
  %v617 = vpop.f32.mrb[0].mxu0
  %v618 = vpop.f32.mrb[0].mxu0
  %619 = vdwg.mxu0
  %v620 = vadd.f32 %v531, %v615
  %v621 = vtanh.pop %v530
  %v622 = vtanh.pop %v620
  %v623 = vpack.c.bf16 %v621, %v621
  %624 = vst [vmem:[%s5] sm:$0xf] %v623
  %v625 = vpack.c.bf16 %v622, %v622
  %s626 = scalar_lea.vmem %s5, 56
  %627 = vst [vmem:[%s626 + $0x4] sm:$0xf] %v625
  %v628 = vld [vmem:[#allocation3 + $0x10] sm:$0xff]
  %629 = vmatprep.subr.bf16.mxu0 0
  %630 = vmatpush1.bf16.msra.mxu0 %v474
  %631 = vmatprep.subr.bf16.mxu0 0
  %632 = vmatpush1.bf16.msra.mxu0 %v475
  %633 = vmatprep.subr.bf16.mxu0 0
  %634 = vmatpush1.bf16.msra.mxu0 %v476
  %635 = vmatprep.subr.bf16.mxu0 0
  %636 = vmatpush1.bf16.msra.mxu0 %v477
  %637 = vmatprep.subr.bf16.mxu0 0
  %638 = vmatpush1.bf16.msra.mxu0 %v478
  %639 = vmatprep.subr.bf16.mxu0 0
  %640 = vmatpush1.bf16.msra.mxu0 %v479
  %641 = vmatprep.subr.bf16.mxu0 0
  %642 = vmatpush1.bf16.msra.mxu0 %v480
  %643 = vmatprep.subr.bf16.mxu0 0
  %644 = vmatpush1.bf16.msra.mxu0 %v481
  %645 = vmatprep.subr.bf16.mxu0 0
  %646 = vmatpush1.bf16.msra.mxu0 0
  %647 = vmatprep.subr.bf16.mxu0 0
  %648 = vmatpush1.bf16.msra.mxu0 0
  %649 = vmatprep.subr.bf16.mxu0 0
  %650 = vmatpush1.bf16.msra.mxu0 0
  %651 = vmatprep.subr.bf16.mxu0 0
  %652 = vmatpush1.bf16.msra.mxu0 0
  %653 = vmatprep.subr.bf16.mxu0 0
  %654 = vmatpush1.bf16.msra.mxu0 0
  %655 = vmatprep.subr.bf16.mxu0 0
  %656 = vmatpush1.bf16.msra.mxu0 0
  %657 = vmatprep.subr.bf16.mxu0 0
  %658 = vmatpush1.bf16.msra.mxu0 0
  %659 = vmatprep.subr.bf16.mxu0 0
  %660 = vmatpush1.bf16.msra.mxu0 0
  %661 = vmatprep.mubr.bf16.mxu0 0
  %662 = vmatmul.mubr.bf16.gmra.mrb[0].mxu0 %v623
  %v663 = vpop.f32.mrb[0].mxu0
  %v664 = vadd.f32 0.0, %v663
  %v665 = vpop.f32.mrb[0].mxu0
  %v666 = vpop.f32.mrb[0].mxu0
  %v667 = vpop.f32.mrb[0].mxu0
  %668 = vdwg.mxu0
  %v669 = vadd.f32 %v628, %v664
  %v670 = vld [vmem:[#allocation3 + $0x68] sm:$0xff]
  %671 = vmatprep.subr.bf16.mxu0 0
  %672 = vmatpush1.bf16.msra.mxu0 %v564
  %673 = vmatprep.subr.bf16.mxu0 0
  %674 = vmatpush1.bf16.msra.mxu0 %v565
  %675 = vmatprep.subr.bf16.mxu0 0
  %676 = vmatpush1.bf16.msra.mxu0 %v566
  %677 = vmatprep.subr.bf16.mxu0 0
  %678 = vmatpush1.bf16.msra.mxu0 %v567
  %679 = vmatprep.subr.bf16.mxu0 0
  %680 = vmatpush1.bf16.msra.mxu0 %v568
  %681 = vmatprep.subr.bf16.mxu0 0
  %682 = vmatpush1.bf16.msra.mxu0 %v569
  %683 = vmatprep.subr.bf16.mxu0 0
  %684 = vmatpush1.bf16.msra.mxu0 %v570
  %685 = vmatprep.subr.bf16.mxu0 0
  %686 = vmatpush1.bf16.msra.mxu0 %v571
  %687 = vmatprep.subr.bf16.mxu0 0
  %688 = vmatpush1.bf16.msra.mxu0 0
  %689 = vmatprep.subr.bf16.mxu0 0
  %690 = vmatpush1.bf16.msra.mxu0 0
  %691 = vmatprep.subr.bf16.mxu0 0
  %692 = vmatpush1.bf16.msra.mxu0 0
  %693 = vmatprep.subr.bf16.mxu0 0
  %694 = vmatpush1.bf16.msra.mxu0 0
  %695 = vmatprep.subr.bf16.mxu0 0
  %696 = vmatpush1.bf16.msra.mxu0 0
  %697 = vmatprep.subr.bf16.mxu0 0
  %698 = vmatpush1.bf16.msra.mxu0 0
  %699 = vmatprep.subr.bf16.mxu0 0
  %700 = vmatpush1.bf16.msra.mxu0 0
  %701 = vmatprep.subr.bf16.mxu0 0
  %702 = vmatpush1.bf16.msra.mxu0 0
  %703 = vmatprep.mubr.bf16.mxu0 0
  %704 = vmatmul.mubr.bf16.gmra.mrb[0].mxu0 %v625
  %v705 = vpop.f32.mrb[0].mxu0
  %v706 = vadd.f32 0.0, %v705
  %v707 = vpop.f32.mrb[0].mxu0
  %v708 = vpop.f32.mrb[0].mxu0
  %v709 = vpop.f32.mrb[0].mxu0
  %710 = vdwg.mxu0
  %v711 = vadd.f32 %v670, %v706
  %v712 = vtanh.pop %v669
  %v713 = vtanh.pop %v711
  %v714 = vpack.c.bf16 %v712, %v712
  %s715 = scalar_lea.vmem %s5, 8
  %716 = vst [vmem:[%s715] sm:$0xf] %v714
  %v717 = vpack.c.bf16 %v713, %v713
  %s718 = scalar_lea.vmem %s5, 48
  %719 = vst [vmem:[%s718 + $0x4] sm:$0xf] %v717
  %v720 = vld [vmem:[#allocation3 + $0x20] sm:$0xff]
  %721 = vmatprep.subr.bf16.mxu0 0
  %722 = vmatpush1.bf16.msra.mxu0 %v474
  %723 = vmatprep.subr.bf16.mxu0 0
  %724 = vmatpush1.bf16.msra.mxu0 %v475
  %725 = vmatprep.subr.bf16.mxu0 0
  %726 = vmatpush1.bf16.msra.mxu0 %v476
  %727 = vmatprep.subr.bf16.mxu0 0
  %728 = vmatpush1.bf16.msra.mxu0 %v477
  %729 = vmatprep.subr.bf16.mxu0 0
  %730 = vmatpush1.bf16.msra.mxu0 %v478
  %731 = vmatprep.subr.bf16.mxu0 0
  %732 = vmatpush1.bf16.msra.mxu0 %v479
  %733 = vmatprep.subr.bf16.mxu0 0
  %734 = vmatpush1.bf16.msra.mxu0 %v480
  %735 = vmatprep.subr.bf16.mxu0 0
  %736 = vmatpush1.bf16.msra.mxu0 %v481
  %737 = vmatprep.subr.bf16.mxu0 0
  %738 = vmatpush1.bf16.msra.mxu0 0
  %739 = vmatprep.subr.bf16.mxu0 0
  %740 = vmatpush1.bf16.msra.mxu0 0
  %741 = vmatprep.subr.bf16.mxu0 0
  %742 = vmatpush1.bf16.msra.mxu0 0
  %743 = vmatprep.subr.bf16.mxu0 0
  %744 = vmatpush1.bf16.msra.mxu0 0
  %745 = vmatprep.subr.bf16.mxu0 0
  %746 = vmatpush1.bf16.msra.mxu0 0
  %747 = vmatprep.subr.bf16.mxu0 0
  %748 = vmatpush1.bf16.msra.mxu0 0
  %749 = vmatprep.subr.bf16.mxu0 0
  %750 = vmatpush1.bf16.msra.mxu0 0
  %751 = vmatprep.subr.bf16.mxu0 0
  %752 = vmatpush1.bf16.msra.mxu0 0
  %753 = vmatprep.mubr.bf16.mxu0 0
  %754 = vmatmul.mubr.bf16.gmra.mrb[0].mxu0 %v714
  %v755 = vpop.f32.mrb[0].mxu0
  %v756 = vadd.f32 0.0, %v755
  %v757 = vpop.f32.mrb[0].mxu0
  %v758 = vpop.f32.mrb[0].mxu0
  %v759 = vpop.f32.mrb[0].mxu0
  %760 = vdwg.mxu0
  %v761 = vadd.f32 %v720, %v756
  %v762 = vld [vmem:[#allocation3 + $0x58] sm:$0xff]
  %763 = vmatprep.subr.bf16.mxu0 0
  %764 = vmatpush1.bf16.msra.mxu0 %v564
  %765 = vmatprep.subr.bf16.mxu0 0
  %766 = vmatpush1.bf16.msra.mxu0 %v565
  %767 = vmatprep.subr.bf16.mxu0 0
  %768 = vmatpush1.bf16.msra.mxu0 %v566
  %769 = vmatprep.subr.bf16.mxu0 0
  %770 = vmatpush1.bf16.msra.mxu0 %v567
  %771 = vmatprep.subr.bf16.mxu0 0
  %772 = vmatpush1.bf16.msra.mxu0 %v568
  %773 = vmatprep.subr.bf16.mxu0 0
  %774 = vmatpush1.bf16.msra.mxu0 %v569
  %775 = vmatprep.subr.bf16.mxu0 0
  %776 = vmatpush1.bf16.msra.mxu0 %v570
  %777 = vmatprep.subr.bf16.mxu0 0
  %778 = vmatpush1.bf16.msra.mxu0 %v571
  %779 = vmatprep.subr.bf16.mxu0 0
  %780 = vmatpush1.bf16.msra.mxu0 0
  %781 = vmatprep.subr.bf16.mxu0 0
  %782 = vmatpush1.bf16.msra.mxu0 0
  %783 = vmatprep.subr.bf16.mxu0 0
  %784 = vmatpush1.bf16.msra.mxu0 0
  %785 = vmatprep.subr.bf16.mxu0 0
  %786 = vmatpush1.bf16.msra.mxu0 0
  %787 = vmatprep.subr.bf16.mxu0 0
  %788 = vmatpush1.bf16.msra.mxu0 0
  %789 = vmatprep.subr.bf16.mxu0 0
  %790 = vmatpush1.bf16.msra.mxu0 0
  %791 = vmatprep.subr.bf16.mxu0 0
  %792 = vmatpush1.bf16.msra.mxu0 0
  %793 = vmatprep.subr.bf16.mxu0 0
  %794 = vmatpush1.bf16.msra.mxu0 0
  %795 = vmatprep.mubr.bf16.mxu0 0
  %796 = vmatmul.mubr.bf16.gmra.mrb[0].mxu0 %v717
  %v797 = vpop.f32.mrb[0].mxu0
  %v798 = vadd.f32 0.0, %v797
  %v799 = vpop.f32.mrb[0].mxu0
  %v800 = vpop.f32.mrb[0].mxu0
  %v801 = vpop.f32.mrb[0].mxu0
  %802 = vdwg.mxu0
  %v803 = vadd.f32 %v762, %v798
  %v804 = vtanh.pop %v761
  %v805 = vtanh.pop %v803
  %v806 = vpack.c.bf16 %v804, %v804
  %s807 = scalar_lea.vmem %s5, 16
  %808 = vst [vmem:[%s807] sm:$0xf] %v806
  %v809 = vpack.c.bf16 %v805, %v805
  %s810 = scalar_lea.vmem %s5, 40
  %811 = vst [vmem:[%s810 + $0x4] sm:$0xf] %v809
  %v812 = vld [vmem:[#allocation3 + $0x30] sm:$0xff]
  %813 = vmatprep.subr.bf16.mxu0 0
  %814 = vmatpush1.bf16.msra.mxu0 %v474
  %815 = vmatprep.subr.bf16.mxu0 0
  %816 = vmatpush1.bf16.msra.mxu0 %v475
  %817 = vmatprep.subr.bf16.mxu0 0
  %818 = vmatpush1.bf16.msra.mxu0 %v476
  %819 = vmatprep.subr.bf16.mxu0 0
  %820 = vmatpush1.bf16.msra.mxu0 %v477
  %821 = vmatprep.subr.bf16.mxu0 0
  %822 = vmatpush1.bf16.msra.mxu0 %v478
  %823 = vmatprep.subr.bf16.mxu0 0
  %824 = vmatpush1.bf16.msra.mxu0 %v479
  %825 = vmatprep.subr.bf16.mxu0 0
  %826 = vmatpush1.bf16.msra.mxu0 %v480
  %827 = vmatprep.subr.bf16.mxu0 0
  %828 = vmatpush1.bf16.msra.mxu0 %v481
  %829 = vmatprep.subr.bf16.mxu0 0
  %830 = vmatpush1.bf16.msra.mxu0 0
  %831 = vmatprep.subr.bf16.mxu0 0
  %832 = vmatpush1.bf16.msra.mxu0 0
  %833 = vmatprep.subr.bf16.mxu0 0
  %834 = vmatpush1.bf16.msra.mxu0 0
  %835 = vmatprep.subr.bf16.mxu0 0
  %836 = vmatpush1.bf16.msra.mxu0 0
  %837 = vmatprep.subr.bf16.mxu0 0
  %838 = vmatpush1.bf16.msra.mxu0 0
  %839 = vmatprep.subr.bf16.mxu0 0
  %840 = vmatpush1.bf16.msra.mxu0 0
  %841 = vmatprep.subr.bf16.mxu0 0
  %842 = vmatpush1.bf16.msra.mxu0 0
  %843 = vmatprep.subr.bf16.mxu0 0
  %844 = vmatpush1.bf16.msra.mxu0 0
  %845 = vmatprep.mubr.bf16.mxu0 0
  %846 = vmatmul.mubr.bf16.gmra.mrb[0].mxu0 %v806
  %v847 = vpop.f32.mrb[0].mxu0
  %v848 = vadd.f32 0.0, %v847
  %v849 = vpop.f32.mrb[0].mxu0
  %v850 = vpop.f32.mrb[0].mxu0
  %v851 = vpop.f32.mrb[0].mxu0
  %852 = vdwg.mxu0
  %v853 = vadd.f32 %v812, %v848
  %v854 = vld [vmem:[#allocation3 + $0x48] sm:$0xff]
  %855 = vmatprep.subr.bf16.mxu0 0
  %856 = vmatpush1.bf16.msra.mxu0 %v564
  %857 = vmatprep.subr.bf16.mxu0 0
  %858 = vmatpush1.bf16.msra.mxu0 %v565
  %859 = vmatprep.subr.bf16.mxu0 0
  %860 = vmatpush1.bf16.msra.mxu0 %v566
  %861 = vmatprep.subr.bf16.mxu0 0
  %862 = vmatpush1.bf16.msra.mxu0 %v567
  %863 = vmatprep.subr.bf16.mxu0 0
  %864 = vmatpush1.bf16.msra.mxu0 %v568
  %865 = vmatprep.subr.bf16.mxu0 0
  %866 = vmatpush1.bf16.msra.mxu0 %v569
  %867 = vmatprep.subr.bf16.mxu0 0
  %868 = vmatpush1.bf16.msra.mxu0 %v570
  %869 = vmatprep.subr.bf16.mxu0 0
  %870 = vmatpush1.bf16.msra.mxu0 %v571
  %871 = vmatprep.subr.bf16.mxu0 0
  %872 = vmatpush1.bf16.msra.mxu0 0
  %873 = vmatprep.subr.bf16.mxu0 0
  %874 = vmatpush1.bf16.msra.mxu0 0
  %875 = vmatprep.subr.bf16.mxu0 0
  %876 = vmatpush1.bf16.msra.mxu0 0
  %877 = vmatprep.subr.bf16.mxu0 0
  %878 = vmatpush1.bf16.msra.mxu0 0
  %879 = vmatprep.subr.bf16.mxu0 0
  %880 = vmatpush1.bf16.msra.mxu0 0
  %881 = vmatprep.subr.bf16.mxu0 0
  %882 = vmatpush1.bf16.msra.mxu0 0
  %883 = vmatprep.subr.bf16.mxu0 0
  %884 = vmatpush1.bf16.msra.mxu0 0
  %885 = vmatprep.subr.bf16.mxu0 0
  %886 = vmatpush1.bf16.msra.mxu0 0
  %887 = vmatprep.mubr.bf16.mxu0 0
  %888 = vmatmul.mubr.bf16.gmra.mrb[0].mxu0 %v809
  %v889 = vpop.f32.mrb[0].mxu0
  %v890 = vadd.f32 0.0, %v889
  %v891 = vpop.f32.mrb[0].mxu0
  %v892 = vpop.f32.mrb[0].mxu0
  %v893 = vpop.f32.mrb[0].mxu0
  %894 = vdwg.mxu0
  %v895 = vadd.f32 %v854, %v890
  %v896 = vtanh.pop %v853
  %v897 = vtanh.pop %v895
  %v898 = vpack.c.bf16 %v896, %v896
  %s899 = scalar_lea.vmem %s5, 24
  %900 = vst [vmem:[%s899] sm:$0xf] %v898
  %v901 = vpack.c.bf16 %v897, %v897
  %s902 = scalar_lea.vmem %s5, 32
  %903 = vst [vmem:[%s902 + $0x4] sm:$0xf] %v901
  %v904 = vld [vmem:[#allocation3 + $0x40] sm:$0xff]
  %905 = vmatprep.subr.bf16.mxu0 0
  %906 = vmatpush1.bf16.msra.mxu0 %v474
  %907 = vmatprep.subr.bf16.mxu0 0
  %908 = vmatpush1.bf16.msra.mxu0 %v475
  %909 = vmatprep.subr.bf16.mxu0 0
  %910 = vmatpush1.bf16.msra.mxu0 %v476
  %911 = vmatprep.subr.bf16.mxu0 0
  %912 = vmatpush1.bf16.msra.mxu0 %v477
  %913 = vmatprep.subr.bf16.mxu0 0
  %914 = vmatpush1.bf16.msra.mxu0 %v478
  %915 = vmatprep.subr.bf16.mxu0 0
  %916 = vmatpush1.bf16.msra.mxu0 %v479
  %917 = vmatprep.subr.bf16.mxu0 0
  %918 = vmatpush1.bf16.msra.mxu0 %v480
  %919 = vmatprep.subr.bf16.mxu0 0
  %920 = vmatpush1.bf16.msra.mxu0 %v481
  %921 = vmatprep.subr.bf16.mxu0 0
  %922 = vmatpush1.bf16.msra.mxu0 0
  %923 = vmatprep.subr.bf16.mxu0 0
  %924 = vmatpush1.bf16.msra.mxu0 0
  %925 = vmatprep.subr.bf16.mxu0 0
  %926 = vmatpush1.bf16.msra.mxu0 0
  %927 = vmatprep.subr.bf16.mxu0 0
  %928 = vmatpush1.bf16.msra.mxu0 0
  %929 = vmatprep.subr.bf16.mxu0 0
  %930 = vmatpush1.bf16.msra.mxu0 0
  %931 = vmatprep.subr.bf16.mxu0 0
  %932 = vmatpush1.bf16.msra.mxu0 0
  %933 = vmatprep.subr.bf16.mxu0 0
  %934 = vmatpush1.bf16.msra.mxu0 0
  %935 = vmatprep.subr.bf16.mxu0 0
  %936 = vmatpush1.bf16.msra.mxu0 0
  %937 = vmatprep.mubr.bf16.mxu0 0
  %938 = vmatmul.mubr.bf16.gmra.mrb[0].mxu0 %v898
  %v939 = vpop.f32.mrb[0].mxu0
  %v940 = vadd.f32 0.0, %v939
  %v941 = vpop.f32.mrb[0].mxu0
  %v942 = vpop.f32.mrb[0].mxu0
  %v943 = vpop.f32.mrb[0].mxu0
  %944 = vdwg.mxu0
  %v945 = vadd.f32 %v904, %v940
  %v946 = vld [vmem:[#allocation3 + $0x38] sm:$0xff]
  %947 = vmatprep.subr.bf16.mxu0 0
  %948 = vmatpush1.bf16.msra.mxu0 %v564
  %949 = vmatprep.subr.bf16.mxu0 0
  %950 = vmatpush1.bf16.msra.mxu0 %v565
  %951 = vmatprep.subr.bf16.mxu0 0
  %952 = vmatpush1.bf16.msra.mxu0 %v566
  %953 = vmatprep.subr.bf16.mxu0 0
  %954 = vmatpush1.bf16.msra.mxu0 %v567
  %955 = vmatprep.subr.bf16.mxu0 0
  %956 = vmatpush1.bf16.msra.mxu0 %v568
  %957 = vmatprep.subr.bf16.mxu0 0
  %958 = vmatpush1.bf16.msra.mxu0 %v569
  %959 = vmatprep.subr.bf16.mxu0 0
  %960 = vmatpush1.bf16.msra.mxu0 %v570
  %961 = vmatprep.subr.bf16.mxu0 0
  %962 = vmatpush1.bf16.msra.mxu0 %v571
  %963 = vmatprep.subr.bf16.mxu0 0
  %964 = vmatpush1.bf16.msra.mxu0 0
  %965 = vmatprep.subr.bf16.mxu0 0
  %966 = vmatpush1.bf16.msra.mxu0 0
  %967 = vmatprep.subr.bf16.mxu0 0
  %968 = vmatpush1.bf16.msra.mxu0 0
  %969 = vmatprep.subr.bf16.mxu0 0
  %970 = vmatpush1.bf16.msra.mxu0 0
  %971 = vmatprep.subr.bf16.mxu0 0
  %972 = vmatpush1.bf16.msra.mxu0 0
  %973 = vmatprep.subr.bf16.mxu0 0
  %974 = vmatpush1.bf16.msra.mxu0 0
  %975 = vmatprep.subr.bf16.mxu0 0
  %976 = vmatpush1.bf16.msra.mxu0 0
  %977 = vmatprep.subr.bf16.mxu0 0
  %978 = vmatpush1.bf16.msra.mxu0 0
  %979 = vmatprep.mubr.bf16.mxu0 0
  %980 = vmatmul.mubr.bf16.gmra.mrb[0].mxu0 %v901
  %v981 = vpop.f32.mrb[0].mxu0
  %v982 = vadd.f32 0.0, %v981
  %v983 = vpop.f32.mrb[0].mxu0
  %v984 = vpop.f32.mrb[0].mxu0
  %v985 = vpop.f32.mrb[0].mxu0
  %986 = vdwg.mxu0
  %v987 = vadd.f32 %v946, %v982
  %v988 = vtanh.pop %v945
  %v989 = vtanh.pop %v987
  %v990 = vpack.c.bf16 %v988, %v988
  %991 = vst [vmem:[%s902] sm:$0xf] %v990
  %v992 = vpack.c.bf16 %v989, %v989
  %993 = vst [vmem:[%s899 + $0x4] sm:$0xf] %v992
  %v994 = vld [vmem:[#allocation3 + $0x50] sm:$0xff]
  %995 = vmatprep.subr.bf16.mxu0 0
  %996 = vmatpush1.bf16.msra.mxu0 %v474
  %997 = vmatprep.subr.bf16.mxu0 0
  %998 = vmatpush1.bf16.msra.mxu0 %v475
  %999 = vmatprep.subr.bf16.mxu0 0
  %1000 = vmatpush1.bf16.msra.mxu0 %v476
  %1001 = vmatprep.subr.bf16.mxu0 0
  %1002 = vmatpush1.bf16.msra.mxu0 %v477
  %1003 = vmatprep.subr.bf16.mxu0 0
  %1004 = vmatpush1.bf16.msra.mxu0 %v478
  %1005 = vmatprep.subr.bf16.mxu0 0
  %1006 = vmatpush1.bf16.msra.mxu0 %v479
  %1007 = vmatprep.subr.bf16.mxu0 0
  %1008 = vmatpush1.bf16.msra.mxu0 %v480
  %1009 = vmatprep.subr.bf16.mxu0 0
  %1010 = vmatpush1.bf16.msra.mxu0 %v481
  %1011 = vmatprep.subr.bf16.mxu0 0
  %1012 = vmatpush1.bf16.msra.mxu0 0
  %1013 = vmatprep.subr.bf16.mxu0 0
  %1014 = vmatpush1.bf16.msra.mxu0 0
  %1015 = vmatprep.subr.bf16.mxu0 0
  %1016 = vmatpush1.bf16.msra.mxu0 0
  %1017 = vmatprep.subr.bf16.mxu0 0
  %1018 = vmatpush1.bf16.msra.mxu0 0
  %1019 = vmatprep.subr.bf16.mxu0 0
  %1020 = vmatpush1.bf16.msra.mxu0 0
  %1021 = vmatprep.subr.bf16.mxu0 0
  %1022 = vmatpush1.bf16.msra.mxu0 0
  %1023 = vmatprep.subr.bf16.mxu0 0
  %1024 = vmatpush1.bf16.msra.mxu0 0
  %1025 = vmatprep.subr.bf16.mxu0 0
  %1026 = vmatpush1.bf16.msra.mxu0 0
  %1027 = vmatprep.mubr.bf16.mxu0 0
  %1028 = vmatmul.mubr.bf16.gmra.mrb[0].mxu0 %v990
  %v1029 = vpop.f32.mrb[0].mxu0
  %v1030 = vadd.f32 0.0, %v1029
  %v1031 = vpop.f32.mrb[0].mxu0
  %v1032 = vpop.f32.mrb[0].mxu0
  %v1033 = vpop.f32.mrb[0].mxu0
  %1034 = vdwg.mxu0
  %v1035 = vadd.f32 %v994, %v1030
  %v1036 = vld [vmem:[#allocation3 + $0x28] sm:$0xff]
  %1037 = vmatprep.subr.bf16.mxu0 0
  %1038 = vmatpush1.bf16.msra.mxu0 %v564
  %1039 = vmatprep.subr.bf16.mxu0 0
  %1040 = vmatpush1.bf16.msra.mxu0 %v565
  %1041 = vmatprep.subr.bf16.mxu0 0
  %1042 = vmatpush1.bf16.msra.mxu0 %v566
  %1043 = vmatprep.subr.bf16.mxu0 0
  %1044 = vmatpush1.bf16.msra.mxu0 %v567
  %1045 = vmatprep.subr.bf16.mxu0 0
  %1046 = vmatpush1.bf16.msra.mxu0 %v568
  %1047 = vmatprep.subr.bf16.mxu0 0
  %1048 = vmatpush1.bf16.msra.mxu0 %v569
  %1049 = vmatprep.subr.bf16.mxu0 0
  %1050 = vmatpush1.bf16.msra.mxu0 %v570
  %1051 = vmatprep.subr.bf16.mxu0 0
  %1052 = vmatpush1.bf16.msra.mxu0 %v571
  %1053 = vmatprep.subr.bf16.mxu0 0
  %1054 = vmatpush1.bf16.msra.mxu0 0
  %1055 = vmatprep.subr.bf16.mxu0 0
  %1056 = vmatpush1.bf16.msra.mxu0 0
  %1057 = vmatprep.subr.bf16.mxu0 0
  %1058 = vmatpush1.bf16.msra.mxu0 0
  %1059 = vmatprep.subr.bf16.mxu0 0
  %1060 = vmatpush1.bf16.msra.mxu0 0
  %1061 = vmatprep.subr.bf16.mxu0 0
  %1062 = vmatpush1.bf16.msra.mxu0 0
  %1063 = vmatprep.subr.bf16.mxu0 0
  %1064 = vmatpush1.bf16.msra.mxu0 0
  %1065 = vmatprep.subr.bf16.mxu0 0
  %1066 = vmatpush1.bf16.msra.mxu0 0
  %1067 = vmatprep.subr.bf16.mxu0 0
  %1068 = vmatpush1.bf16.msra.mxu0 0
  %1069 = vmatprep.mubr.bf16.mxu0 0
  %1070 = vmatmul.mubr.bf16.gmra.mrb[0].mxu0 %v992
  %v1071 = vpop.f32.mrb[0].mxu0
  %v1072 = vadd.f32 0.0, %v1071
  %v1073 = vpop.f32.mrb[0].mxu0
  %v1074 = vpop.f32.mrb[0].mxu0
  %v1075 = vpop.f32.mrb[0].mxu0
  %1076 = vdwg.mxu0
  %v1077 = vadd.f32 %v1036, %v1072
  %v1078 = vtanh.pop %v1035
  %v1079 = vtanh.pop %v1077
  %v1080 = vpack.c.bf16 %v1078, %v1078
  %1081 = vst [vmem:[%s810] sm:$0xf] %v1080
  %v1082 = vpack.c.bf16 %v1079, %v1079
  %1083 = vst [vmem:[%s807 + $0x4] sm:$0xf] %v1082
  %v1084 = vld [vmem:[#allocation3 + $0x60] sm:$0xff]
  %1085 = vmatprep.subr.bf16.mxu0 0
  %1086 = vmatpush1.bf16.msra.mxu0 %v474
  %1087 = vmatprep.subr.bf16.mxu0 0
  %1088 = vmatpush1.bf16.msra.mxu0 %v475
  %1089 = vmatprep.subr.bf16.mxu0 0
  %1090 = vmatpush1.bf16.msra.mxu0 %v476
  %1091 = vmatprep.subr.bf16.mxu0 0
  %1092 = vmatpush1.bf16.msra.mxu0 %v477
  %1093 = vmatprep.subr.bf16.mxu0 0
  %1094 = vmatpush1.bf16.msra.mxu0 %v478
  %1095 = vmatprep.subr.bf16.mxu0 0
  %1096 = vmatpush1.bf16.msra.mxu0 %v479
  %1097 = vmatprep.subr.bf16.mxu0 0
  %1098 = vmatpush1.bf16.msra.mxu0 %v480
  %1099 = vmatprep.subr.bf16.mxu0 0
  %1100 = vmatpush1.bf16.msra.mxu0 %v481
  %1101 = vmatprep.subr.bf16.mxu0 0
  %1102 = vmatpush1.bf16.msra.mxu0 0
  %1103 = vmatprep.subr.bf16.mxu0 0
  %1104 = vmatpush1.bf16.msra.mxu0 0
  %1105 = vmatprep.subr.bf16.mxu0 0
  %1106 = vmatpush1.bf16.msra.mxu0 0
  %1107 = vmatprep.subr.bf16.mxu0 0
  %1108 = vmatpush1.bf16.msra.mxu0 0
  %1109 = vmatprep.subr.bf16.mxu0 0
  %1110 = vmatpush1.bf16.msra.mxu0 0
  %1111 = vmatprep.subr.bf16.mxu0 0
  %1112 = vmatpush1.bf16.msra.mxu0 0
  %1113 = vmatprep.subr.bf16.mxu0 0
  %1114 = vmatpush1.bf16.msra.mxu0 0
  %1115 = vmatprep.subr.bf16.mxu0 0
  %1116 = vmatpush1.bf16.msra.mxu0 0
  %1117 = vmatprep.mubr.bf16.mxu0 0
  %1118 = vmatmul.mubr.bf16.gmra.mrb[0].mxu0 %v1080
  %v1119 = vpop.f32.mrb[0].mxu0
  %v1120 = vadd.f32 0.0, %v1119
  %v1121 = vpop.f32.mrb[0].mxu0
  %v1122 = vpop.f32.mrb[0].mxu0
  %v1123 = vpop.f32.mrb[0].mxu0
  %1124 = vdwg.mxu0
  %v1125 = vadd.f32 %v1084, %v1120
  %v1126 = vld [vmem:[#allocation3 + $0x18] sm:$0xff]
  %1127 = vmatprep.subr.bf16.mxu0 0
  %1128 = vmatpush1.bf16.msra.mxu0 %v564
  %1129 = vmatprep.subr.bf16.mxu0 0
  %1130 = vmatpush1.bf16.msra.mxu0 %v565
  %1131 = vmatprep.subr.bf16.mxu0 0
  %1132 = vmatpush1.bf16.msra.mxu0 %v566
  %1133 = vmatprep.subr.bf16.mxu0 0
  %1134 = vmatpush1.bf16.msra.mxu0 %v567
  %1135 = vmatprep.subr.bf16.mxu0 0
  %1136 = vmatpush1.bf16.msra.mxu0 %v568
  %1137 = vmatprep.subr.bf16.mxu0 0
  %1138 = vmatpush1.bf16.msra.mxu0 %v569
  %1139 = vmatprep.subr.bf16.mxu0 0
  %1140 = vmatpush1.bf16.msra.mxu0 %v570
  %1141 = vmatprep.subr.bf16.mxu0 0
  %1142 = vmatpush1.bf16.msra.mxu0 %v571
  %1143 = vmatprep.subr.bf16.mxu0 0
  %1144 = vmatpush1.bf16.msra.mxu0 0
  %1145 = vmatprep.subr.bf16.mxu0 0
  %1146 = vmatpush1.bf16.msra.mxu0 0
  %1147 = vmatprep.subr.bf16.mxu0 0
  %1148 = vmatpush1.bf16.msra.mxu0 0
  %1149 = vmatprep.subr.bf16.mxu0 0
  %1150 = vmatpush1.bf16.msra.mxu0 0
  %1151 = vmatprep.subr.bf16.mxu0 0
  %1152 = vmatpush1.bf16.msra.mxu0 0
  %1153 = vmatprep.subr.bf16.mxu0 0
  %1154 = vmatpush1.bf16.msra.mxu0 0
  %1155 = vmatprep.subr.bf16.mxu0 0
  %1156 = vmatpush1.bf16.msra.mxu0 0
  %1157 = vmatprep.subr.bf16.mxu0 0
  %1158 = vmatpush1.bf16.msra.mxu0 0
  %1159 = vmatprep.mubr.bf16.mxu0 0
  %1160 = vmatmul.mubr.bf16.gmra.mrb[0].mxu0 %v1082
  %v1161 = vpop.f32.mrb[0].mxu0
  %v1162 = vadd.f32 0.0, %v1161
  %v1163 = vpop.f32.mrb[0].mxu0
  %v1164 = vpop.f32.mrb[0].mxu0
  %v1165 = vpop.f32.mrb[0].mxu0
  %1166 = vdwg.mxu0
  %v1167 = vadd.f32 %v1126, %v1162
  %v1168 = vtanh.pop %v1125
  %v1169 = vtanh.pop %v1167
  %v1170 = vpack.c.bf16 %v1168, %v1168
  %1171 = vst [vmem:[%s718] sm:$0xf] %v1170
  %v1172 = vpack.c.bf16 %v1169, %v1169
  %1173 = vst [vmem:[%s715 + $0x4] sm:$0xf] %v1172
  %v1174 = vld [vmem:[#allocation3 + $0x70] sm:$0xff]
  %1175 = vmatprep.subr.bf16.mxu0 0
  %1176 = vmatpush1.bf16.msra.mxu0 %v474
  %1177 = vmatprep.subr.bf16.mxu0 0
  %1178 = vmatpush1.bf16.msra.mxu0 %v475
  %1179 = vmatprep.subr.bf16.mxu0 0
  %1180 = vmatpush1.bf16.msra.mxu0 %v476
  %1181 = vmatprep.subr.bf16.mxu0 0
  %1182 = vmatpush1.bf16.msra.mxu0 %v477
  %1183 = vmatprep.subr.bf16.mxu0 0
  %1184 = vmatpush1.bf16.msra.mxu0 %v478
  %1185 = vmatprep.subr.bf16.mxu0 0
  %1186 = vmatpush1.bf16.msra.mxu0 %v479
  %1187 = vmatprep.subr.bf16.mxu0 0
  %1188 = vmatpush1.bf16.msra.mxu0 %v480
  %1189 = vmatprep.subr.bf16.mxu0 0
  %1190 = vmatpush1.bf16.msra.mxu0 %v481
  %1191 = vmatprep.subr.bf16.mxu0 0
  %1192 = vmatpush1.bf16.msra.mxu0 0
  %1193 = vmatprep.subr.bf16.mxu0 0
  %1194 = vmatpush1.bf16.msra.mxu0 0
  %1195 = vmatprep.subr.bf16.mxu0 0
  %1196 = vmatpush1.bf16.msra.mxu0 0
  %1197 = vmatprep.subr.bf16.mxu0 0
  %1198 = vmatpush1.bf16.msra.mxu0 0
  %1199 = vmatprep.subr.bf16.mxu0 0
  %1200 = vmatpush1.bf16.msra.mxu0 0
  %1201 = vmatprep.subr.bf16.mxu0 0
  %1202 = vmatpush1.bf16.msra.mxu0 0
  %1203 = vmatprep.subr.bf16.mxu0 0
  %1204 = vmatpush1.bf16.msra.mxu0 0
  %1205 = vmatprep.subr.bf16.mxu0 0
  %1206 = vmatpush1.bf16.msra.mxu0 0
  %1207 = vmatprep.mubr.bf16.mxu0 0
  %1208 = vmatmul.mubr.bf16.gmra.mrb[0].mxu0 %v1170
  %v1209 = vpop.f32.mrb[0].mxu0
  %v1210 = vadd.f32 0.0, %v1209
  %v1211 = vpop.f32.mrb[0].mxu0
  %v1212 = vpop.f32.mrb[0].mxu0
  %v1213 = vpop.f32.mrb[0].mxu0
  %1214 = vdwg.mxu0
  %v1215 = vadd.f32 %v1174, %v1210
  %v1216 = vld [vmem:[#allocation3 + $0x8] sm:$0xff]
  %1217 = vmatprep.subr.bf16.mxu0 0
  %1218 = vmatpush1.bf16.msra.mxu0 %v564
  %1219 = vmatprep.subr.bf16.mxu0 0
  %1220 = vmatpush1.bf16.msra.mxu0 %v565
  %1221 = vmatprep.subr.bf16.mxu0 0
  %1222 = vmatpush1.bf16.msra.mxu0 %v566
  %1223 = vmatprep.subr.bf16.mxu0 0
  %1224 = vmatpush1.bf16.msra.mxu0 %v567
  %1225 = vmatprep.subr.bf16.mxu0 0
  %1226 = vmatpush1.bf16.msra.mxu0 %v568
  %1227 = vmatprep.subr.bf16.mxu0 0
  %1228 = vmatpush1.bf16.msra.mxu0 %v569
  %1229 = vmatprep.subr.bf16.mxu0 0
  %1230 = vmatpush1.bf16.msra.mxu0 %v570
  %1231 = vmatprep.subr.bf16.mxu0 0
  %1232 = vmatpush1.bf16.msra.mxu0 %v571
  %1233 = vmatprep.subr.bf16.mxu0 0
  %1234 = vmatpush1.bf16.msra.mxu0 0
  %1235 = vmatprep.subr.bf16.mxu0 0
  %1236 = vmatpush1.bf16.msra.mxu0 0
  %1237 = vmatprep.subr.bf16.mxu0 0
  %1238 = vmatpush1.bf16.msra.mxu0 0
  %1239 = vmatprep.subr.bf16.mxu0 0
  %1240 = vmatpush1.bf16.msra.mxu0 0
  %1241 = vmatprep.subr.bf16.mxu0 0
  %1242 = vmatpush1.bf16.msra.mxu0 0
  %1243 = vmatprep.subr.bf16.mxu0 0
  %1244 = vmatpush1.bf16.msra.mxu0 0
  %1245 = vmatprep.subr.bf16.mxu0 0
  %1246 = vmatpush1.bf16.msra.mxu0 0
  %1247 = vmatprep.subr.bf16.mxu0 0
  %1248 = vmatpush1.bf16.msra.mxu0 0
  %1249 = vmatprep.mubr.bf16.mxu0 0
  %1250 = vmatmul.mubr.bf16.gmra.mrb[0].mxu0 %v1172
  %v1251 = vpop.f32.mrb[0].mxu0
  %v1252 = vadd.f32 0.0, %v1251
  %v1253 = vpop.f32.mrb[0].mxu0
  %v1254 = vpop.f32.mrb[0].mxu0
  %v1255 = vpop.f32.mrb[0].mxu0
  %1256 = vdwg.mxu0
  %v1257 = vadd.f32 %v1216, %v1252
  %v1258 = vtanh.pop %v1215
  %v1259 = vtanh.pop %v1257
  %v1260 = vpack.c.bf16 %v1258, %v1258
  %1261 = vst [vmem:[%s626] sm:$0xf] %v1260
  %v1262 = vpack.c.bf16 %v1259, %v1259
  %1263 = vst [vmem:[%s5 + $0x4] sm:$0xf] %v1262
  // Predicated region
  $region22: #{rnn_bidireccional_forward.4} parent=0 // pred_check
    _
  $region23: #{rnn_bidireccional_forward.4} parent=0 // pred_check_branch
    %1265 = sbr.rel (0) target = $region25
  $region24: #{rnn_bidireccional_forward.4} parent=0 // pred_region
    _
  $region25: #{rnn_bidireccional_forward.4} parent=0 // pred_fallthru
    _
  // Predicated region
  $region26: #{rnn_bidireccional_forward.4} parent=0 // pred_check
    _
  $region27: #{rnn_bidireccional_forward.4} parent=0 // pred_check_branch
    %1267 = sbr.rel (0) target = $region29
  $region28: #{rnn_bidireccional_forward.4} parent=0 // pred_region
    _
  $region29: #{rnn_bidireccional_forward.4} parent=0 // pred_fallthru
    _

</llo_original>
